<compile_context>
chip_gen: v5e
topology: v5e:2x2
jax: 0.10.0
libtpu: 0.0.40
codegen_flags: <defaults>
</compile_context>

<pallas_src>
import functools

import jax
import jax.numpy as jnp
from jax import lax
from jax.experimental import pallas as pl
from jax.experimental.pallas import tpu as pltpu

BN_EPS = 1e-5


def _decoder_block_kernel(x_ref, m1_ref, wd0_ref, wd1_ref, m3_ref, bnp_ref,
                          o_ref, *, H, W, Cmid, Cout):
    """Fused DecoderBlock forward on a lane-dense (B*H, ...) layout.

    x_ref:   (R, W*Cin)           rows (b, h), cols (w, ci)
    m1_ref:  (W*Cin, W*Cmid)      block-diag 1x1-conv weight
    wd0_ref: (W*Cmid, W*4*Cmid)   deconv contributions from y1[h, :]
    wd1_ref: (W*Cmid, W*4*Cmid)   deconv contributions from y1[h+1, :]
    m3_ref:  (W*4*Cmid, W*4*Cout) block-diag 1x1-conv weight
    bnp_ref: (6, max(Cmid, Cout)) packed [g1, be1, g2, be2, g3, be3]
    o_ref:   (R, W*4*Cout)        rows (b, h), cols (py, w, px, co)
    """
    f32 = jnp.float32
    R = x_ref.shape[0]
    n1 = float(R * W)            # B*H*W    elements per channel (stage 1)
    n23 = float(R * W * 4)       # B*2H*2W  elements per channel (stages 2 & 3)

    bnp = bnp_ref[...]
    rowsel = lax.broadcasted_iota(jnp.int32, (2, 1), 0)   # [[0], [1]]

    def bn_relu(a, C, gamma, beta, count):
        ncol = a.shape[1]
        # 0/1 channel gather / broadcast masks built in-register (no DMA, no HBM
        # operand).  Channel index is (column % C) in the lane-packed layout.
        red = (lax.broadcasted_iota(jnp.int32, (ncol, C), 0) % C ==
               lax.broadcasted_iota(jnp.int32, (ncol, C), 1)).astype(f32)
        exp = (lax.broadcasted_iota(jnp.int32, (C, ncol), 1) % C ==
               lax.broadcasted_iota(jnp.int32, (C, ncol), 0)).astype(f32)
        # One-pass batch stats; [sum ; sum_sq] stacked -> ONE gather matmul.
        col_s = jnp.sum(a, axis=0, keepdims=True)           # (1, ncol)
        col_ss = jnp.sum(a * a, axis=0, keepdims=True)      # (1, ncol)
        stats = jnp.where(rowsel == 0, col_s, col_ss)       # (2, ncol)
        ch = jnp.dot(stats, red, preferred_element_type=f32) * (1.0 / count)
        mean = ch[0:1, :]                                    # (1, C)
        var = jnp.maximum(ch[1:2, :] - mean * mean, 0.0)     # clamp one-pass var
        scale = gamma * lax.rsqrt(var + BN_EPS)              # (1, C)
        shift = beta - mean * scale
        # [scale ; shift] stacked -> ONE expand matmul back to packed lanes.
        ssx = jnp.dot(jnp.where(rowsel == 0, scale, shift), exp,
                      preferred_element_type=f32)            # (2, ncol)
        return jnp.maximum(a * ssx[0:1, :] + ssx[1:2, :], 0.0)

    # --- conv1 (1x1) + BN1 + ReLU: one MXU matmul (conv bias cancels in BN) ---
    a1 = jnp.dot(x_ref[...], m1_ref[...], preferred_element_type=f32)
    y1 = bn_relu(a1, Cmid, bnp[0:1, 0:Cmid], bnp[1:2, 0:Cmid], n1)

    # --- deconv2 (k=3, s=2, p=1, op=1) + BN2 + ReLU, parity-folded ---------
    # Needs y1 at rows h and h+1 (zero past each image's last row).  The shift
    # matrix is built from iota in-register: no DMA'd operand.
    ri = lax.broadcasted_iota(jnp.int32, (R, R), 0)
    ci = lax.broadcasted_iota(jnp.int32, (R, R), 1)
    sh = ((ci == ri + 1) & (ri % H != H - 1)).astype(f32)
    y1_dn = jnp.dot(sh, y1, preferred_element_type=f32)
    a2 = (jnp.dot(y1, wd0_ref[...], preferred_element_type=f32) +
          jnp.dot(y1_dn, wd1_ref[...], preferred_element_type=f32))
    y2 = bn_relu(a2, Cmid, bnp[2:3, 0:Cmid], bnp[3:4, 0:Cmid], n23)

    # --- conv3 (1x1) + BN3 + ReLU: one MXU matmul ---------------------------
    a3 = jnp.dot(y2, m3_ref[...], preferred_element_type=f32)
    o_ref[...] = bn_relu(a3, Cout, bnp[4:5, 0:Cout], bnp[5:6, 0:Cout],
                         n23).astype(o_ref.dtype)


def prepare_operands(params, W):
    """Build block-structured matmul operands ONCE per weight update (hoisted
    out of the per-call path).  Only depends on the weights and W."""
    w1, wd, w3 = params["w1"], params["wd"], params["w3"]
    Cin, Cmid = w1.shape
    Cout = w3.shape[1]
    f32 = jnp.float32
    eye_w = jnp.eye(W, dtype=f32)
    sub_w = jnp.eye(W, k=-1, dtype=f32)   # [n_in, n_out] = 1 iff n_in == n_out + 1
    zero = jnp.zeros((Cmid, Cmid), f32)

    # Stage 1: 1x1 conv as a single block-diagonal matmul on the (w, c) layout.
    m1 = jnp.kron(eye_w, w1)                               # (W*Cin, W*Cmid)

    # Stage 2: ConvTranspose2d decomposed by output parity.  Output columns are
    # ordered (py, w, px, co) so the wrapper's reshape needs no transpose.
    # out[2h+py, 2w+px] += y1[h,  w]  @ wd[:,:,py+1,px+1]
    #                   +  y1[h,  w+1]@ wd[:,:,py+1,0]     (px == 1 only)
    #                   +  y1[h+1,w]  @ wd[:,:,0,   px+1]  (py == 1 only)
    #                   +  y1[h+1,w+1]@ wd[:,:,0,   0]     (py == px == 1 only)
    T = lambda ky, kx: wd[:, :, ky, kx]                    # (Cmid, Cmid)

    def half(ky):                                          # one output-row parity
        d = jnp.concatenate([T(ky, 1), T(ky, 2)], axis=1)  # from y1[., w]
        s = jnp.concatenate([zero, T(ky, 0)], axis=1)      # from y1[., w+1]
        return jnp.kron(eye_w, d) + jnp.kron(sub_w, s)     # (W*Cmid, 2W*Cmid)

    h0 = half(0)
    wd0 = jnp.concatenate([half(1), half(2)], axis=1)                    # from y1[h]
    wd1 = jnp.concatenate([jnp.zeros_like(h0), h0], axis=1)              # from y1[h+1]

    # Stage 3: 1x1 conv on the (py, w, px, c) layout.
    m3 = jnp.kron(jnp.eye(W * 4, dtype=f32), w3)           # (W*4*Cmid, W*4*Cout)

    # Pack the six gamma/beta vectors into one tiny slab (single DMA).
    Cmax = max(Cmid, Cout)

    def row(v, C):
        return jnp.pad(v.reshape(1, -1).astype(f32), ((0, 0), (0, Cmax - C)))

    bnp = jnp.concatenate([row(params["g1"], Cmid), row(params["be1"], Cmid),
                           row(params["g2"], Cmid), row(params["be2"], Cmid),
                           row(params["g3"], Cout), row(params["be3"], Cout)],
                          axis=0)                          # (6, Cmax)
    return dict(m1=m1, wd0=wd0, wd1=wd1, m3=m3, bnp=bnp)


@jax.jit
def decoder_block(x_nchw, ops):
    """DecoderBlock forward. Input (B, Cin, H, W) -> output (B, Cout, 2H, 2W)."""
    B, Cin, H, W = x_nchw.shape
    Cmid = ops["m1"].shape[1] // W
    Cout = ops["m3"].shape[1] // (4 * W)
    R = B * H

    x2d = jnp.transpose(x_nchw, (0, 2, 3, 1)).reshape(R, W * Cin)

    vmem = pl.BlockSpec(memory_space=pltpu.MemorySpace.VMEM)
    out2d = pl.pallas_call(
        functools.partial(_decoder_block_kernel, H=H, W=W, Cmid=Cmid, Cout=Cout),
        out_shape=jax.ShapeDtypeStruct((R, W * 4 * Cout), jnp.float32),
        in_specs=[vmem] * 6,
        out_specs=vmem,
    )(x2d, ops["m1"], ops["wd0"], ops["wd1"], ops["m3"], ops["bnp"])

    # Columns are already (py, w, px, co): a single reshape gives NHWC.
    out = out2d.reshape(B, 2 * H, 2 * W, Cout)
    return jnp.transpose(out, (0, 3, 1, 2))                # NCHW


def init_params(key, in_channels, n_filters):
    Cmid = in_channels // 4
    ks = jax.random.split(key, 12)
    s1 = 1.0 / jnp.sqrt(in_channels * 1.0)
    sd = 1.0 / jnp.sqrt(Cmid * 9.0)
    s3 = 1.0 / jnp.sqrt(Cmid * 1.0)
    return {
        "w1": jax.random.uniform(ks[0], (in_channels, Cmid), jnp.float32, -s1, s1),
        "b1": jax.random.uniform(ks[1], (Cmid,), jnp.float32, -s1, s1),
        "g1": jax.random.uniform(ks[2], (Cmid,), jnp.float32, 0.5, 1.5),
        "be1": jax.random.uniform(ks[3], (Cmid,), jnp.float32, -0.5, 0.5),
        # ConvTranspose2d weight, PyTorch layout (in, out, kH, kW)
        "wd": jax.random.uniform(ks[4], (Cmid, Cmid, 3, 3), jnp.float32, -sd, sd),
        "bd": jax.random.uniform(ks[5], (Cmid,), jnp.float32, -sd, sd),
        "g2": jax.random.uniform(ks[6], (Cmid,), jnp.float32, 0.5, 1.5),
        "be2": jax.random.uniform(ks[7], (Cmid,), jnp.float32, -0.5, 0.5),
        "w3": jax.random.uniform(ks[8], (Cmid, n_filters), jnp.float32, -s3, s3),
        "b3": jax.random.uniform(ks[9], (n_filters,), jnp.float32, -s3, s3),
        "g3": jax.random.uniform(ks[10], (n_filters,), jnp.float32, 0.5, 1.5),
        "be3": jax.random.uniform(ks[11], (n_filters,), jnp.float32, -0.5, 0.5),
    }


@jax.jit
def _reference(x_nchw, params):
    """Pure-JAX reference (includes the conv biases the kernel drops)."""
    def bn_relu(y, g, b):
        mean = jnp.mean(y, axis=(0, 1, 2), keepdims=True)
        var = jnp.mean((y - mean) ** 2, axis=(0, 1, 2), keepdims=True)
        return jnp.maximum((y - mean) * lax.rsqrt(var + BN_EPS) * g + b, 0.0)

    x = jnp.transpose(x_nchw, (0, 2, 3, 1))
    y = jnp.einsum("bhwi,io->bhwo", x, params["w1"]) + params["b1"]
    y = bn_relu(y, params["g1"], params["be1"])
    # ConvTranspose2d(3, stride=2, padding=1, output_padding=1) as a
    # lhs-dilated direct conv with the spatially flipped kernel.
    w_hwio = jnp.flip(jnp.transpose(params["wd"], (2, 3, 0, 1)), axis=(0, 1))
    y = lax.conv_general_dilated(
        y, w_hwio, window_strides=(1, 1), padding=((1, 2), (1, 2)),
        lhs_dilation=(2, 2),
        dimension_numbers=("NHWC", "HWIO", "NHWC")) + params["bd"]
    y = bn_relu(y, params["g2"], params["be2"])
    y = jnp.einsum("bhwi,io->bhwo", y, params["w3"]) + params["b3"]
    y = bn_relu(y, params["g3"], params["be3"])
    return jnp.transpose(y, (0, 3, 1, 2))


if __name__ == "__main__":
    key = jax.random.PRNGKey(0)
    kx, kp = jax.random.split(key)

    B, Cin, Cout, H, W = 2, 16, 8, 16, 16          # in_channels=16 -> mid=4
    x = jax.random.normal(kx, (B, Cin, H, W), jnp.float32)   # NCHW like PyTorch
    params = init_params(kp, Cin, Cout)

    # Block-structured operands built ONCE per weight update (amortized).
    ops = jax.block_until_ready(prepare_operands(params, W))

    out = jax.block_until_ready(decoder_block(x, ops))
    assert out.shape == (B, Cout, 2 * H, 2 * W), out.shape

    ref = jax.block_until_ready(_reference(x, params))
    err = float(jnp.max(jnp.abs(out - ref)))
    assert jnp.allclose(out, ref, rtol=5e-4, atol=5e-4), err

    print("KERNEL_OK")
</pallas_src>

<mosaic_0001>
module attributes {stable_mosaic.version = 11 : i64} {
  func.func @_decoder_block_kernel(%arg0: memref<32x256xf32, #tpu.memory_space<vmem>>, %arg1: memref<256x64xf32, #tpu.memory_space<vmem>>, %arg2: memref<64x256xf32, #tpu.memory_space<vmem>>, %arg3: memref<64x256xf32, #tpu.memory_space<vmem>>, %arg4: memref<256x512xf32, #tpu.memory_space<vmem>>, %arg5: memref<6x8xf32, #tpu.memory_space<vmem>>, %arg6: memref<32x512xf32, #tpu.memory_space<vmem>>) attributes {dimension_semantics = [], scalar_prefetch = 0 : i64, scratch_operands = 0 : i64, tpu.core_type = #tpu.core_type<tc>} {
    %c0 = arith.constant 0 : index
    %c0_0 = arith.constant 0 : index
    %0 = vector.load %arg5[%c0, %c0_0] : memref<6x8xf32, #tpu.memory_space<vmem>>, vector<6x8xf32>
    %1 = tpu.iota {dimensions = array<i32: 0>} : vector<2x1xi32>
    %c0_1 = arith.constant 0 : index
    %c0_2 = arith.constant 0 : index
    %2 = vector.load %arg0[%c0_1, %c0_2] : memref<32x256xf32, #tpu.memory_space<vmem>>, vector<32x256xf32>
    %c0_3 = arith.constant 0 : index
    %c0_4 = arith.constant 0 : index
    %3 = vector.load %arg1[%c0_3, %c0_4] : memref<256x64xf32, #tpu.memory_space<vmem>>, vector<256x64xf32>
    %cst = arith.constant dense<0.000000e+00> : vector<32x64xf32>
    %4 = tpu.matmul %2, %3, %cst {dimension_numbers = #tpu.dot_dimension_numbers<[1], [0], [0], [1], [0, 0, 1, 1], [], []>} : vector<32x256xf32>, vector<256x64xf32>, vector<32x64xf32> -> vector<32x64xf32>
    %5 = vector.extract_strided_slice %0 {offsets = [0, 0], sizes = [1, 4], strides = [1, 1]} : vector<6x8xf32> to vector<1x4xf32>
    %6 = vector.extract_strided_slice %0 {offsets = [1, 0], sizes = [1, 4], strides = [1, 1]} : vector<6x8xf32> to vector<1x4xf32>
    %7 = tpu.iota {dimensions = array<i32: 0>} : vector<64x4xi32>
    %c4_i32 = arith.constant 4 : i32
    %c0_i32 = arith.constant 0 : i32
    %8 = arith.cmpi eq, %c4_i32, %c0_i32 : i32
    %c1_i32 = arith.constant 1 : i32
    %9 = arith.select %8, %c1_i32, %c4_i32 : i32
    %10 = vector.broadcast %9 : i32 to vector<64x4xi32>
    %11 = arith.remsi %7, %10 : vector<64x4xi32>
    %c0_i32_5 = arith.constant 0 : i32
    %12 = vector.broadcast %c0_i32_5 : i32 to vector<64x4xi32>
    %13 = arith.cmpi ne, %11, %12 : vector<64x4xi32>
    %c0_i32_6 = arith.constant 0 : i32
    %14 = vector.broadcast %c0_i32_6 : i32 to vector<64x4xi32>
    %15 = arith.cmpi slt, %11, %14 : vector<64x4xi32>
    %c0_i32_7 = arith.constant 0 : i32
    %16 = arith.cmpi slt, %9, %c0_i32_7 : i32
    %17 = vector.broadcast %16 : i1 to vector<64x4xi1>
    %18 = vector.broadcast %17 : vector<64x4xi1> to vector<64x4xi1>
    %19 = arith.xori %15, %18 : vector<64x4xi1>
    %20 = arith.andi %19, %13 : vector<64x4xi1>
    %21 = vector.broadcast %9 : i32 to vector<64x4xi32>
    %22 = arith.addi %11, %21 : vector<64x4xi32>
    %23 = arith.select %20, %22, %11 : vector<64x4xi1>, vector<64x4xi32>
    %24 = tpu.iota {dimensions = array<i32: 1>} : vector<64x4xi32>
    %25 = arith.cmpi eq, %23, %24 : vector<64x4xi32>
    %26 = arith.extui %25 : vector<64x4xi1> to vector<64x4xi32>
    %27 = arith.sitofp %26 : vector<64x4xi32> to vector<64x4xf32>
    %28 = tpu.iota {dimensions = array<i32: 1>} : vector<4x64xi32>
    %c4_i32_8 = arith.constant 4 : i32
    %c0_i32_9 = arith.constant 0 : i32
    %29 = arith.cmpi eq, %c4_i32_8, %c0_i32_9 : i32
    %c1_i32_10 = arith.constant 1 : i32
    %30 = arith.select %29, %c1_i32_10, %c4_i32_8 : i32
    %31 = vector.broadcast %30 : i32 to vector<4x64xi32>
    %32 = arith.remsi %28, %31 : vector<4x64xi32>
    %c0_i32_11 = arith.constant 0 : i32
    %33 = vector.broadcast %c0_i32_11 : i32 to vector<4x64xi32>
    %34 = arith.cmpi ne, %32, %33 : vector<4x64xi32>
    %c0_i32_12 = arith.constant 0 : i32
    %35 = vector.broadcast %c0_i32_12 : i32 to vector<4x64xi32>
    %36 = arith.cmpi slt, %32, %35 : vector<4x64xi32>
    %c0_i32_13 = arith.constant 0 : i32
    %37 = arith.cmpi slt, %30, %c0_i32_13 : i32
    %38 = vector.broadcast %37 : i1 to vector<4x64xi1>
    %39 = vector.broadcast %38 : vector<4x64xi1> to vector<4x64xi1>
    %40 = arith.xori %36, %39 : vector<4x64xi1>
    %41 = arith.andi %40, %34 : vector<4x64xi1>
    %42 = vector.broadcast %30 : i32 to vector<4x64xi32>
    %43 = arith.addi %32, %42 : vector<4x64xi32>
    %44 = arith.select %41, %43, %32 : vector<4x64xi1>, vector<4x64xi32>
    %45 = tpu.iota {dimensions = array<i32: 0>} : vector<4x64xi32>
    %46 = arith.cmpi eq, %44, %45 : vector<4x64xi32>
    %47 = arith.extui %46 : vector<4x64xi1> to vector<4x64xi32>
    %48 = arith.sitofp %47 : vector<4x64xi32> to vector<4x64xf32>
    %cst_14 = arith.constant dense<0.000000e+00> : vector<64xf32>
    %49 = vector.multi_reduction <add>, %4, %cst_14 [0] : vector<32x64xf32> to vector<64xf32>
    %50 = vector.shape_cast %49 : vector<64xf32> to vector<1x64xf32>
    %51 = arith.mulf %4, %4 : vector<32x64xf32>
    %cst_15 = arith.constant dense<0.000000e+00> : vector<64xf32>
    %52 = vector.multi_reduction <add>, %51, %cst_15 [0] : vector<32x64xf32> to vector<64xf32>
    %53 = vector.shape_cast %52 : vector<64xf32> to vector<1x64xf32>
    %c0_i32_16 = arith.constant 0 : i32
    %54 = vector.broadcast %c0_i32_16 : i32 to vector<2x1xi32>
    %55 = arith.cmpi eq, %1, %54 : vector<2x1xi32>
    %56 = vector.shape_cast %55 : vector<2x1xi1> to vector<2x1xi1>
    %57 = vector.broadcast %56 : vector<2x1xi1> to vector<2x64xi1>
    %58 = vector.shape_cast %50 : vector<1x64xf32> to vector<1x64xf32>
    %59 = vector.broadcast %58 : vector<1x64xf32> to vector<2x64xf32>
    %60 = vector.shape_cast %53 : vector<1x64xf32> to vector<1x64xf32>
    %61 = vector.broadcast %60 : vector<1x64xf32> to vector<2x64xf32>
    %62 = arith.select %57, %59, %61 : vector<2x64xi1>, vector<2x64xf32>
    %cst_17 = arith.constant dense<0.000000e+00> : vector<2x4xf32>
    %63 = tpu.matmul %62, %27, %cst_17 {dimension_numbers = #tpu.dot_dimension_numbers<[1], [0], [0], [1], [0, 0, 1, 1], [], []>} : vector<2x64xf32>, vector<64x4xf32>, vector<2x4xf32> -> vector<2x4xf32>
    %cst_18 = arith.constant 0.001953125 : f32
    %64 = vector.broadcast %cst_18 : f32 to vector<2x4xf32>
    %65 = arith.mulf %63, %64 : vector<2x4xf32>
    %66 = vector.extract_strided_slice %65 {offsets = [0, 0], sizes = [1, 4], strides = [1, 1]} : vector<2x4xf32> to vector<1x4xf32>
    %67 = vector.extract_strided_slice %65 {offsets = [1, 0], sizes = [1, 4], strides = [1, 1]} : vector<2x4xf32> to vector<1x4xf32>
    %68 = arith.mulf %66, %66 : vector<1x4xf32>
    %69 = arith.subf %67, %68 : vector<1x4xf32>
    %cst_19 = arith.constant 0.000000e+00 : f32
    %70 = vector.broadcast %cst_19 : f32 to vector<1x4xf32>
    %71 = arith.maximumf %69, %70 : vector<1x4xf32>
    %cst_20 = arith.constant 9.99999974E-6 : f32
    %72 = vector.broadcast %cst_20 : f32 to vector<1x4xf32>
    %73 = arith.addf %71, %72 : vector<1x4xf32>
    %74 = math.rsqrt %73 : vector<1x4xf32>
    %75 = arith.mulf %5, %74 : vector<1x4xf32>
    %76 = arith.mulf %66, %75 : vector<1x4xf32>
    %77 = arith.subf %6, %76 : vector<1x4xf32>
    %c0_i32_21 = arith.constant 0 : i32
    %78 = vector.broadcast %c0_i32_21 : i32 to vector<2x1xi32>
    %79 = arith.cmpi eq, %1, %78 : vector<2x1xi32>
    %80 = vector.shape_cast %79 : vector<2x1xi1> to vector<2x1xi1>
    %81 = vector.broadcast %80 : vector<2x1xi1> to vector<2x4xi1>
    %82 = vector.shape_cast %75 : vector<1x4xf32> to vector<1x4xf32>
    %83 = vector.broadcast %82 : vector<1x4xf32> to vector<2x4xf32>
    %84 = vector.shape_cast %77 : vector<1x4xf32> to vector<1x4xf32>
    %85 = vector.broadcast %84 : vector<1x4xf32> to vector<2x4xf32>
    %86 = arith.select %81, %83, %85 : vector<2x4xi1>, vector<2x4xf32>
    %cst_22 = arith.constant dense<0.000000e+00> : vector<2x64xf32>
    %87 = tpu.matmul %86, %48, %cst_22 {dimension_numbers = #tpu.dot_dimension_numbers<[1], [0], [0], [1], [0, 0, 1, 1], [], []>} : vector<2x4xf32>, vector<4x64xf32>, vector<2x64xf32> -> vector<2x64xf32>
    %88 = vector.extract_strided_slice %87 {offsets = [0, 0], sizes = [1, 64], strides = [1, 1]} : vector<2x64xf32> to vector<1x64xf32>
    %89 = vector.broadcast %88 : vector<1x64xf32> to vector<32x64xf32>
    %90 = arith.mulf %4, %89 : vector<32x64xf32>
    %91 = vector.extract_strided_slice %87 {offsets = [1, 0], sizes = [1, 64], strides = [1, 1]} : vector<2x64xf32> to vector<1x64xf32>
    %92 = vector.broadcast %91 : vector<1x64xf32> to vector<32x64xf32>
    %93 = arith.addf %90, %92 : vector<32x64xf32>
    %cst_23 = arith.constant 0.000000e+00 : f32
    %94 = vector.broadcast %cst_23 : f32 to vector<32x64xf32>
    %95 = arith.maximumf %93, %94 : vector<32x64xf32>
    %96 = tpu.iota {dimensions = array<i32: 0>} : vector<32x32xi32>
    %97 = tpu.iota {dimensions = array<i32: 1>} : vector<32x32xi32>
    %c1_i32_24 = arith.constant 1 : i32
    %98 = vector.broadcast %c1_i32_24 : i32 to vector<32x32xi32>
    %99 = arith.addi %96, %98 : vector<32x32xi32>
    %100 = arith.cmpi eq, %97, %99 : vector<32x32xi32>
    %c16_i32 = arith.constant 16 : i32
    %c0_i32_25 = arith.constant 0 : i32
    %101 = arith.cmpi eq, %c16_i32, %c0_i32_25 : i32
    %c1_i32_26 = arith.constant 1 : i32
    %102 = arith.select %101, %c1_i32_26, %c16_i32 : i32
    %103 = vector.broadcast %102 : i32 to vector<32x32xi32>
    %104 = arith.remsi %96, %103 : vector<32x32xi32>
    %c0_i32_27 = arith.constant 0 : i32
    %105 = vector.broadcast %c0_i32_27 : i32 to vector<32x32xi32>
    %106 = arith.cmpi ne, %104, %105 : vector<32x32xi32>
    %c0_i32_28 = arith.constant 0 : i32
    %107 = vector.broadcast %c0_i32_28 : i32 to vector<32x32xi32>
    %108 = arith.cmpi slt, %104, %107 : vector<32x32xi32>
    %c0_i32_29 = arith.constant 0 : i32
    %109 = arith.cmpi slt, %102, %c0_i32_29 : i32
    %110 = vector.broadcast %109 : i1 to vector<32x32xi1>
    %111 = vector.broadcast %110 : vector<32x32xi1> to vector<32x32xi1>
    %112 = arith.xori %108, %111 : vector<32x32xi1>
    %113 = arith.andi %112, %106 : vector<32x32xi1>
    %114 = vector.broadcast %102 : i32 to vector<32x32xi32>
    %115 = arith.addi %104, %114 : vector<32x32xi32>
    %116 = arith.select %113, %115, %104 : vector<32x32xi1>, vector<32x32xi32>
    %c15_i32 = arith.constant 15 : i32
    %117 = vector.broadcast %c15_i32 : i32 to vector<32x32xi32>
    %118 = arith.cmpi ne, %116, %117 : vector<32x32xi32>
    %119 = arith.andi %100, %118 : vector<32x32xi1>
    %120 = arith.extui %119 : vector<32x32xi1> to vector<32x32xi32>
    %121 = arith.sitofp %120 : vector<32x32xi32> to vector<32x32xf32>
    %cst_30 = arith.constant dense<0.000000e+00> : vector<32x64xf32>
    %122 = tpu.matmul %121, %95, %cst_30 {dimension_numbers = #tpu.dot_dimension_numbers<[1], [0], [0], [1], [0, 0, 1, 1], [], []>} : vector<32x32xf32>, vector<32x64xf32>, vector<32x64xf32> -> vector<32x64xf32>
    %c0_31 = arith.constant 0 : index
    %c0_32 = arith.constant 0 : index
    %123 = vector.load %arg2[%c0_31, %c0_32] : memref<64x256xf32, #tpu.memory_space<vmem>>, vector<64x256xf32>
    %cst_33 = arith.constant dense<0.000000e+00> : vector<32x256xf32>
    %124 = tpu.matmul %95, %123, %cst_33 {dimension_numbers = #tpu.dot_dimension_numbers<[1], [0], [0], [1], [0, 0, 1, 1], [], []>} : vector<32x64xf32>, vector<64x256xf32>, vector<32x256xf32> -> vector<32x256xf32>
    %c0_34 = arith.constant 0 : index
    %c0_35 = arith.constant 0 : index
    %125 = vector.load %arg3[%c0_34, %c0_35] : memref<64x256xf32, #tpu.memory_space<vmem>>, vector<64x256xf32>
    %cst_36 = arith.constant dense<0.000000e+00> : vector<32x256xf32>
    %126 = tpu.matmul %122, %125, %cst_36 {dimension_numbers = #tpu.dot_dimension_numbers<[1], [0], [0], [1], [0, 0, 1, 1], [], []>} : vector<32x64xf32>, vector<64x256xf32>, vector<32x256xf32> -> vector<32x256xf32>
    %127 = arith.addf %124, %126 : vector<32x256xf32>
    %128 = vector.extract_strided_slice %0 {offsets = [2, 0], sizes = [1, 4], strides = [1, 1]} : vector<6x8xf32> to vector<1x4xf32>
    %129 = vector.extract_strided_slice %0 {offsets = [3, 0], sizes = [1, 4], strides = [1, 1]} : vector<6x8xf32> to vector<1x4xf32>
    %130 = tpu.iota {dimensions = array<i32: 0>} : vector<256x4xi32>
    %c4_i32_37 = arith.constant 4 : i32
    %c0_i32_38 = arith.constant 0 : i32
    %131 = arith.cmpi eq, %c4_i32_37, %c0_i32_38 : i32
    %c1_i32_39 = arith.constant 1 : i32
    %132 = arith.select %131, %c1_i32_39, %c4_i32_37 : i32
    %133 = vector.broadcast %132 : i32 to vector<256x4xi32>
    %134 = arith.remsi %130, %133 : vector<256x4xi32>
    %c0_i32_40 = arith.constant 0 : i32
    %135 = vector.broadcast %c0_i32_40 : i32 to vector<256x4xi32>
    %136 = arith.cmpi ne, %134, %135 : vector<256x4xi32>
    %c0_i32_41 = arith.constant 0 : i32
    %137 = vector.broadcast %c0_i32_41 : i32 to vector<256x4xi32>
    %138 = arith.cmpi slt, %134, %137 : vector<256x4xi32>
    %c0_i32_42 = arith.constant 0 : i32
    %139 = arith.cmpi slt, %132, %c0_i32_42 : i32
    %140 = vector.broadcast %139 : i1 to vector<256x4xi1>
    %141 = vector.broadcast %140 : vector<256x4xi1> to vector<256x4xi1>
    %142 = arith.xori %138, %141 : vector<256x4xi1>
    %143 = arith.andi %142, %136 : vector<256x4xi1>
    %144 = vector.broadcast %132 : i32 to vector<256x4xi32>
    %145 = arith.addi %134, %144 : vector<256x4xi32>
    %146 = arith.select %143, %145, %134 : vector<256x4xi1>, vector<256x4xi32>
    %147 = tpu.iota {dimensions = array<i32: 1>} : vector<256x4xi32>
    %148 = arith.cmpi eq, %146, %147 : vector<256x4xi32>
    %149 = arith.extui %148 : vector<256x4xi1> to vector<256x4xi32>
    %150 = arith.sitofp %149 : vector<256x4xi32> to vector<256x4xf32>
    %151 = tpu.iota {dimensions = array<i32: 1>} : vector<4x256xi32>
    %c4_i32_43 = arith.constant 4 : i32
    %c0_i32_44 = arith.constant 0 : i32
    %152 = arith.cmpi eq, %c4_i32_43, %c0_i32_44 : i32
    %c1_i32_45 = arith.constant 1 : i32
    %153 = arith.select %152, %c1_i32_45, %c4_i32_43 : i32
    %154 = vector.broadcast %153 : i32 to vector<4x256xi32>
    %155 = arith.remsi %151, %154 : vector<4x256xi32>
    %c0_i32_46 = arith.constant 0 : i32
    %156 = vector.broadcast %c0_i32_46 : i32 to vector<4x256xi32>
    %157 = arith.cmpi ne, %155, %156 : vector<4x256xi32>
    %c0_i32_47 = arith.constant 0 : i32
    %158 = vector.broadcast %c0_i32_47 : i32 to vector<4x256xi32>
    %159 = arith.cmpi slt, %155, %158 : vector<4x256xi32>
    %c0_i32_48 = arith.constant 0 : i32
    %160 = arith.cmpi slt, %153, %c0_i32_48 : i32
    %161 = vector.broadcast %160 : i1 to vector<4x256xi1>
    %162 = vector.broadcast %161 : vector<4x256xi1> to vector<4x256xi1>
    %163 = arith.xori %159, %162 : vector<4x256xi1>
    %164 = arith.andi %163, %157 : vector<4x256xi1>
    %165 = vector.broadcast %153 : i32 to vector<4x256xi32>
    %166 = arith.addi %155, %165 : vector<4x256xi32>
    %167 = arith.select %164, %166, %155 : vector<4x256xi1>, vector<4x256xi32>
    %168 = tpu.iota {dimensions = array<i32: 0>} : vector<4x256xi32>
    %169 = arith.cmpi eq, %167, %168 : vector<4x256xi32>
    %170 = arith.extui %169 : vector<4x256xi1> to vector<4x256xi32>
    %171 = arith.sitofp %170 : vector<4x256xi32> to vector<4x256xf32>
    %cst_49 = arith.constant dense<0.000000e+00> : vector<256xf32>
    %172 = vector.multi_reduction <add>, %127, %cst_49 [0] : vector<32x256xf32> to vector<256xf32>
    %173 = vector.shape_cast %172 : vector<256xf32> to vector<1x256xf32>
    %174 = arith.mulf %127, %127 : vector<32x256xf32>
    %cst_50 = arith.constant dense<0.000000e+00> : vector<256xf32>
    %175 = vector.multi_reduction <add>, %174, %cst_50 [0] : vector<32x256xf32> to vector<256xf32>
    %176 = vector.shape_cast %175 : vector<256xf32> to vector<1x256xf32>
    %c0_i32_51 = arith.constant 0 : i32
    %177 = vector.broadcast %c0_i32_51 : i32 to vector<2x1xi32>
    %178 = arith.cmpi eq, %1, %177 : vector<2x1xi32>
    %179 = vector.shape_cast %178 : vector<2x1xi1> to vector<2x1xi1>
    %180 = vector.broadcast %179 : vector<2x1xi1> to vector<2x256xi1>
    %181 = vector.shape_cast %173 : vector<1x256xf32> to vector<1x256xf32>
    %182 = vector.broadcast %181 : vector<1x256xf32> to vector<2x256xf32>
    %183 = vector.shape_cast %176 : vector<1x256xf32> to vector<1x256xf32>
    %184 = vector.broadcast %183 : vector<1x256xf32> to vector<2x256xf32>
    %185 = arith.select %180, %182, %184 : vector<2x256xi1>, vector<2x256xf32>
    %cst_52 = arith.constant dense<0.000000e+00> : vector<2x4xf32>
    %186 = tpu.matmul %185, %150, %cst_52 {dimension_numbers = #tpu.dot_dimension_numbers<[1], [0], [0], [1], [0, 0, 1, 1], [], []>} : vector<2x256xf32>, vector<256x4xf32>, vector<2x4xf32> -> vector<2x4xf32>
    %cst_53 = arith.constant 4.8828125E-4 : f32
    %187 = vector.broadcast %cst_53 : f32 to vector<2x4xf32>
    %188 = arith.mulf %186, %187 : vector<2x4xf32>
    %189 = vector.extract_strided_slice %188 {offsets = [0, 0], sizes = [1, 4], strides = [1, 1]} : vector<2x4xf32> to vector<1x4xf32>
    %190 = vector.extract_strided_slice %188 {offsets = [1, 0], sizes = [1, 4], strides = [1, 1]} : vector<2x4xf32> to vector<1x4xf32>
    %191 = arith.mulf %189, %189 : vector<1x4xf32>
    %192 = arith.subf %190, %191 : vector<1x4xf32>
    %cst_54 = arith.constant 0.000000e+00 : f32
    %193 = vector.broadcast %cst_54 : f32 to vector<1x4xf32>
    %194 = arith.maximumf %192, %193 : vector<1x4xf32>
    %cst_55 = arith.constant 9.99999974E-6 : f32
    %195 = vector.broadcast %cst_55 : f32 to vector<1x4xf32>
    %196 = arith.addf %194, %195 : vector<1x4xf32>
    %197 = math.rsqrt %196 : vector<1x4xf32>
    %198 = arith.mulf %128, %197 : vector<1x4xf32>
    %199 = arith.mulf %189, %198 : vector<1x4xf32>
    %200 = arith.subf %129, %199 : vector<1x4xf32>
    %c0_i32_56 = arith.constant 0 : i32
    %201 = vector.broadcast %c0_i32_56 : i32 to vector<2x1xi32>
    %202 = arith.cmpi eq, %1, %201 : vector<2x1xi32>
    %203 = vector.shape_cast %202 : vector<2x1xi1> to vector<2x1xi1>
    %204 = vector.broadcast %203 : vector<2x1xi1> to vector<2x4xi1>
    %205 = vector.shape_cast %198 : vector<1x4xf32> to vector<1x4xf32>
    %206 = vector.broadcast %205 : vector<1x4xf32> to vector<2x4xf32>
    %207 = vector.shape_cast %200 : vector<1x4xf32> to vector<1x4xf32>
    %208 = vector.broadcast %207 : vector<1x4xf32> to vector<2x4xf32>
    %209 = arith.select %204, %206, %208 : vector<2x4xi1>, vector<2x4xf32>
    %cst_57 = arith.constant dense<0.000000e+00> : vector<2x256xf32>
    %210 = tpu.matmul %209, %171, %cst_57 {dimension_numbers = #tpu.dot_dimension_numbers<[1], [0], [0], [1], [0, 0, 1, 1], [], []>} : vector<2x4xf32>, vector<4x256xf32>, vector<2x256xf32> -> vector<2x256xf32>
    %211 = vector.extract_strided_slice %210 {offsets = [0, 0], sizes = [1, 256], strides = [1, 1]} : vector<2x256xf32> to vector<1x256xf32>
    %212 = vector.broadcast %211 : vector<1x256xf32> to vector<32x256xf32>
    %213 = arith.mulf %127, %212 : vector<32x256xf32>
    %214 = vector.extract_strided_slice %210 {offsets = [1, 0], sizes = [1, 256], strides = [1, 1]} : vector<2x256xf32> to vector<1x256xf32>
    %215 = vector.broadcast %214 : vector<1x256xf32> to vector<32x256xf32>
    %216 = arith.addf %213, %215 : vector<32x256xf32>
    %cst_58 = arith.constant 0.000000e+00 : f32
    %217 = vector.broadcast %cst_58 : f32 to vector<32x256xf32>
    %218 = arith.maximumf %216, %217 : vector<32x256xf32>
    %c0_59 = arith.constant 0 : index
    %c0_60 = arith.constant 0 : index
    %219 = vector.load %arg4[%c0_59, %c0_60] : memref<256x512xf32, #tpu.memory_space<vmem>>, vector<256x512xf32>
    %cst_61 = arith.constant dense<0.000000e+00> : vector<32x512xf32>
    %220 = tpu.matmul %218, %219, %cst_61 {dimension_numbers = #tpu.dot_dimension_numbers<[1], [0], [0], [1], [0, 0, 1, 1], [], []>} : vector<32x256xf32>, vector<256x512xf32>, vector<32x512xf32> -> vector<32x512xf32>
    %221 = vector.extract_strided_slice %0 {offsets = [4, 0], sizes = [1, 8], strides = [1, 1]} : vector<6x8xf32> to vector<1x8xf32>
    %222 = vector.extract_strided_slice %0 {offsets = [5, 0], sizes = [1, 8], strides = [1, 1]} : vector<6x8xf32> to vector<1x8xf32>
    %223 = tpu.iota {dimensions = array<i32: 0>} : vector<512x8xi32>
    %c8_i32 = arith.constant 8 : i32
    %c0_i32_62 = arith.constant 0 : i32
    %224 = arith.cmpi eq, %c8_i32, %c0_i32_62 : i32
    %c1_i32_63 = arith.constant 1 : i32
    %225 = arith.select %224, %c1_i32_63, %c8_i32 : i32
    %226 = vector.broadcast %225 : i32 to vector<512x8xi32>
    %227 = arith.remsi %223, %226 : vector<512x8xi32>
    %c0_i32_64 = arith.constant 0 : i32
    %228 = vector.broadcast %c0_i32_64 : i32 to vector<512x8xi32>
    %229 = arith.cmpi ne, %227, %228 : vector<512x8xi32>
    %c0_i32_65 = arith.constant 0 : i32
    %230 = vector.broadcast %c0_i32_65 : i32 to vector<512x8xi32>
    %231 = arith.cmpi slt, %227, %230 : vector<512x8xi32>
    %c0_i32_66 = arith.constant 0 : i32
    %232 = arith.cmpi slt, %225, %c0_i32_66 : i32
    %233 = vector.broadcast %232 : i1 to vector<512x8xi1>
    %234 = vector.broadcast %233 : vector<512x8xi1> to vector<512x8xi1>
    %235 = arith.xori %231, %234 : vector<512x8xi1>
    %236 = arith.andi %235, %229 : vector<512x8xi1>
    %237 = vector.broadcast %225 : i32 to vector<512x8xi32>
    %238 = arith.addi %227, %237 : vector<512x8xi32>
    %239 = arith.select %236, %238, %227 : vector<512x8xi1>, vector<512x8xi32>
    %240 = tpu.iota {dimensions = array<i32: 1>} : vector<512x8xi32>
    %241 = arith.cmpi eq, %239, %240 : vector<512x8xi32>
    %242 = arith.extui %241 : vector<512x8xi1> to vector<512x8xi32>
    %243 = arith.sitofp %242 : vector<512x8xi32> to vector<512x8xf32>
    %244 = tpu.iota {dimensions = array<i32: 1>} : vector<8x512xi32>
    %c8_i32_67 = arith.constant 8 : i32
    %c0_i32_68 = arith.constant 0 : i32
    %245 = arith.cmpi eq, %c8_i32_67, %c0_i32_68 : i32
    %c1_i32_69 = arith.constant 1 : i32
    %246 = arith.select %245, %c1_i32_69, %c8_i32_67 : i32
    %247 = vector.broadcast %246 : i32 to vector<8x512xi32>
    %248 = arith.remsi %244, %247 : vector<8x512xi32>
    %c0_i32_70 = arith.constant 0 : i32
    %249 = vector.broadcast %c0_i32_70 : i32 to vector<8x512xi32>
    %250 = arith.cmpi ne, %248, %249 : vector<8x512xi32>
    %c0_i32_71 = arith.constant 0 : i32
    %251 = vector.broadcast %c0_i32_71 : i32 to vector<8x512xi32>
    %252 = arith.cmpi slt, %248, %251 : vector<8x512xi32>
    %c0_i32_72 = arith.constant 0 : i32
    %253 = arith.cmpi slt, %246, %c0_i32_72 : i32
    %254 = vector.broadcast %253 : i1 to vector<8x512xi1>
    %255 = vector.broadcast %254 : vector<8x512xi1> to vector<8x512xi1>
    %256 = arith.xori %252, %255 : vector<8x512xi1>
    %257 = arith.andi %256, %250 : vector<8x512xi1>
    %258 = vector.broadcast %246 : i32 to vector<8x512xi32>
    %259 = arith.addi %248, %258 : vector<8x512xi32>
    %260 = arith.select %257, %259, %248 : vector<8x512xi1>, vector<8x512xi32>
    %261 = tpu.iota {dimensions = array<i32: 0>} : vector<8x512xi32>
    %262 = arith.cmpi eq, %260, %261 : vector<8x512xi32>
    %263 = arith.extui %262 : vector<8x512xi1> to vector<8x512xi32>
    %264 = arith.sitofp %263 : vector<8x512xi32> to vector<8x512xf32>
    %cst_73 = arith.constant dense<0.000000e+00> : vector<512xf32>
    %265 = vector.multi_reduction <add>, %220, %cst_73 [0] : vector<32x512xf32> to vector<512xf32>
    %266 = vector.shape_cast %265 : vector<512xf32> to vector<1x512xf32>
    %267 = arith.mulf %220, %220 : vector<32x512xf32>
    %cst_74 = arith.constant dense<0.000000e+00> : vector<512xf32>
    %268 = vector.multi_reduction <add>, %267, %cst_74 [0] : vector<32x512xf32> to vector<512xf32>
    %269 = vector.shape_cast %268 : vector<512xf32> to vector<1x512xf32>
    %c0_i32_75 = arith.constant 0 : i32
    %270 = vector.broadcast %c0_i32_75 : i32 to vector<2x1xi32>
    %271 = arith.cmpi eq, %1, %270 : vector<2x1xi32>
    %272 = vector.shape_cast %271 : vector<2x1xi1> to vector<2x1xi1>
    %273 = vector.broadcast %272 : vector<2x1xi1> to vector<2x512xi1>
    %274 = vector.shape_cast %266 : vector<1x512xf32> to vector<1x512xf32>
    %275 = vector.broadcast %274 : vector<1x512xf32> to vector<2x512xf32>
    %276 = vector.shape_cast %269 : vector<1x512xf32> to vector<1x512xf32>
    %277 = vector.broadcast %276 : vector<1x512xf32> to vector<2x512xf32>
    %278 = arith.select %273, %275, %277 : vector<2x512xi1>, vector<2x512xf32>
    %cst_76 = arith.constant dense<0.000000e+00> : vector<2x8xf32>
    %279 = tpu.matmul %278, %243, %cst_76 {dimension_numbers = #tpu.dot_dimension_numbers<[1], [0], [0], [1], [0, 0, 1, 1], [], []>} : vector<2x512xf32>, vector<512x8xf32>, vector<2x8xf32> -> vector<2x8xf32>
    %cst_77 = arith.constant 4.8828125E-4 : f32
    %280 = vector.broadcast %cst_77 : f32 to vector<2x8xf32>
    %281 = arith.mulf %279, %280 : vector<2x8xf32>
    %282 = vector.extract_strided_slice %281 {offsets = [0, 0], sizes = [1, 8], strides = [1, 1]} : vector<2x8xf32> to vector<1x8xf32>
    %283 = vector.extract_strided_slice %281 {offsets = [1, 0], sizes = [1, 8], strides = [1, 1]} : vector<2x8xf32> to vector<1x8xf32>
    %284 = arith.mulf %282, %282 : vector<1x8xf32>
    %285 = arith.subf %283, %284 : vector<1x8xf32>
    %cst_78 = arith.constant 0.000000e+00 : f32
    %286 = vector.broadcast %cst_78 : f32 to vector<1x8xf32>
    %287 = arith.maximumf %285, %286 : vector<1x8xf32>
    %cst_79 = arith.constant 9.99999974E-6 : f32
    %288 = vector.broadcast %cst_79 : f32 to vector<1x8xf32>
    %289 = arith.addf %287, %288 : vector<1x8xf32>
    %290 = math.rsqrt %289 : vector<1x8xf32>
    %291 = arith.mulf %221, %290 : vector<1x8xf32>
    %292 = arith.mulf %282, %291 : vector<1x8xf32>
    %293 = arith.subf %222, %292 : vector<1x8xf32>
    %c0_i32_80 = arith.constant 0 : i32
    %294 = vector.broadcast %c0_i32_80 : i32 to vector<2x1xi32>
    %295 = arith.cmpi eq, %1, %294 : vector<2x1xi32>
    %296 = vector.shape_cast %295 : vector<2x1xi1> to vector<2x1xi1>
    %297 = vector.broadcast %296 : vector<2x1xi1> to vector<2x8xi1>
    %298 = vector.shape_cast %291 : vector<1x8xf32> to vector<1x8xf32>
    %299 = vector.broadcast %298 : vector<1x8xf32> to vector<2x8xf32>
    %300 = vector.shape_cast %293 : vector<1x8xf32> to vector<1x8xf32>
    %301 = vector.broadcast %300 : vector<1x8xf32> to vector<2x8xf32>
    %302 = arith.select %297, %299, %301 : vector<2x8xi1>, vector<2x8xf32>
    %cst_81 = arith.constant dense<0.000000e+00> : vector<2x512xf32>
    %303 = tpu.matmul %302, %264, %cst_81 {dimension_numbers = #tpu.dot_dimension_numbers<[1], [0], [0], [1], [0, 0, 1, 1], [], []>} : vector<2x8xf32>, vector<8x512xf32>, vector<2x512xf32> -> vector<2x512xf32>
    %304 = vector.extract_strided_slice %303 {offsets = [0, 0], sizes = [1, 512], strides = [1, 1]} : vector<2x512xf32> to vector<1x512xf32>
    %305 = vector.broadcast %304 : vector<1x512xf32> to vector<32x512xf32>
    %306 = arith.mulf %220, %305 : vector<32x512xf32>
    %307 = vector.extract_strided_slice %303 {offsets = [1, 0], sizes = [1, 512], strides = [1, 1]} : vector<2x512xf32> to vector<1x512xf32>
    %308 = vector.broadcast %307 : vector<1x512xf32> to vector<32x512xf32>
    %309 = arith.addf %306, %308 : vector<32x512xf32>
    %cst_82 = arith.constant 0.000000e+00 : f32
    %310 = vector.broadcast %cst_82 : f32 to vector<32x512xf32>
    %311 = arith.maximumf %309, %310 : vector<32x512xf32>
    %c0_83 = arith.constant 0 : index
    %c0_84 = arith.constant 0 : index
    %312 = vector.load %arg6[%c0_83, %c0_84] : memref<32x512xf32, #tpu.memory_space<vmem>>, vector<32x512xf32>
    tpu.vector_store %arg6[%c0_83, %c0_84], %311 {strides = array<i32>} : memref<32x512xf32, #tpu.memory_space<vmem>>, vector<32x512xf32>,
    return
  }
}

</mosaic_0001>

<llo_original>
// kernel: decoder_block.1
$region0: #{decoder_block.1}
  #allocation0 [shape = 'u32[]', space=smem, size = 0x4, offset = 0x4, fixed_abs, tag = 'smem constant byte address 0x4 - core index']
  #allocation1 [shape = 'u32[72,128]{1,0:T(1,128)}', space=vmem, size = 0x9000, scoped, tag = 'internal scratch']
  %s0 = inlined_call_operand.vmem [shape: f32[32,256], index: 0, kind: input, shape index: {}]
  %s1 = inlined_call_operand.vmem [shape: f32[256,64], index: 1, kind: input, shape index: {}]
  %s2 = inlined_call_operand.vmem [shape: f32[64,256], index: 2, kind: input, shape index: {}]
  %s3 = inlined_call_operand.vmem [shape: f32[64,256], index: 3, kind: input, shape index: {}]
  %s4 = inlined_call_operand.vmem [shape: f32[256,512], index: 4, kind: input, shape index: {}]
  %s5 = inlined_call_operand.vmem [shape: f32[6,8], index: 5, kind: input, shape index: {}]
  %s6 = inlined_call_operand.vmem [shape: f32[32,512], index: 6, kind: output, shape index: {}]
  %s7 = sld [smem:[#allocation0]]
  $region34: #{decoder_block.1} parent=0
    _
  %s9 = ssub.s32 1, %s7
  %s10 = scalar_select 0, %s9, %s7
  // Predicated region
  $region2: #{decoder_block.1} parent=0 // pred_check
    _
  $region3: #{decoder_block.1} parent=0 // pred_check_branch
    %12 = sbr.rel (0) target = $region5
  $region4: #{decoder_block.1} parent=0 // pred_region
    _
  $region5: #{decoder_block.1} parent=0 // pred_fallthru
    _
  // Predicated region
  $region6: #{decoder_block.1} parent=0 // pred_check
    _
  $region7: #{decoder_block.1} parent=0 // pred_check_branch
    %14 = sbr.rel (0) target = $region9
  $region8: #{decoder_block.1} parent=0 // pred_region
    _
  $region9: #{decoder_block.1} parent=0 // pred_fallthru
    _
  // Predicated region
  $region10: #{decoder_block.1} parent=0 // pred_check
    _
  $region11: #{decoder_block.1} parent=0 // pred_check_branch
    %16 = sbr.rel (0) target = $region13
  $region12: #{decoder_block.1} parent=0 // pred_region
    _
  $region13: #{decoder_block.1} parent=0 // pred_fallthru
    _
  // Predicated region
  $region14: #{decoder_block.1} parent=0 // pred_check
    _
  $region15: #{decoder_block.1} parent=0 // pred_check_branch
    %18 = sbr.rel (0) target = $region17
  $region16: #{decoder_block.1} parent=0 // pred_region
    _
  $region17: #{decoder_block.1} parent=0 // pred_fallthru
    _
  // Predicated region
  $region18: #{decoder_block.1} parent=0 // pred_check
    _
  $region19: #{decoder_block.1} parent=0 // pred_check_branch
    %20 = sbr.rel (0) target = $region21
  $region20: #{decoder_block.1} parent=0 // pred_region
    _
  $region21: #{decoder_block.1} parent=0 // pred_fallthru
    _
  // Predicated region
  $region22: #{decoder_block.1} parent=0 // pred_check
    _
  $region23: #{decoder_block.1} parent=0 // pred_check_branch
    %22 = sbr.rel (0) target = $region25
  $region24: #{decoder_block.1} parent=0 // pred_region
    _
  $region25: #{decoder_block.1} parent=0 // pred_fallthru
    _
  %v23 = vld [vmem:[%s5] sm:$0x3f]
  %v24 = vlaneseq
  %v25 = vshrl.u32 %v24, 7
  %v26 = vld [vmem:[%s0] sm:$0xff]
  %v27 = vld [vmem:[%s0 + $0x8] sm:$0xff]
  %v28 = vld [vmem:[%s0 + $0x10] sm:$0xff]
  %v29 = vld [vmem:[%s0 + $0x18] sm:$0xff]
  %v30 = vld [vmem:[%s0 + $0x20] sm:$0xff]
  %v31 = vld [vmem:[%s0 + $0x28] sm:$0xff]
  %v32 = vld [vmem:[%s0 + $0x30] sm:$0xff]
  %v33 = vld [vmem:[%s0 + $0x38] sm:$0xff]
  %v34 = vld [vmem:[%s1] sm:$0xff]
  %v35 = vld [vmem:[%s1 + $0x8] sm:$0xff]
  %v36 = vld [vmem:[%s1 + $0x10] sm:$0xff]
  %v37 = vld [vmem:[%s1 + $0x18] sm:$0xff]
  %v38 = vld [vmem:[%s1 + $0x20] sm:$0xff]
  %v39 = vld [vmem:[%s1 + $0x28] sm:$0xff]
  %v40 = vld [vmem:[%s1 + $0x30] sm:$0xff]
  %v41 = vld [vmem:[%s1 + $0x38] sm:$0xff]
  %v42 = vld [vmem:[%s1 + $0x40] sm:$0xff]
  %v43 = vld [vmem:[%s1 + $0x48] sm:$0xff]
  %v44 = vld [vmem:[%s1 + $0x50] sm:$0xff]
  %v45 = vld [vmem:[%s1 + $0x58] sm:$0xff]
  %v46 = vld [vmem:[%s1 + $0x60] sm:$0xff]
  %v47 = vld [vmem:[%s1 + $0x68] sm:$0xff]
  %v48 = vld [vmem:[%s1 + $0x70] sm:$0xff]
  %v49 = vld [vmem:[%s1 + $0x78] sm:$0xff]
  %v50 = vld [vmem:[%s1 + $0x80] sm:$0xff]
  %v51 = vld [vmem:[%s1 + $0x88] sm:$0xff]
  %v52 = vld [vmem:[%s1 + $0x90] sm:$0xff]
  %v53 = vld [vmem:[%s1 + $0x98] sm:$0xff]
  %v54 = vld [vmem:[%s1 + $0xa0] sm:$0xff]
  %v55 = vld [vmem:[%s1 + $0xa8] sm:$0xff]
  %v56 = vld [vmem:[%s1 + $0xb0] sm:$0xff]
  %v57 = vld [vmem:[%s1 + $0xb8] sm:$0xff]
  %v58 = vld [vmem:[%s1 + $0xc0] sm:$0xff]
  %v59 = vld [vmem:[%s1 + $0xc8] sm:$0xff]
  %v60 = vld [vmem:[%s1 + $0xd0] sm:$0xff]
  %v61 = vld [vmem:[%s1 + $0xd8] sm:$0xff]
  %v62 = vld [vmem:[%s1 + $0xe0] sm:$0xff]
  %v63 = vld [vmem:[%s1 + $0xe8] sm:$0xff]
  %v64 = vld [vmem:[%s1 + $0xf0] sm:$0xff]
  %v65 = vld [vmem:[%s1 + $0xf8] sm:$0xff]
  %66 = vmatpush.msra.mxu0 %v49
  %67 = vmatpush.msra.mxu0 %v48
  %68 = vmatpush.msra.mxu0 %v47
  %69 = vmatpush.msra.mxu0 %v46
  %70 = vmatpush.msra.mxu0 %v45
  %71 = vmatpush.msra.mxu0 %v44
  %72 = vmatpush.msra.mxu0 %v43
  %73 = vmatpush.msra.mxu0 %v42
  %74 = vmatpush.msra.mxu0 %v41
  %75 = vmatpush.msra.mxu0 %v40
  %76 = vmatpush.msra.mxu0 %v39
  %77 = vmatpush.msra.mxu0 %v38
  %78 = vmatpush.msra.mxu0 %v37
  %79 = vmatpush.msra.mxu0 %v36
  %80 = vmatpush.msra.mxu0 %v35
  %81 = vmatpush.msra.mxu0 %v34
  %82 = vmatmul.f32.gmra.mxu0 %v26
  %v83 = vpop.f32.mrf.mxu0
  %v84 = vadd.f32 0.0, %v83
  %85 = vmatmul.f32.gmra.mxu0 %v28
  %v86 = vpop.f32.mrf.mxu0
  %v87 = vadd.f32 0.0, %v86
  %88 = vmatmul.f32.gmra.mxu0 %v30
  %v89 = vpop.f32.mrf.mxu0
  %v90 = vadd.f32 0.0, %v89
  %91 = vmatmul.f32.gmra.mxu0 %v32
  %v92 = vpop.f32.mrf.mxu0
  %v93 = vadd.f32 0.0, %v92
  %94 = vdwg.mxu0
  %95 = vmatpush.msra.mxu0 %v65
  %96 = vmatpush.msra.mxu0 %v64
  %97 = vmatpush.msra.mxu0 %v63
  %98 = vmatpush.msra.mxu0 %v62
  %99 = vmatpush.msra.mxu0 %v61
  %100 = vmatpush.msra.mxu0 %v60
  %101 = vmatpush.msra.mxu0 %v59
  %102 = vmatpush.msra.mxu0 %v58
  %103 = vmatpush.msra.mxu0 %v57
  %104 = vmatpush.msra.mxu0 %v56
  %105 = vmatpush.msra.mxu0 %v55
  %106 = vmatpush.msra.mxu0 %v54
  %107 = vmatpush.msra.mxu0 %v53
  %108 = vmatpush.msra.mxu0 %v52
  %109 = vmatpush.msra.mxu0 %v51
  %110 = vmatpush.msra.mxu0 %v50
  %111 = vmatmul.f32.gmra.mxu0 %v27
  %v112 = vpop.f32.mrf.mxu0
  %v113 = vadd.f32 %v84, %v112
  %114 = vmatmul.f32.gmra.mxu0 %v29
  %v115 = vpop.f32.mrf.mxu0
  %v116 = vadd.f32 %v87, %v115
  %117 = vmatmul.f32.gmra.mxu0 %v31
  %v118 = vpop.f32.mrf.mxu0
  %v119 = vadd.f32 %v90, %v118
  %120 = vmatmul.f32.gmra.mxu0 %v33
  %v121 = vpop.f32.mrf.mxu0
  %v122 = vadd.f32 %v93, %v121
  %123 = vdwg.mxu0
  %v124 = vadd.s32 %v25, 8
  %v125 = vadd.s32 %v25, 16
  %v126 = vadd.s32 %v25, 24
  %v127 = vadd.s32 %v25, 32
  %v128 = vadd.s32 %v25, 40
  %v129 = vadd.s32 %v25, 48
  %v130 = vadd.s32 %v25, 56
  %vm131 = vcmp.lt.s32.totalorder %v25, 0
  %v132 = vsub.s32 0, %v25
  %v133 = vsel %vm131, %v132, %v25
  %v134 = vshrl.u32 %v133, 2
  %v135 = vand.u32 %v133, 3
  %v136 = vsub.s32 0, %v135
  %v137 = vsel %vm131, %v136, %v135
  %vm138 = vcmp.lt.s32.totalorder %v124, 0
  %v139 = vsub.s32 0, %v124
  %v140 = vsel %vm138, %v139, %v124
  %v141 = vshrl.u32 %v140, 2
  %v142 = vand.u32 %v140, 3
  %v143 = vsub.s32 0, %v142
  %v144 = vsel %vm138, %v143, %v142
  %vm145 = vcmp.lt.s32.totalorder %v125, 0
  %v146 = vsub.s32 0, %v125
  %v147 = vsel %vm145, %v146, %v125
  %v148 = vshrl.u32 %v147, 2
  %v149 = vand.u32 %v147, 3
  %v150 = vsub.s32 0, %v149
  %v151 = vsel %vm145, %v150, %v149
  %vm152 = vcmp.lt.s32.totalorder %v126, 0
  %v153 = vsub.s32 0, %v126
  %v154 = vsel %vm152, %v153, %v126
  %v155 = vshrl.u32 %v154, 2
  %v156 = vand.u32 %v154, 3
  %v157 = vsub.s32 0, %v156
  %v158 = vsel %vm152, %v157, %v156
  %vm159 = vcmp.lt.s32.totalorder %v127, 0
  %v160 = vsub.s32 0, %v127
  %v161 = vsel %vm159, %v160, %v127
  %v162 = vshrl.u32 %v161, 2
  %v163 = vand.u32 %v161, 3
  %v164 = vsub.s32 0, %v163
  %v165 = vsel %vm159, %v164, %v163
  %vm166 = vcmp.lt.s32.totalorder %v128, 0
  %v167 = vsub.s32 0, %v128
  %v168 = vsel %vm166, %v167, %v128
  %v169 = vshrl.u32 %v168, 2
  %v170 = vand.u32 %v168, 3
  %v171 = vsub.s32 0, %v170
  %v172 = vsel %vm166, %v171, %v170
  %vm173 = vcmp.lt.s32.totalorder %v129, 0
  %v174 = vsub.s32 0, %v129
  %v175 = vsel %vm173, %v174, %v129
  %v176 = vshrl.u32 %v175, 2
  %v177 = vand.u32 %v175, 3
  %v178 = vsub.s32 0, %v177
  %v179 = vsel %vm173, %v178, %v177
  %vm180 = vcmp.lt.s32.totalorder %v130, 0
  %v181 = vsub.s32 0, %v130
  %v182 = vsel %vm180, %v181, %v130
  %v183 = vshrl.u32 %v182, 2
  %v184 = vand.u32 %v182, 3
  %v185 = vsub.s32 0, %v184
  %v186 = vsel %vm180, %v185, %v184
  %vm187 = vcmp.ne.s32.totalorder %v137, 0
  %vm188 = vcmp.ne.s32.totalorder %v144, 0
  %vm189 = vcmp.ne.s32.totalorder %v151, 0
  %vm190 = vcmp.ne.s32.totalorder %v158, 0
  %vm191 = vcmp.ne.s32.totalorder %v165, 0
  %vm192 = vcmp.ne.s32.totalorder %v172, 0
  %vm193 = vcmp.ne.s32.totalorder %v179, 0
  %vm194 = vcmp.ne.s32.totalorder %v186, 0
  %vm195 = vcmp.lt.s32.totalorder %v137, 0
  %vm196 = vcmp.lt.s32.totalorder %v144, 0
  %vm197 = vcmp.lt.s32.totalorder %v151, 0
  %vm198 = vcmp.lt.s32.totalorder %v158, 0
  %vm199 = vcmp.lt.s32.totalorder %v165, 0
  %vm200 = vcmp.lt.s32.totalorder %v172, 0
  %vm201 = vcmp.lt.s32.totalorder %v179, 0
  %vm202 = vcmp.lt.s32.totalorder %v186, 0
  %vm203 = vmand %vm195, %vm187
  %vm204 = vmand %vm196, %vm188
  %vm205 = vmand %vm197, %vm189
  %vm206 = vmand %vm198, %vm190
  %vm207 = vmand %vm199, %vm191
  %vm208 = vmand %vm200, %vm192
  %vm209 = vmand %vm201, %vm193
  %vm210 = vmand %vm202, %vm194
  %v211 = vadd.s32 %v137, 4
  %v212 = vadd.s32 %v144, 4
  %v213 = vadd.s32 %v151, 4
  %v214 = vadd.s32 %v158, 4
  %v215 = vadd.s32 %v165, 4
  %v216 = vadd.s32 %v172, 4
  %v217 = vadd.s32 %v179, 4
  %v218 = vadd.s32 %v186, 4
  %v219 = vsel %vm203, %v211, %v137
  %v220 = vsel %vm204, %v212, %v144
  %v221 = vsel %vm205, %v213, %v151
  %v222 = vsel %vm206, %v214, %v158
  %v223 = vsel %vm207, %v215, %v165
  %v224 = vsel %vm208, %v216, %v172
  %v225 = vsel %vm209, %v217, %v179
  %v226 = vsel %vm210, %v218, %v186
  %v227 = vlaneseq
  %v228 = vand.u32 %v227, 127
  %vm229 = vcmp.eq.s32.totalorder %v219, %v228
  %vm230 = vcmp.eq.s32.totalorder %v220, %v228
  %vm231 = vcmp.eq.s32.totalorder %v221, %v228
  %vm232 = vcmp.eq.s32.totalorder %v222, %v228
  %vm233 = vcmp.eq.s32.totalorder %v223, %v228
  %vm234 = vcmp.eq.s32.totalorder %v224, %v228
  %vm235 = vcmp.eq.s32.totalorder %v225, %v228
  %vm236 = vcmp.eq.s32.totalorder %v226, %v228
  %v237 = vsel %vm229, 1, 0
  %v238 = vsel %vm230, 1, 0
  %v239 = vsel %vm231, 1, 0
  %v240 = vsel %vm232, 1, 0
  %v241 = vsel %vm233, 1, 0
  %v242 = vsel %vm234, 1, 0
  %v243 = vsel %vm235, 1, 0
  %v244 = vsel %vm236, 1, 0
  %v245 = vcvt.s32.f32 %v237
  %v246 = vcvt.s32.f32 %v238
  %v247 = vcvt.s32.f32 %v239
  %v248 = vcvt.s32.f32 %v240
  %v249 = vcvt.s32.f32 %v241
  %v250 = vcvt.s32.f32 %v242
  %v251 = vcvt.s32.f32 %v243
  %v252 = vcvt.s32.f32 %v244
  %vm253 = vcmp.lt.s32.totalorder %v228, 0
  %v254 = vsub.s32 0, %v228
  %v255 = vsel %vm253, %v254, %v228
  %v256 = vshrl.u32 %v255, 2
  %v257 = vand.u32 %v255, 3
  %v258 = vsub.s32 0, %v257
  %v259 = vsel %vm253, %v258, %v257
  %vm260 = vcmp.ne.s32.totalorder %v259, 0
  %vm261 = vcmp.lt.s32.totalorder %v259, 0
  %vm262 = vmand %vm261, %vm260
  %v263 = vadd.s32 %v259, 4
  %v264 = vsel %vm262, %v263, %v259
  %vm265 = vcmp.eq.s32.totalorder %v264, %v25
  %v266 = vsel %vm265, 1, 0
  %v267 = vcvt.s32.f32 %v266
  %vm268 = vcmask 523264
  %v269 = vsel %vm268, %v113, 0.0
  %v270 = vsel %vm268, %v116, 0.0
  %v271 = vadd.f32 %v269, %v270
  %v272 = vsel %vm268, %v119, 0.0
  %v273 = vadd.f32 %v271, %v272
  %v274 = vsel %vm268, %v122, 0.0
  %v275 = vadd.f32 %v273, %v274
  %v276 = vrot.slane %v275, 4
  %v277 = vadd.f32 %v275, %v276
  %v278 = vrot.slane %v277, 2
  %v279 = vadd.f32 %v277, %v278
  %v280 = vrot.slane %v279, 1
  %v281 = vadd.f32 %v279, %v280
  %v282 = vmul.f32 %v113, %v113
  %v283 = vmul.f32 %v116, %v116
  %v284 = vmul.f32 %v119, %v119
  %v285 = vmul.f32 %v122, %v122
  %v286 = vsel %vm268, %v282, 0.0
  %v287 = vsel %vm268, %v283, 0.0
  %v288 = vadd.f32 %v286, %v287
  %v289 = vsel %vm268, %v284, 0.0
  %v290 = vadd.f32 %v288, %v289
  %v291 = vsel %vm268, %v285, 0.0
  %v292 = vadd.f32 %v290, %v291
  %v293 = vrot.slane %v292, 4
  %v294 = vadd.f32 %v292, %v293
  %v295 = vrot.slane %v294, 2
  %v296 = vadd.f32 %v294, %v295
  %v297 = vrot.slane %v296, 1
  %v298 = vadd.f32 %v296, %v297
  %vm299 = vcmp.eq.s32.totalorder %v25, 0
  %v300 = vsel %vm299, 1, 0
  %vm301 = vcmp.eq.s32.totalorder %v300, 1
  %v302 = vsel %vm301, %v281, %v298
  %v304 = vsel %vm268, %v302, 0
  %306 = vmatpush.msra.mxu0 0.0
  %307 = vmatpush.msra.mxu0 0.0
  %308 = vmatpush.msra.mxu0 0.0
  %309 = vmatpush.msra.mxu0 0.0
  %310 = vmatpush.msra.mxu0 0.0
  %311 = vmatpush.msra.mxu0 0.0
  %312 = vmatpush.msra.mxu0 0.0
  %313 = vmatpush.msra.mxu0 0.0
  %314 = vmatpush.msra.mxu0 %v252
  %315 = vmatpush.msra.mxu0 %v251
  %316 = vmatpush.msra.mxu0 %v250
  %317 = vmatpush.msra.mxu0 %v249
  %318 = vmatpush.msra.mxu0 %v248
  %319 = vmatpush.msra.mxu0 %v247
  %320 = vmatpush.msra.mxu0 %v246
  %321 = vmatpush.msra.mxu0 %v245
  %322 = vmatmul.f32.gmra.mxu0 %v304
  %v323 = vpop.f32.mrf.mxu0
  %v324 = vadd.f32 0.0, %v323
  %325 = vdwg.mxu0
  %v326 = vmul.f32 %v324, 0.001953125
  %v327 = vmul.f32 %v326, %v326
  %v329 = vrot.slane %v327, 7
  %v331 = vsub.f32 %v326, %v329
  %v332 = vmax.f32 %v331, 0.0
  %v333 = vadd.f32 %v332, 1e-05
  %v334 = vrsqrt.pop %v333
  %v335 = vmul.f32 %v334, %v333
  %v336 = vmul.f32 %v335, %v334
  %v337 = vmul.f32 0.5, %v336
  %v338 = vsub.f32 1.5, %v337
  %v339 = vmul.f32 %v334, %v338
  %vm340 = vweird.f32 %v333
  %vm341 = vweird.f32 %v334
  %vm342 = vmor %vm340, %vm341
  %v343 = vsel %vm342, %v334, %v339
  %v345 = vrot.slane %v343, 1
  %v347 = vmul.f32 %v23, %v345
  %v348 = vmul.f32 %v326, %v347
  %v350 = vrot.slane %v348, 7
  %v352 = vsub.f32 %v23, %v350
  %v353 = vperm.slane %v347, 0
  %v354 = vperm.slane %v352, 1
  %v355 = vsel %vm301, %v353, %v354
  %vm356 = vcmask 31744
  %v358 = vsel %vm356, %v355, 0
  %vm360 = vcmask 1043456
  %v362 = vsel %vm360, %v267, 0
  %364 = vmatpush.msra.mxu0 0.0
  %365 = vmatpush.msra.mxu0 0.0
  %366 = vmatpush.msra.mxu0 0.0
  %367 = vmatpush.msra.mxu0 0.0
  %368 = vmatpush.msra.mxu0 0.0
  %369 = vmatpush.msra.mxu0 0.0
  %370 = vmatpush.msra.mxu0 0.0
  %371 = vmatpush.msra.mxu0 0.0
  %372 = vmatpush.msra.mxu0 0.0
  %373 = vmatpush.msra.mxu0 0.0
  %374 = vmatpush.msra.mxu0 0.0
  %375 = vmatpush.msra.mxu0 0.0
  %376 = vmatpush.msra.mxu0 0.0
  %377 = vmatpush.msra.mxu0 0.0
  %378 = vmatpush.msra.mxu0 0.0
  %379 = vmatpush.msra.mxu0 %v362
  %380 = vmatmul.f32.gmra.mxu0 %v358
  %v381 = vpop.f32.mrf.mxu0
  %v382 = vadd.f32 0.0, %v381
  %383 = vdwg.mxu0
  %v384 = vperm.slane %v382, 0
  %v385 = vmul.f32 %v113, %v384
  %v386 = vmul.f32 %v116, %v384
  %v387 = vmul.f32 %v119, %v384
  %v388 = vmul.f32 %v122, %v384
  %v389 = vperm.slane %v382, 1
  %v390 = vadd.f32 %v385, %v389
  %v391 = vadd.f32 %v386, %v389
  %v392 = vadd.f32 %v387, %v389
  %v393 = vadd.f32 %v388, %v389
  %v394 = vmax.f32 %v390, 0.0
  %v395 = vmax.f32 %v391, 0.0
  %v396 = vmax.f32 %v392, 0.0
  %v397 = vmax.f32 %v393, 0.0
  %v398 = vadd.s32 %v25, 1
  %v399 = vadd.s32 %v124, 1
  %v400 = vadd.s32 %v125, 1
  %v401 = vadd.s32 %v126, 1
  %vm402 = vcmp.eq.s32.totalorder %v228, %v398
  %vm403 = vcmp.eq.s32.totalorder %v228, %v399
  %vm404 = vcmp.eq.s32.totalorder %v228, %v400
  %vm405 = vcmp.eq.s32.totalorder %v228, %v401
  %vm406 = vcmp.lt.s32.totalorder %v25, 0
  %v407 = vsub.s32 0, %v25
  %v408 = vsel %vm406, %v407, %v25
  %v409 = vshrl.u32 %v408, 4
  %v410 = vand.u32 %v408, 15
  %v411 = vsub.s32 0, %v410
  %v412 = vsel %vm406, %v411, %v410
  %vm413 = vcmp.lt.s32.totalorder %v124, 0
  %v414 = vsub.s32 0, %v124
  %v415 = vsel %vm413, %v414, %v124
  %v416 = vshrl.u32 %v415, 4
  %v417 = vand.u32 %v415, 15
  %v418 = vsub.s32 0, %v417
  %v419 = vsel %vm413, %v418, %v417
  %vm420 = vcmp.lt.s32.totalorder %v125, 0
  %v421 = vsub.s32 0, %v125
  %v422 = vsel %vm420, %v421, %v125
  %v423 = vshrl.u32 %v422, 4
  %v424 = vand.u32 %v422, 15
  %v425 = vsub.s32 0, %v424
  %v426 = vsel %vm420, %v425, %v424
  %vm427 = vcmp.lt.s32.totalorder %v126, 0
  %v428 = vsub.s32 0, %v126
  %v429 = vsel %vm427, %v428, %v126
  %v430 = vshrl.u32 %v429, 4
  %v431 = vand.u32 %v429, 15
  %v432 = vsub.s32 0, %v431
  %v433 = vsel %vm427, %v432, %v431
  %vm434 = vcmp.ne.s32.totalorder %v412, 0
  %vm435 = vcmp.ne.s32.totalorder %v419, 0
  %vm436 = vcmp.ne.s32.totalorder %v426, 0
  %vm437 = vcmp.ne.s32.totalorder %v433, 0
  %vm438 = vcmp.lt.s32.totalorder %v412, 0
  %vm439 = vcmp.lt.s32.totalorder %v419, 0
  %vm440 = vcmp.lt.s32.totalorder %v426, 0
  %vm441 = vcmp.lt.s32.totalorder %v433, 0
  %vm442 = vmand %vm438, %vm434
  %vm443 = vmand %vm439, %vm435
  %vm444 = vmand %vm440, %vm436
  %vm445 = vmand %vm441, %vm437
  %v446 = vadd.s32 %v412, 16
  %v447 = vadd.s32 %v419, 16
  %v448 = vadd.s32 %v426, 16
  %v449 = vadd.s32 %v433, 16
  %v450 = vsel %vm442, %v446, %v412
  %v451 = vsel %vm443, %v447, %v419
  %v452 = vsel %vm444, %v448, %v426
  %v453 = vsel %vm445, %v449, %v433
  %vm454 = vcmp.ne.s32.totalorder %v450, 15
  %vm455 = vcmp.ne.s32.totalorder %v451, 15
  %vm456 = vcmp.ne.s32.totalorder %v452, 15
  %vm457 = vcmp.ne.s32.totalorder %v453, 15
  %vm458 = vmand %vm402, %vm454
  %vm459 = vmand %vm403, %vm455
  %vm460 = vmand %vm404, %vm456
  %vm461 = vmand %vm405, %vm457
  %v462 = vsel %vm458, 1, 0
  %v463 = vsel %vm459, 1, 0
  %v464 = vsel %vm460, 1, 0
  %v465 = vsel %vm461, 1, 0
  %v466 = vcvt.s32.f32 %v462
  %v467 = vcvt.s32.f32 %v463
  %v468 = vcvt.s32.f32 %v464
  %v469 = vcvt.s32.f32 %v465
  %vm470 = vcmask 261120
  %v472 = vsel %vm470, %v466, 0
  %v475 = vsel %vm470, %v467, 0
  %v478 = vsel %vm470, %v468, 0
  %v481 = vsel %vm470, %v469, 0
  %483 = vmatpush.msra.mxu0 0.0
  %484 = vmatpush.msra.mxu0 0.0
  %485 = vmatpush.msra.mxu0 0.0
  %486 = vmatpush.msra.mxu0 0.0
  %487 = vmatpush.msra.mxu0 0.0
  %488 = vmatpush.msra.mxu0 0.0
  %489 = vmatpush.msra.mxu0 0.0
  %490 = vmatpush.msra.mxu0 0.0
  %491 = vmatpush.msra.mxu0 0.0
  %492 = vmatpush.msra.mxu0 0.0
  %493 = vmatpush.msra.mxu0 0.0
  %494 = vmatpush.msra.mxu0 0.0
  %495 = vmatpush.msra.mxu0 %v397
  %496 = vmatpush.msra.mxu0 %v396
  %497 = vmatpush.msra.mxu0 %v395
  %498 = vmatpush.msra.mxu0 %v394
  %499 = vmatmul.f32.gmra.mxu0 %v472
  %v500 = vpop.f32.mrf.mxu0
  %v501 = vadd.f32 0.0, %v500
  %502 = vmatmul.f32.gmra.mxu0 %v475
  %v503 = vpop.f32.mrf.mxu0
  %v504 = vadd.f32 0.0, %v503
  %505 = vmatmul.f32.gmra.mxu0 %v478
  %v506 = vpop.f32.mrf.mxu0
  %v507 = vadd.f32 0.0, %v506
  %508 = vmatmul.f32.gmra.mxu0 %v481
  %v509 = vpop.f32.mrf.mxu0
  %v510 = vadd.f32 0.0, %v509
  %511 = vdwg.mxu0
  %v512 = vld [vmem:[%s2] sm:$0xff]
  %v513 = vld [vmem:[%s2 + $0x8] sm:$0xff]
  %v514 = vld [vmem:[%s2 + $0x10] sm:$0xff]
  %v515 = vld [vmem:[%s2 + $0x18] sm:$0xff]
  %v516 = vld [vmem:[%s2 + $0x20] sm:$0xff]
  %v517 = vld [vmem:[%s2 + $0x28] sm:$0xff]
  %v518 = vld [vmem:[%s2 + $0x30] sm:$0xff]
  %v519 = vld [vmem:[%s2 + $0x38] sm:$0xff]
  %v520 = vld [vmem:[%s2 + $0x40] sm:$0xff]
  %v521 = vld [vmem:[%s2 + $0x48] sm:$0xff]
  %v522 = vld [vmem:[%s2 + $0x50] sm:$0xff]
  %v523 = vld [vmem:[%s2 + $0x58] sm:$0xff]
  %v524 = vld [vmem:[%s2 + $0x60] sm:$0xff]
  %v525 = vld [vmem:[%s2 + $0x68] sm:$0xff]
  %v526 = vld [vmem:[%s2 + $0x70] sm:$0xff]
  %v527 = vld [vmem:[%s2 + $0x78] sm:$0xff]
  %v528 = vld [vmem:[%s3] sm:$0xff]
  %v529 = vld [vmem:[%s3 + $0x8] sm:$0xff]
  %v530 = vld [vmem:[%s3 + $0x10] sm:$0xff]
  %v531 = vld [vmem:[%s3 + $0x18] sm:$0xff]
  %v532 = vld [vmem:[%s3 + $0x20] sm:$0xff]
  %v533 = vld [vmem:[%s3 + $0x28] sm:$0xff]
  %v534 = vld [vmem:[%s3 + $0x30] sm:$0xff]
  %v535 = vld [vmem:[%s3 + $0x38] sm:$0xff]
  %v536 = vld [vmem:[%s3 + $0x40] sm:$0xff]
  %v537 = vld [vmem:[%s3 + $0x48] sm:$0xff]
  %v538 = vld [vmem:[%s3 + $0x50] sm:$0xff]
  %v539 = vld [vmem:[%s3 + $0x58] sm:$0xff]
  %v540 = vld [vmem:[%s3 + $0x60] sm:$0xff]
  %v541 = vld [vmem:[%s3 + $0x68] sm:$0xff]
  %v542 = vld [vmem:[%s3 + $0x70] sm:$0xff]
  %v543 = vld [vmem:[%s3 + $0x78] sm:$0xff]
  %v545 = vsel %vm268, %v501, 0
  %v548 = vsel %vm268, %v504, 0
  %v551 = vsel %vm268, %v507, 0
  %v554 = vsel %vm268, %v510, 0
  %556 = vmatpush.msra.mxu0 0.0
  %557 = vmatpush.msra.mxu0 0.0
  %558 = vmatpush.msra.mxu0 0.0
  %559 = vmatpush.msra.mxu0 0.0
  %560 = vmatpush.msra.mxu0 0.0
  %561 = vmatpush.msra.mxu0 0.0
  %562 = vmatpush.msra.mxu0 0.0
  %563 = vmatpush.msra.mxu0 0.0
  %564 = vmatpush.msra.mxu0 %v542
  %565 = vmatpush.msra.mxu0 %v540
  %566 = vmatpush.msra.mxu0 %v538
  %567 = vmatpush.msra.mxu0 %v536
  %568 = vmatpush.msra.mxu0 %v534
  %569 = vmatpush.msra.mxu0 %v532
  %570 = vmatpush.msra.mxu0 %v530
  %571 = vmatpush.msra.mxu0 %v528
  %572 = vmatmul.f32.gmra.mxu0 %v545
  %v573 = vpop.f32.mrf.mxu0
  %v574 = vadd.f32 0.0, %v573
  %575 = vmatmul.f32.gmra.mxu0 %v548
  %v576 = vpop.f32.mrf.mxu0
  %v577 = vadd.f32 0.0, %v576
  %578 = vmatmul.f32.gmra.mxu0 %v551
  %v579 = vpop.f32.mrf.mxu0
  %v580 = vadd.f32 0.0, %v579
  %581 = vmatmul.f32.gmra.mxu0 %v554
  %v582 = vpop.f32.mrf.mxu0
  %v583 = vadd.f32 0.0, %v582
  %584 = vdwg.mxu0
  %585 = vmatpush.msra.mxu0 0.0
  %586 = vmatpush.msra.mxu0 0.0
  %587 = vmatpush.msra.mxu0 0.0
  %588 = vmatpush.msra.mxu0 0.0
  %589 = vmatpush.msra.mxu0 0.0
  %590 = vmatpush.msra.mxu0 0.0
  %591 = vmatpush.msra.mxu0 0.0
  %592 = vmatpush.msra.mxu0 0.0
  %593 = vmatpush.msra.mxu0 %v543
  %594 = vmatpush.msra.mxu0 %v541
  %595 = vmatpush.msra.mxu0 %v539
  %596 = vmatpush.msra.mxu0 %v537
  %597 = vmatpush.msra.mxu0 %v535
  %598 = vmatpush.msra.mxu0 %v533
  %599 = vmatpush.msra.mxu0 %v531
  %600 = vmatpush.msra.mxu0 %v529
  %601 = vmatmul.f32.gmra.mxu0 %v545
  %v602 = vpop.f32.mrf.mxu0
  %v603 = vadd.f32 0.0, %v602
  %604 = vmatmul.f32.gmra.mxu0 %v548
  %v605 = vpop.f32.mrf.mxu0
  %v606 = vadd.f32 0.0, %v605
  %607 = vmatmul.f32.gmra.mxu0 %v551
  %v608 = vpop.f32.mrf.mxu0
  %v609 = vadd.f32 0.0, %v608
  %610 = vmatmul.f32.gmra.mxu0 %v554
  %v611 = vpop.f32.mrf.mxu0
  %v612 = vadd.f32 0.0, %v611
  %613 = vdwg.mxu0
  %v615 = vsel %vm268, %v394, 0
  %v618 = vsel %vm268, %v395, 0
  %v621 = vsel %vm268, %v396, 0
  %v624 = vsel %vm268, %v397, 0
  %626 = vmatpush.msra.mxu0 0.0
  %627 = vmatpush.msra.mxu0 0.0
  %628 = vmatpush.msra.mxu0 0.0
  %629 = vmatpush.msra.mxu0 0.0
  %630 = vmatpush.msra.mxu0 0.0
  %631 = vmatpush.msra.mxu0 0.0
  %632 = vmatpush.msra.mxu0 0.0
  %633 = vmatpush.msra.mxu0 0.0
  %634 = vmatpush.msra.mxu0 %v526
  %635 = vmatpush.msra.mxu0 %v524
  %636 = vmatpush.msra.mxu0 %v522
  %637 = vmatpush.msra.mxu0 %v520
  %638 = vmatpush.msra.mxu0 %v518
  %639 = vmatpush.msra.mxu0 %v516
  %640 = vmatpush.msra.mxu0 %v514
  %641 = vmatpush.msra.mxu0 %v512
  %642 = vmatmul.f32.gmra.mxu0 %v615
  %v643 = vpop.f32.mrf.mxu0
  %v644 = vadd.f32 %v574, %v643
  %645 = vmatmul.f32.gmra.mxu0 %v618
  %v646 = vpop.f32.mrf.mxu0
  %v647 = vadd.f32 %v577, %v646
  %648 = vmatmul.f32.gmra.mxu0 %v621
  %v649 = vpop.f32.mrf.mxu0
  %v650 = vadd.f32 %v580, %v649
  %651 = vmatmul.f32.gmra.mxu0 %v624
  %v652 = vpop.f32.mrf.mxu0
  %v653 = vadd.f32 %v583, %v652
  %654 = vdwg.mxu0
  %655 = vmatpush.msra.mxu0 0.0
  %656 = vmatpush.msra.mxu0 0.0
  %657 = vmatpush.msra.mxu0 0.0
  %658 = vmatpush.msra.mxu0 0.0
  %659 = vmatpush.msra.mxu0 0.0
  %660 = vmatpush.msra.mxu0 0.0
  %661 = vmatpush.msra.mxu0 0.0
  %662 = vmatpush.msra.mxu0 0.0
  %663 = vmatpush.msra.mxu0 %v527
  %664 = vmatpush.msra.mxu0 %v525
  %665 = vmatpush.msra.mxu0 %v523
  %666 = vmatpush.msra.mxu0 %v521
  %667 = vmatpush.msra.mxu0 %v519
  %668 = vmatpush.msra.mxu0 %v517
  %669 = vmatpush.msra.mxu0 %v515
  %670 = vmatpush.msra.mxu0 %v513
  %671 = vmatmul.f32.gmra.mxu0 %v615
  %v672 = vpop.f32.mrf.mxu0
  %v673 = vadd.f32 %v603, %v672
  %674 = vmatmul.f32.gmra.mxu0 %v618
  %v675 = vpop.f32.mrf.mxu0
  %v676 = vadd.f32 %v606, %v675
  %677 = vmatmul.f32.gmra.mxu0 %v621
  %v678 = vpop.f32.mrf.mxu0
  %v679 = vadd.f32 %v609, %v678
  %680 = vmatmul.f32.gmra.mxu0 %v624
  %v681 = vpop.f32.mrf.mxu0
  %v682 = vadd.f32 %v612, %v681
  %683 = vdwg.mxu0
  %v684 = vadd.s32 %v25, 64
  %v685 = vadd.s32 %v25, 72
  %v686 = vadd.s32 %v25, 80
  %v687 = vadd.s32 %v25, 88
  %v688 = vadd.s32 %v25, 96
  %v689 = vadd.s32 %v25, 104
  %v690 = vadd.s32 %v25, 112
  %v691 = vadd.s32 %v25, 120
  %v692 = vadd.s32 %v25, 128
  %v693 = vadd.s32 %v25, 136
  %v694 = vadd.s32 %v25, 144
  %v695 = vadd.s32 %v25, 152
  %v696 = vadd.s32 %v25, 160
  %v697 = vadd.s32 %v25, 168
  %v698 = vadd.s32 %v25, 176
  %v699 = vadd.s32 %v25, 184
  %v700 = vadd.s32 %v25, 192
  %v701 = vadd.s32 %v25, 200
  %v702 = vadd.s32 %v25, 208
  %v703 = vadd.s32 %v25, 216
  %v704 = vadd.s32 %v25, 224
  %v705 = vadd.s32 %v25, 232
  %v706 = vadd.s32 %v25, 240
  %v707 = vadd.s32 %v25, 248
  %vm708 = vcmp.lt.s32.totalorder %v684, 0
  %v709 = vsub.s32 0, %v684
  %v710 = vsel %vm708, %v709, %v684
  %v711 = vshrl.u32 %v710, 2
  %v712 = vand.u32 %v710, 3
  %v713 = vsub.s32 0, %v712
  %v714 = vsel %vm708, %v713, %v712
  %vm715 = vcmp.lt.s32.totalorder %v685, 0
  %v716 = vsub.s32 0, %v685
  %v717 = vsel %vm715, %v716, %v685
  %v718 = vshrl.u32 %v717, 2
  %v719 = vand.u32 %v717, 3
  %v720 = vsub.s32 0, %v719
  %v721 = vsel %vm715, %v720, %v719
  %vm722 = vcmp.lt.s32.totalorder %v686, 0
  %v723 = vsub.s32 0, %v686
  %v724 = vsel %vm722, %v723, %v686
  %v725 = vshrl.u32 %v724, 2
  %v726 = vand.u32 %v724, 3
  %v727 = vsub.s32 0, %v726
  %v728 = vsel %vm722, %v727, %v726
  %vm729 = vcmp.lt.s32.totalorder %v687, 0
  %v730 = vsub.s32 0, %v687
  %v731 = vsel %vm729, %v730, %v687
  %v732 = vshrl.u32 %v731, 2
  %v733 = vand.u32 %v731, 3
  %v734 = vsub.s32 0, %v733
  %v735 = vsel %vm729, %v734, %v733
  %vm736 = vcmp.lt.s32.totalorder %v688, 0
  %v737 = vsub.s32 0, %v688
  %v738 = vsel %vm736, %v737, %v688
  %v739 = vshrl.u32 %v738, 2
  %v740 = vand.u32 %v738, 3
  %v741 = vsub.s32 0, %v740
  %v742 = vsel %vm736, %v741, %v740
  %vm743 = vcmp.lt.s32.totalorder %v689, 0
  %v744 = vsub.s32 0, %v689
  %v745 = vsel %vm743, %v744, %v689
  %v746 = vshrl.u32 %v745, 2
  %v747 = vand.u32 %v745, 3
  %v748 = vsub.s32 0, %v747
  %v749 = vsel %vm743, %v748, %v747
  %vm750 = vcmp.lt.s32.totalorder %v690, 0
  %v751 = vsub.s32 0, %v690
  %v752 = vsel %vm750, %v751, %v690
  %v753 = vshrl.u32 %v752, 2
  %v754 = vand.u32 %v752, 3
  %v755 = vsub.s32 0, %v754
  %v756 = vsel %vm750, %v755, %v754
  %vm757 = vcmp.lt.s32.totalorder %v691, 0
  %v758 = vsub.s32 0, %v691
  %v759 = vsel %vm757, %v758, %v691
  %v760 = vshrl.u32 %v759, 2
  %v761 = vand.u32 %v759, 3
  %v762 = vsub.s32 0, %v761
  %v763 = vsel %vm757, %v762, %v761
  %vm764 = vcmp.lt.s32.totalorder %v692, 0
  %v765 = vsub.s32 0, %v692
  %v766 = vsel %vm764, %v765, %v692
  %v767 = vshrl.u32 %v766, 2
  %v768 = vand.u32 %v766, 3
  %v769 = vsub.s32 0, %v768
  %v770 = vsel %vm764, %v769, %v768
  %vm771 = vcmp.lt.s32.totalorder %v693, 0
  %v772 = vsub.s32 0, %v693
  %v773 = vsel %vm771, %v772, %v693
  %v774 = vshrl.u32 %v773, 2
  %v775 = vand.u32 %v773, 3
  %v776 = vsub.s32 0, %v775
  %v777 = vsel %vm771, %v776, %v775
  %vm778 = vcmp.lt.s32.totalorder %v694, 0
  %v779 = vsub.s32 0, %v694
  %v780 = vsel %vm778, %v779, %v694
  %v781 = vshrl.u32 %v780, 2
  %v782 = vand.u32 %v780, 3
  %v783 = vsub.s32 0, %v782
  %v784 = vsel %vm778, %v783, %v782
  %vm785 = vcmp.lt.s32.totalorder %v695, 0
  %v786 = vsub.s32 0, %v695
  %v787 = vsel %vm785, %v786, %v695
  %v788 = vshrl.u32 %v787, 2
  %v789 = vand.u32 %v787, 3
  %v790 = vsub.s32 0, %v789
  %v791 = vsel %vm785, %v790, %v789
  %vm792 = vcmp.lt.s32.totalorder %v696, 0
  %v793 = vsub.s32 0, %v696
  %v794 = vsel %vm792, %v793, %v696
  %v795 = vshrl.u32 %v794, 2
  %v796 = vand.u32 %v794, 3
  %v797 = vsub.s32 0, %v796
  %v798 = vsel %vm792, %v797, %v796
  %vm799 = vcmp.lt.s32.totalorder %v697, 0
  %v800 = vsub.s32 0, %v697
  %v801 = vsel %vm799, %v800, %v697
  %v802 = vshrl.u32 %v801, 2
  %v803 = vand.u32 %v801, 3
  %v804 = vsub.s32 0, %v803
  %v805 = vsel %vm799, %v804, %v803
  %vm806 = vcmp.lt.s32.totalorder %v698, 0
  %v807 = vsub.s32 0, %v698
  %v808 = vsel %vm806, %v807, %v698
  %v809 = vshrl.u32 %v808, 2
  %v810 = vand.u32 %v808, 3
  %v811 = vsub.s32 0, %v810
  %v812 = vsel %vm806, %v811, %v810
  %vm813 = vcmp.lt.s32.totalorder %v699, 0
  %v814 = vsub.s32 0, %v699
  %v815 = vsel %vm813, %v814, %v699
  %v816 = vshrl.u32 %v815, 2
  %v817 = vand.u32 %v815, 3
  %v818 = vsub.s32 0, %v817
  %v819 = vsel %vm813, %v818, %v817
  %vm820 = vcmp.lt.s32.totalorder %v700, 0
  %v821 = vsub.s32 0, %v700
  %v822 = vsel %vm820, %v821, %v700
  %v823 = vshrl.u32 %v822, 2
  %v824 = vand.u32 %v822, 3
  %v825 = vsub.s32 0, %v824
  %v826 = vsel %vm820, %v825, %v824
  %vm827 = vcmp.lt.s32.totalorder %v701, 0
  %v828 = vsub.s32 0, %v701
  %v829 = vsel %vm827, %v828, %v701
  %v830 = vshrl.u32 %v829, 2
  %v831 = vand.u32 %v829, 3
  %v832 = vsub.s32 0, %v831
  %v833 = vsel %vm827, %v832, %v831
  %vm834 = vcmp.lt.s32.totalorder %v702, 0
  %v835 = vsub.s32 0, %v702
  %v836 = vsel %vm834, %v835, %v702
  %v837 = vshrl.u32 %v836, 2
  %v838 = vand.u32 %v836, 3
  %v839 = vsub.s32 0, %v838
  %v840 = vsel %vm834, %v839, %v838
  %vm841 = vcmp.lt.s32.totalorder %v703, 0
  %v842 = vsub.s32 0, %v703
  %v843 = vsel %vm841, %v842, %v703
  %v844 = vshrl.u32 %v843, 2
  %v845 = vand.u32 %v843, 3
  %v846 = vsub.s32 0, %v845
  %v847 = vsel %vm841, %v846, %v845
  %vm848 = vcmp.lt.s32.totalorder %v704, 0
  %v849 = vsub.s32 0, %v704
  %v850 = vsel %vm848, %v849, %v704
  %v851 = vshrl.u32 %v850, 2
  %v852 = vand.u32 %v850, 3
  %v853 = vsub.s32 0, %v852
  %v854 = vsel %vm848, %v853, %v852
  %vm855 = vcmp.lt.s32.totalorder %v705, 0
  %v856 = vsub.s32 0, %v705
  %v857 = vsel %vm855, %v856, %v705
  %v858 = vshrl.u32 %v857, 2
  %v859 = vand.u32 %v857, 3
  %v860 = vsub.s32 0, %v859
  %v861 = vsel %vm855, %v860, %v859
  %vm862 = vcmp.lt.s32.totalorder %v706, 0
  %v863 = vsub.s32 0, %v706
  %v864 = vsel %vm862, %v863, %v706
  %v865 = vshrl.u32 %v864, 2
  %v866 = vand.u32 %v864, 3
  %v867 = vsub.s32 0, %v866
  %v868 = vsel %vm862, %v867, %v866
  %vm869 = vcmp.lt.s32.totalorder %v707, 0
  %v870 = vsub.s32 0, %v707
  %v871 = vsel %vm869, %v870, %v707
  %v872 = vshrl.u32 %v871, 2
  %v873 = vand.u32 %v871, 3
  %v874 = vsub.s32 0, %v873
  %v875 = vsel %vm869, %v874, %v873
  %vm876 = vcmp.ne.s32.totalorder %v714, 0
  %vm877 = vcmp.ne.s32.totalorder %v721, 0
  %vm878 = vcmp.ne.s32.totalorder %v728, 0
  %vm879 = vcmp.ne.s32.totalorder %v735, 0
  %vm880 = vcmp.ne.s32.totalorder %v742, 0
  %vm881 = vcmp.ne.s32.totalorder %v749, 0
  %vm882 = vcmp.ne.s32.totalorder %v756, 0
  %vm883 = vcmp.ne.s32.totalorder %v763, 0
  %vm884 = vcmp.ne.s32.totalorder %v770, 0
  %vm885 = vcmp.ne.s32.totalorder %v777, 0
  %vm886 = vcmp.ne.s32.totalorder %v784, 0
  %vm887 = vcmp.ne.s32.totalorder %v791, 0
  %vm888 = vcmp.ne.s32.totalorder %v798, 0
  %vm889 = vcmp.ne.s32.totalorder %v805, 0
  %vm890 = vcmp.ne.s32.totalorder %v812, 0
  %vm891 = vcmp.ne.s32.totalorder %v819, 0
  %vm892 = vcmp.ne.s32.totalorder %v826, 0
  %vm893 = vcmp.ne.s32.totalorder %v833, 0
  %vm894 = vcmp.ne.s32.totalorder %v840, 0
  %vm895 = vcmp.ne.s32.totalorder %v847, 0
  %vm896 = vcmp.ne.s32.totalorder %v854, 0
  %vm897 = vcmp.ne.s32.totalorder %v861, 0
  %vm898 = vcmp.ne.s32.totalorder %v868, 0
  %vm899 = vcmp.ne.s32.totalorder %v875, 0
  %vm900 = vcmp.lt.s32.totalorder %v714, 0
  %vm901 = vcmp.lt.s32.totalorder %v721, 0
  %vm902 = vcmp.lt.s32.totalorder %v728, 0
  %vm903 = vcmp.lt.s32.totalorder %v735, 0
  %vm904 = vcmp.lt.s32.totalorder %v742, 0
  %vm905 = vcmp.lt.s32.totalorder %v749, 0
  %vm906 = vcmp.lt.s32.totalorder %v756, 0
  %vm907 = vcmp.lt.s32.totalorder %v763, 0
  %vm908 = vcmp.lt.s32.totalorder %v770, 0
  %vm909 = vcmp.lt.s32.totalorder %v777, 0
  %vm910 = vcmp.lt.s32.totalorder %v784, 0
  %vm911 = vcmp.lt.s32.totalorder %v791, 0
  %vm912 = vcmp.lt.s32.totalorder %v798, 0
  %vm913 = vcmp.lt.s32.totalorder %v805, 0
  %vm914 = vcmp.lt.s32.totalorder %v812, 0
  %vm915 = vcmp.lt.s32.totalorder %v819, 0
  %vm916 = vcmp.lt.s32.totalorder %v826, 0
  %vm917 = vcmp.lt.s32.totalorder %v833, 0
  %vm918 = vcmp.lt.s32.totalorder %v840, 0
  %vm919 = vcmp.lt.s32.totalorder %v847, 0
  %vm920 = vcmp.lt.s32.totalorder %v854, 0
  %vm921 = vcmp.lt.s32.totalorder %v861, 0
  %vm922 = vcmp.lt.s32.totalorder %v868, 0
  %vm923 = vcmp.lt.s32.totalorder %v875, 0
  %vm924 = vmand %vm900, %vm876
  %vm925 = vmand %vm901, %vm877
  %vm926 = vmand %vm902, %vm878
  %vm927 = vmand %vm903, %vm879
  %vm928 = vmand %vm904, %vm880
  %vm929 = vmand %vm905, %vm881
  %vm930 = vmand %vm906, %vm882
  %vm931 = vmand %vm907, %vm883
  %vm932 = vmand %vm908, %vm884
  %vm933 = vmand %vm909, %vm885
  %vm934 = vmand %vm910, %vm886
  %vm935 = vmand %vm911, %vm887
  %vm936 = vmand %vm912, %vm888
  %vm937 = vmand %vm913, %vm889
  %vm938 = vmand %vm914, %vm890
  %vm939 = vmand %vm915, %vm891
  %vm940 = vmand %vm916, %vm892
  %vm941 = vmand %vm917, %vm893
  %vm942 = vmand %vm918, %vm894
  %vm943 = vmand %vm919, %vm895
  %vm944 = vmand %vm920, %vm896
  %vm945 = vmand %vm921, %vm897
  %vm946 = vmand %vm922, %vm898
  %vm947 = vmand %vm923, %vm899
  %v948 = vadd.s32 %v714, 4
  %v949 = vadd.s32 %v721, 4
  %v950 = vadd.s32 %v728, 4
  %v951 = vadd.s32 %v735, 4
  %v952 = vadd.s32 %v742, 4
  %v953 = vadd.s32 %v749, 4
  %v954 = vadd.s32 %v756, 4
  %v955 = vadd.s32 %v763, 4
  %v956 = vadd.s32 %v770, 4
  %v957 = vadd.s32 %v777, 4
  %v958 = vadd.s32 %v784, 4
  %v959 = vadd.s32 %v791, 4
  %v960 = vadd.s32 %v798, 4
  %v961 = vadd.s32 %v805, 4
  %v962 = vadd.s32 %v812, 4
  %v963 = vadd.s32 %v819, 4
  %v964 = vadd.s32 %v826, 4
  %v965 = vadd.s32 %v833, 4
  %v966 = vadd.s32 %v840, 4
  %v967 = vadd.s32 %v847, 4
  %v968 = vadd.s32 %v854, 4
  %v969 = vadd.s32 %v861, 4
  %v970 = vadd.s32 %v868, 4
  %v971 = vadd.s32 %v875, 4
  %v972 = vsel %vm924, %v948, %v714
  %v973 = vsel %vm925, %v949, %v721
  %v974 = vsel %vm926, %v950, %v728
  %v975 = vsel %vm927, %v951, %v735
  %v976 = vsel %vm928, %v952, %v742
  %v977 = vsel %vm929, %v953, %v749
  %v978 = vsel %vm930, %v954, %v756
  %v979 = vsel %vm931, %v955, %v763
  %v980 = vsel %vm932, %v956, %v770
  %v981 = vsel %vm933, %v957, %v777
  %v982 = vsel %vm934, %v958, %v784
  %v983 = vsel %vm935, %v959, %v791
  %v984 = vsel %vm936, %v960, %v798
  %v985 = vsel %vm937, %v961, %v805
  %v986 = vsel %vm938, %v962, %v812
  %v987 = vsel %vm939, %v963, %v819
  %v988 = vsel %vm940, %v964, %v826
  %v989 = vsel %vm941, %v965, %v833
  %v990 = vsel %vm942, %v966, %v840
  %v991 = vsel %vm943, %v967, %v847
  %v992 = vsel %vm944, %v968, %v854
  %v993 = vsel %vm945, %v969, %v861
  %v994 = vsel %vm946, %v970, %v868
  %v995 = vsel %vm947, %v971, %v875
  %vm996 = vcmp.eq.s32.totalorder %v972, %v228
  %vm997 = vcmp.eq.s32.totalorder %v973, %v228
  %vm998 = vcmp.eq.s32.totalorder %v974, %v228
  %vm999 = vcmp.eq.s32.totalorder %v975, %v228
  %vm1000 = vcmp.eq.s32.totalorder %v976, %v228
  %vm1001 = vcmp.eq.s32.totalorder %v977, %v228
  %vm1002 = vcmp.eq.s32.totalorder %v978, %v228
  %vm1003 = vcmp.eq.s32.totalorder %v979, %v228
  %vm1004 = vcmp.eq.s32.totalorder %v980, %v228
  %vm1005 = vcmp.eq.s32.totalorder %v981, %v228
  %vm1006 = vcmp.eq.s32.totalorder %v982, %v228
  %vm1007 = vcmp.eq.s32.totalorder %v983, %v228
  %vm1008 = vcmp.eq.s32.totalorder %v984, %v228
  %vm1009 = vcmp.eq.s32.totalorder %v985, %v228
  %vm1010 = vcmp.eq.s32.totalorder %v986, %v228
  %vm1011 = vcmp.eq.s32.totalorder %v987, %v228
  %vm1012 = vcmp.eq.s32.totalorder %v988, %v228
  %vm1013 = vcmp.eq.s32.totalorder %v989, %v228
  %vm1014 = vcmp.eq.s32.totalorder %v990, %v228
  %vm1015 = vcmp.eq.s32.totalorder %v991, %v228
  %vm1016 = vcmp.eq.s32.totalorder %v992, %v228
  %vm1017 = vcmp.eq.s32.totalorder %v993, %v228
  %vm1018 = vcmp.eq.s32.totalorder %v994, %v228
  %vm1019 = vcmp.eq.s32.totalorder %v995, %v228
  %v1020 = vsel %vm996, 1, 0
  %v1021 = vsel %vm997, 1, 0
  %v1022 = vsel %vm998, 1, 0
  %v1023 = vsel %vm999, 1, 0
  %v1024 = vsel %vm1000, 1, 0
  %v1025 = vsel %vm1001, 1, 0
  %v1026 = vsel %vm1002, 1, 0
  %v1027 = vsel %vm1003, 1, 0
  %v1028 = vsel %vm1004, 1, 0
  %v1029 = vsel %vm1005, 1, 0
  %v1030 = vsel %vm1006, 1, 0
  %v1031 = vsel %vm1007, 1, 0
  %v1032 = vsel %vm1008, 1, 0
  %v1033 = vsel %vm1009, 1, 0
  %v1034 = vsel %vm1010, 1, 0
  %v1035 = vsel %vm1011, 1, 0
  %v1036 = vsel %vm1012, 1, 0
  %v1037 = vsel %vm1013, 1, 0
  %v1038 = vsel %vm1014, 1, 0
  %v1039 = vsel %vm1015, 1, 0
  %v1040 = vsel %vm1016, 1, 0
  %v1041 = vsel %vm1017, 1, 0
  %v1042 = vsel %vm1018, 1, 0
  %v1043 = vsel %vm1019, 1, 0
  %v1044 = vcvt.s32.f32 %v1020
  %v1045 = vcvt.s32.f32 %v1021
  %v1046 = vcvt.s32.f32 %v1022
  %v1047 = vcvt.s32.f32 %v1023
  %v1048 = vcvt.s32.f32 %v1024
  %v1049 = vcvt.s32.f32 %v1025
  %v1050 = vcvt.s32.f32 %v1026
  %v1051 = vcvt.s32.f32 %v1027
  %v1052 = vcvt.s32.f32 %v1028
  %v1053 = vcvt.s32.f32 %v1029
  %v1054 = vcvt.s32.f32 %v1030
  %v1055 = vcvt.s32.f32 %v1031
  %v1056 = vcvt.s32.f32 %v1032
  %v1057 = vcvt.s32.f32 %v1033
  %v1058 = vcvt.s32.f32 %v1034
  %v1059 = vcvt.s32.f32 %v1035
  %v1060 = vcvt.s32.f32 %v1036
  %v1061 = vcvt.s32.f32 %v1037
  %v1062 = vcvt.s32.f32 %v1038
  %v1063 = vcvt.s32.f32 %v1039
  %v1064 = vcvt.s32.f32 %v1040
  %v1065 = vcvt.s32.f32 %v1041
  %v1066 = vcvt.s32.f32 %v1042
  %v1067 = vcvt.s32.f32 %v1043
  %v1068 = vadd.s32 %v228, 128
  %vm1069 = vcmp.lt.s32.totalorder %v1068, 0
  %v1070 = vsub.s32 0, %v1068
  %v1071 = vsel %vm1069, %v1070, %v1068
  %v1072 = vshrl.u32 %v1071, 2
  %v1073 = vand.u32 %v1071, 3
  %v1074 = vsub.s32 0, %v1073
  %v1075 = vsel %vm1069, %v1074, %v1073
  %vm1076 = vcmp.ne.s32.totalorder %v1075, 0
  %vm1077 = vcmp.lt.s32.totalorder %v1075, 0
  %vm1078 = vmand %vm1077, %vm1076
  %v1079 = vadd.s32 %v1075, 4
  %v1080 = vsel %vm1078, %v1079, %v1075
  %vm1081 = vcmp.eq.s32.totalorder %v1080, %v25
  %v1082 = vsel %vm1081, 1, 0
  %v1083 = vcvt.s32.f32 %v1082
  %v1084 = vadd.f32 %v644, %v647
  %v1085 = vadd.f32 %v1084, %v650
  %v1086 = vadd.f32 %v1085, %v653
  %v1087 = vrot.slane %v1086, 4
  %v1088 = vadd.f32 %v1086, %v1087
  %v1089 = vrot.slane %v1088, 2
  %v1090 = vadd.f32 %v1088, %v1089
  %v1091 = vrot.slane %v1090, 1
  %v1092 = vadd.f32 %v1090, %v1091
  %v1093 = vadd.f32 %v673, %v676
  %v1094 = vadd.f32 %v1093, %v679
  %v1095 = vadd.f32 %v1094, %v682
  %v1096 = vrot.slane %v1095, 4
  %v1097 = vadd.f32 %v1095, %v1096
  %v1098 = vrot.slane %v1097, 2
  %v1099 = vadd.f32 %v1097, %v1098
  %v1100 = vrot.slane %v1099, 1
  %v1101 = vadd.f32 %v1099, %v1100
  %v1102 = vmul.f32 %v644, %v644
  %v1103 = vmul.f32 %v673, %v673
  %v1104 = vmul.f32 %v647, %v647
  %v1105 = vmul.f32 %v676, %v676
  %v1106 = vmul.f32 %v650, %v650
  %v1107 = vmul.f32 %v679, %v679
  %v1108 = vmul.f32 %v653, %v653
  %v1109 = vmul.f32 %v682, %v682
  %v1110 = vadd.f32 %v1102, %v1104
  %v1111 = vadd.f32 %v1110, %v1106
  %v1112 = vadd.f32 %v1111, %v1108
  %v1113 = vrot.slane %v1112, 4
  %v1114 = vadd.f32 %v1112, %v1113
  %v1115 = vrot.slane %v1114, 2
  %v1116 = vadd.f32 %v1114, %v1115
  %v1117 = vrot.slane %v1116, 1
  %v1118 = vadd.f32 %v1116, %v1117
  %v1119 = vadd.f32 %v1103, %v1105
  %v1120 = vadd.f32 %v1119, %v1107
  %v1121 = vadd.f32 %v1120, %v1109
  %v1122 = vrot.slane %v1121, 4
  %v1123 = vadd.f32 %v1121, %v1122
  %v1124 = vrot.slane %v1123, 2
  %v1125 = vadd.f32 %v1123, %v1124
  %v1126 = vrot.slane %v1125, 1
  %v1127 = vadd.f32 %v1125, %v1126
  %v1128 = vsel %vm301, %v1092, %v1118
  %v1129 = vsel %vm301, %v1101, %v1127
  %1130 = vmatpush.msra.mxu0 %v1051
  %1131 = vmatpush.msra.mxu0 %v1050
  %1132 = vmatpush.msra.mxu0 %v1049
  %1133 = vmatpush.msra.mxu0 %v1048
  %1134 = vmatpush.msra.mxu0 %v1047
  %1135 = vmatpush.msra.mxu0 %v1046
  %1136 = vmatpush.msra.mxu0 %v1045
  %1137 = vmatpush.msra.mxu0 %v1044
  %1138 = vmatpush.msra.mxu0 %v252
  %1139 = vmatpush.msra.mxu0 %v251
  %1140 = vmatpush.msra.mxu0 %v250
  %1141 = vmatpush.msra.mxu0 %v249
  %1142 = vmatpush.msra.mxu0 %v248
  %1143 = vmatpush.msra.mxu0 %v247
  %1144 = vmatpush.msra.mxu0 %v246
  %1145 = vmatpush.msra.mxu0 %v245
  %1146 = vmatmul.f32.gmra.mxu0 %v1128
  %v1147 = vpop.f32.mrf.mxu0
  %v1148 = vadd.f32 0.0, %v1147
  %1149 = vdwg.mxu0
  %1150 = vmatpush.msra.mxu0 %v1067
  %1151 = vmatpush.msra.mxu0 %v1066
  %1152 = vmatpush.msra.mxu0 %v1065
  %1153 = vmatpush.msra.mxu0 %v1064
  %1154 = vmatpush.msra.mxu0 %v1063
  %1155 = vmatpush.msra.mxu0 %v1062
  %1156 = vmatpush.msra.mxu0 %v1061
  %1157 = vmatpush.msra.mxu0 %v1060
  %1158 = vmatpush.msra.mxu0 %v1059
  %1159 = vmatpush.msra.mxu0 %v1058
  %1160 = vmatpush.msra.mxu0 %v1057
  %1161 = vmatpush.msra.mxu0 %v1056
  %1162 = vmatpush.msra.mxu0 %v1055
  %1163 = vmatpush.msra.mxu0 %v1054
  %1164 = vmatpush.msra.mxu0 %v1053
  %1165 = vmatpush.msra.mxu0 %v1052
  %1166 = vmatmul.f32.gmra.mxu0 %v1129
  %v1167 = vpop.f32.mrf.mxu0
  %v1168 = vadd.f32 %v1148, %v1167
  %1169 = vdwg.mxu0
  %v1170 = vmul.f32 %v1168, 0.00048828125
  %v1171 = vmul.f32 %v1170, %v1170
  %v1173 = vrot.slane %v1171, 7
  %v1175 = vsub.f32 %v1170, %v1173
  %v1176 = vmax.f32 %v1175, 0.0
  %v1177 = vadd.f32 %v1176, 1e-05
  %v1178 = vrsqrt.pop %v1177
  %v1179 = vmul.f32 %v1178, %v1177
  %v1180 = vmul.f32 %v1179, %v1178
  %v1181 = vmul.f32 0.5, %v1180
  %v1182 = vsub.f32 1.5, %v1181
  %v1183 = vmul.f32 %v1178, %v1182
  %vm1184 = vweird.f32 %v1177
  %vm1185 = vweird.f32 %v1178
  %vm1186 = vmor %vm1184, %vm1185
  %v1187 = vsel %vm1186, %v1178, %v1183
  %v1189 = vrot.slane %v1187, 7
  %v1191 = vmul.f32 %v23, %v1189
  %v1193 = vrot.slane %v1191, 2
  %v1195 = vmul.f32 %v1170, %v1193
  %v1197 = vrot.slane %v1195, 5
  %v1199 = vsub.f32 %v23, %v1197
  %v1200 = vperm.slane %v1191, 2
  %v1201 = vperm.slane %v1199, 3
  %v1202 = vsel %vm301, %v1200, %v1201
  %v1204 = vsel %vm356, %v1202, 0
  %v1207 = vsel %vm360, %v1083, 0
  %1209 = vmatpush.msra.mxu0 0.0
  %1210 = vmatpush.msra.mxu0 0.0
  %1211 = vmatpush.msra.mxu0 0.0
  %1212 = vmatpush.msra.mxu0 0.0
  %1213 = vmatpush.msra.mxu0 0.0
  %1214 = vmatpush.msra.mxu0 0.0
  %1215 = vmatpush.msra.mxu0 0.0
  %1216 = vmatpush.msra.mxu0 0.0
  %1217 = vmatpush.msra.mxu0 0.0
  %1218 = vmatpush.msra.mxu0 0.0
  %1219 = vmatpush.msra.mxu0 0.0
  %1220 = vmatpush.msra.mxu0 0.0
  %1221 = vmatpush.msra.mxu0 0.0
  %1222 = vmatpush.msra.mxu0 0.0
  %1223 = vmatpush.msra.mxu0 0.0
  %1224 = vmatpush.msra.mxu0 %v362
  %1225 = vmatmul.f32.gmra.mxu0 %v1204
  %v1226 = vpop.f32.mrf.mxu0
  %v1227 = vadd.f32 0.0, %v1226
  %1228 = vdwg.mxu0
  %1229 = vmatpush.msra.mxu0 0.0
  %1230 = vmatpush.msra.mxu0 0.0
  %1231 = vmatpush.msra.mxu0 0.0
  %1232 = vmatpush.msra.mxu0 0.0
  %1233 = vmatpush.msra.mxu0 0.0
  %1234 = vmatpush.msra.mxu0 0.0
  %1235 = vmatpush.msra.mxu0 0.0
  %1236 = vmatpush.msra.mxu0 0.0
  %1237 = vmatpush.msra.mxu0 0.0
  %1238 = vmatpush.msra.mxu0 0.0
  %1239 = vmatpush.msra.mxu0 0.0
  %1240 = vmatpush.msra.mxu0 0.0
  %1241 = vmatpush.msra.mxu0 0.0
  %1242 = vmatpush.msra.mxu0 0.0
  %1243 = vmatpush.msra.mxu0 0.0
  %1244 = vmatpush.msra.mxu0 %v1207
  %1245 = vmatmul.f32.gmra.mxu0 %v1204
  %v1246 = vpop.f32.mrf.mxu0
  %v1247 = vadd.f32 0.0, %v1246
  %1248 = vdwg.mxu0
  %v1249 = vperm.slane %v1227, 0
  %v1250 = vperm.slane %v1247, 0
  %v1251 = vmul.f32 %v644, %v1249
  %v1252 = vmul.f32 %v673, %v1250
  %v1253 = vmul.f32 %v647, %v1249
  %v1254 = vmul.f32 %v676, %v1250
  %v1255 = vmul.f32 %v650, %v1249
  %v1256 = vmul.f32 %v679, %v1250
  %v1257 = vmul.f32 %v653, %v1249
  %v1258 = vmul.f32 %v682, %v1250
  %v1259 = vperm.slane %v1227, 1
  %v1260 = vperm.slane %v1247, 1
  %v1261 = vadd.f32 %v1251, %v1259
  %v1262 = vadd.f32 %v1252, %v1260
  %v1263 = vadd.f32 %v1253, %v1259
  %v1264 = vadd.f32 %v1254, %v1260
  %v1265 = vadd.f32 %v1255, %v1259
  %v1266 = vadd.f32 %v1256, %v1260
  %v1267 = vadd.f32 %v1257, %v1259
  %v1268 = vadd.f32 %v1258, %v1260
  %v1269 = vmax.f32 %v1261, 0.0
  %v1270 = vmax.f32 %v1262, 0.0
  %v1271 = vmax.f32 %v1263, 0.0
  %v1272 = vmax.f32 %v1264, 0.0
  %v1273 = vmax.f32 %v1265, 0.0
  %v1274 = vmax.f32 %v1266, 0.0
  %v1275 = vmax.f32 %v1267, 0.0
  %v1276 = vmax.f32 %v1268, 0.0
  %v1277 = vld [vmem:[%s4] sm:$0xff]
  %v1278 = vld [vmem:[%s4 + $0x8] sm:$0xff]
  %v1279 = vld [vmem:[%s4 + $0x10] sm:$0xff]
  %v1280 = vld [vmem:[%s4 + $0x18] sm:$0xff]
  %v1281 = vld [vmem:[%s4 + $0x20] sm:$0xff]
  %v1282 = vld [vmem:[%s4 + $0x28] sm:$0xff]
  %v1283 = vld [vmem:[%s4 + $0x30] sm:$0xff]
  %v1284 = vld [vmem:[%s4 + $0x38] sm:$0xff]
  %v1285 = vld [vmem:[%s4 + $0x40] sm:$0xff]
  %v1286 = vld [vmem:[%s4 + $0x48] sm:$0xff]
  %v1287 = vld [vmem:[%s4 + $0x50] sm:$0xff]
  %v1288 = vld [vmem:[%s4 + $0x58] sm:$0xff]
  %v1289 = vld [vmem:[%s4 + $0x60] sm:$0xff]
  %v1290 = vld [vmem:[%s4 + $0x68] sm:$0xff]
  %v1291 = vld [vmem:[%s4 + $0x70] sm:$0xff]
  %v1292 = vld [vmem:[%s4 + $0x78] sm:$0xff]
  %v1293 = vld [vmem:[%s4 + $0x80] sm:$0xff]
  %v1294 = vld [vmem:[%s4 + $0x88] sm:$0xff]
  %v1295 = vld [vmem:[%s4 + $0x90] sm:$0xff]
  %v1296 = vld [vmem:[%s4 + $0x98] sm:$0xff]
  %v1297 = vld [vmem:[%s4 + $0xa0] sm:$0xff]
  %v1298 = vld [vmem:[%s4 + $0xa8] sm:$0xff]
  %v1299 = vld [vmem:[%s4 + $0xb0] sm:$0xff]
  %v1300 = vld [vmem:[%s4 + $0xb8] sm:$0xff]
  %v1301 = vld [vmem:[%s4 + $0xc0] sm:$0xff]
  %v1302 = vld [vmem:[%s4 + $0xc8] sm:$0xff]
  %v1303 = vld [vmem:[%s4 + $0xd0] sm:$0xff]
  %v1304 = vld [vmem:[%s4 + $0xd8] sm:$0xff]
  %v1305 = vld [vmem:[%s4 + $0xe0] sm:$0xff]
  %v1306 = vld [vmem:[%s4 + $0xe8] sm:$0xff]
  %v1307 = vld [vmem:[%s4 + $0xf0] sm:$0xff]
  %v1308 = vld [vmem:[%s4 + $0xf8] sm:$0xff]
  %v1309 = vld [vmem:[%s4 + $0x100] sm:$0xff]
  %v1310 = vld [vmem:[%s4 + $0x108] sm:$0xff]
  %v1311 = vld [vmem:[%s4 + $0x110] sm:$0xff]
  %v1312 = vld [vmem:[%s4 + $0x118] sm:$0xff]
  %v1313 = vld [vmem:[%s4 + $0x120] sm:$0xff]
  %v1314 = vld [vmem:[%s4 + $0x128] sm:$0xff]
  %v1315 = vld [vmem:[%s4 + $0x130] sm:$0xff]
  %v1316 = vld [vmem:[%s4 + $0x138] sm:$0xff]
  %v1317 = vld [vmem:[%s4 + $0x140] sm:$0xff]
  %v1318 = vld [vmem:[%s4 + $0x148] sm:$0xff]
  %v1319 = vld [vmem:[%s4 + $0x150] sm:$0xff]
  %v1320 = vld [vmem:[%s4 + $0x158] sm:$0xff]
  %v1321 = vld [vmem:[%s4 + $0x160] sm:$0xff]
  %v1322 = vld [vmem:[%s4 + $0x168] sm:$0xff]
  %v1323 = vld [vmem:[%s4 + $0x170] sm:$0xff]
  %v1324 = vld [vmem:[%s4 + $0x178] sm:$0xff]
  %v1325 = vld [vmem:[%s4 + $0x180] sm:$0xff]
  %v1326 = vld [vmem:[%s4 + $0x188] sm:$0xff]
  %v1327 = vld [vmem:[%s4 + $0x190] sm:$0xff]
  %v1328 = vld [vmem:[%s4 + $0x198] sm:$0xff]
  %v1329 = vld [vmem:[%s4 + $0x1a0] sm:$0xff]
  %v1330 = vld [vmem:[%s4 + $0x1a8] sm:$0xff]
  %v1331 = vld [vmem:[%s4 + $0x1b0] sm:$0xff]
  %v1332 = vld [vmem:[%s4 + $0x1b8] sm:$0xff]
  %v1333 = vld [vmem:[%s4 + $0x1c0] sm:$0xff]
  %v1334 = vld [vmem:[%s4 + $0x1c8] sm:$0xff]
  %v1335 = vld [vmem:[%s4 + $0x1d0] sm:$0xff]
  %v1336 = vld [vmem:[%s4 + $0x1d8] sm:$0xff]
  %v1337 = vld [vmem:[%s4 + $0x1e0] sm:$0xff]
  %v1338 = vld [vmem:[%s4 + $0x1e8] sm:$0xff]
  %v1339 = vld [vmem:[%s4 + $0x1f0] sm:$0xff]
  %v1340 = vld [vmem:[%s4 + $0x1f8] sm:$0xff]
  %v1341 = vld [vmem:[%s4 + $0x200] sm:$0xff]
  %v1342 = vld [vmem:[%s4 + $0x208] sm:$0xff]
  %v1343 = vld [vmem:[%s4 + $0x210] sm:$0xff]
  %v1344 = vld [vmem:[%s4 + $0x218] sm:$0xff]
  %v1345 = vld [vmem:[%s4 + $0x220] sm:$0xff]
  %v1346 = vld [vmem:[%s4 + $0x228] sm:$0xff]
  %v1347 = vld [vmem:[%s4 + $0x230] sm:$0xff]
  %v1348 = vld [vmem:[%s4 + $0x238] sm:$0xff]
  %v1349 = vld [vmem:[%s4 + $0x240] sm:$0xff]
  %v1350 = vld [vmem:[%s4 + $0x248] sm:$0xff]
  %v1351 = vld [vmem:[%s4 + $0x250] sm:$0xff]
  %v1352 = vld [vmem:[%s4 + $0x258] sm:$0xff]
  %v1353 = vld [vmem:[%s4 + $0x260] sm:$0xff]
  %v1354 = vld [vmem:[%s4 + $0x268] sm:$0xff]
  %v1355 = vld [vmem:[%s4 + $0x270] sm:$0xff]
  %v1356 = vld [vmem:[%s4 + $0x278] sm:$0xff]
  %v1357 = vld [vmem:[%s4 + $0x280] sm:$0xff]
  %v1358 = vld [vmem:[%s4 + $0x288] sm:$0xff]
  %v1359 = vld [vmem:[%s4 + $0x290] sm:$0xff]
  %v1360 = vld [vmem:[%s4 + $0x298] sm:$0xff]
  %v1361 = vld [vmem:[%s4 + $0x2a0] sm:$0xff]
  %v1362 = vld [vmem:[%s4 + $0x2a8] sm:$0xff]
  %v1363 = vld [vmem:[%s4 + $0x2b0] sm:$0xff]
  %v1364 = vld [vmem:[%s4 + $0x2b8] sm:$0xff]
  %v1365 = vld [vmem:[%s4 + $0x2c0] sm:$0xff]
  %v1366 = vld [vmem:[%s4 + $0x2c8] sm:$0xff]
  %v1367 = vld [vmem:[%s4 + $0x2d0] sm:$0xff]
  %v1368 = vld [vmem:[%s4 + $0x2d8] sm:$0xff]
  %v1369 = vld [vmem:[%s4 + $0x2e0] sm:$0xff]
  %v1370 = vld [vmem:[%s4 + $0x2e8] sm:$0xff]
  %v1371 = vld [vmem:[%s4 + $0x2f0] sm:$0xff]
  %v1372 = vld [vmem:[%s4 + $0x2f8] sm:$0xff]
  %v1373 = vld [vmem:[%s4 + $0x300] sm:$0xff]
  %v1374 = vld [vmem:[%s4 + $0x308] sm:$0xff]
  %v1375 = vld [vmem:[%s4 + $0x310] sm:$0xff]
  %v1376 = vld [vmem:[%s4 + $0x318] sm:$0xff]
  %v1377 = vld [vmem:[%s4 + $0x320] sm:$0xff]
  %v1378 = vld [vmem:[%s4 + $0x328] sm:$0xff]
  %v1379 = vld [vmem:[%s4 + $0x330] sm:$0xff]
  %v1380 = vld [vmem:[%s4 + $0x338] sm:$0xff]
  %v1381 = vld [vmem:[%s4 + $0x340] sm:$0xff]
  %v1382 = vld [vmem:[%s4 + $0x348] sm:$0xff]
  %v1383 = vld [vmem:[%s4 + $0x350] sm:$0xff]
  %v1384 = vld [vmem:[%s4 + $0x358] sm:$0xff]
  %v1385 = vld [vmem:[%s4 + $0x360] sm:$0xff]
  %v1386 = vld [vmem:[%s4 + $0x368] sm:$0xff]
  %v1387 = vld [vmem:[%s4 + $0x370] sm:$0xff]
  %v1388 = vld [vmem:[%s4 + $0x378] sm:$0xff]
  %v1389 = vld [vmem:[%s4 + $0x380] sm:$0xff]
  %v1390 = vld [vmem:[%s4 + $0x388] sm:$0xff]
  %v1391 = vld [vmem:[%s4 + $0x390] sm:$0xff]
  %v1392 = vld [vmem:[%s4 + $0x398] sm:$0xff]
  %v1393 = vld [vmem:[%s4 + $0x3a0] sm:$0xff]
  %v1394 = vld [vmem:[%s4 + $0x3a8] sm:$0xff]
  %v1395 = vld [vmem:[%s4 + $0x3b0] sm:$0xff]
  %v1396 = vld [vmem:[%s4 + $0x3b8] sm:$0xff]
  %v1397 = vld [vmem:[%s4 + $0x3c0] sm:$0xff]
  %v1398 = vld [vmem:[%s4 + $0x3c8] sm:$0xff]
  %v1399 = vld [vmem:[%s4 + $0x3d0] sm:$0xff]
  %v1400 = vld [vmem:[%s4 + $0x3d8] sm:$0xff]
  %v1401 = vld [vmem:[%s4 + $0x3e0] sm:$0xff]
  %v1402 = vld [vmem:[%s4 + $0x3e8] sm:$0xff]
  %v1403 = vld [vmem:[%s4 + $0x3f0] sm:$0xff]
  %v1404 = vld [vmem:[%s4 + $0x3f8] sm:$0xff]
  %1405 = vmatpush.msra.mxu0 %v1337
  %1406 = vmatpush.msra.mxu0 %v1333
  %1407 = vmatpush.msra.mxu0 %v1329
  %1408 = vmatpush.msra.mxu0 %v1325
  %1409 = vmatpush.msra.mxu0 %v1321
  %1410 = vmatpush.msra.mxu0 %v1317
  %1411 = vmatpush.msra.mxu0 %v1313
  %1412 = vmatpush.msra.mxu0 %v1309
  %1413 = vmatpush.msra.mxu0 %v1305
  %1414 = vmatpush.msra.mxu0 %v1301
  %1415 = vmatpush.msra.mxu0 %v1297
  %1416 = vmatpush.msra.mxu0 %v1293
  %1417 = vmatpush.msra.mxu0 %v1289
  %1418 = vmatpush.msra.mxu0 %v1285
  %1419 = vmatpush.msra.mxu0 %v1281
  %1420 = vmatpush.msra.mxu0 %v1277
  %1421 = vmatmul.f32.gmra.mxu0 %v1269
  %v1422 = vpop.f32.mrf.mxu0
  %v1423 = vadd.f32 0.0, %v1422
  %1424 = vmatmul.f32.gmra.mxu0 %v1271
  %v1425 = vpop.f32.mrf.mxu0
  %v1426 = vadd.f32 0.0, %v1425
  %1427 = vmatmul.f32.gmra.mxu0 %v1273
  %v1428 = vpop.f32.mrf.mxu0
  %v1429 = vadd.f32 0.0, %v1428
  %1430 = vmatmul.f32.gmra.mxu0 %v1275
  %v1431 = vpop.f32.mrf.mxu0
  %v1432 = vadd.f32 0.0, %v1431
  %1433 = vdwg.mxu0
  %1434 = vmatpush.msra.mxu0 %v1401
  %1435 = vmatpush.msra.mxu0 %v1397
  %1436 = vmatpush.msra.mxu0 %v1393
  %1437 = vmatpush.msra.mxu0 %v1389
  %1438 = vmatpush.msra.mxu0 %v1385
  %1439 = vmatpush.msra.mxu0 %v1381
  %1440 = vmatpush.msra.mxu0 %v1377
  %1441 = vmatpush.msra.mxu0 %v1373
  %1442 = vmatpush.msra.mxu0 %v1369
  %1443 = vmatpush.msra.mxu0 %v1365
  %1444 = vmatpush.msra.mxu0 %v1361
  %1445 = vmatpush.msra.mxu0 %v1357
  %1446 = vmatpush.msra.mxu0 %v1353
  %1447 = vmatpush.msra.mxu0 %v1349
  %1448 = vmatpush.msra.mxu0 %v1345
  %1449 = vmatpush.msra.mxu0 %v1341
  %1450 = vmatmul.f32.gmra.mxu0 %v1270
  %v1451 = vpop.f32.mrf.mxu0
  %v1452 = vadd.f32 %v1423, %v1451
  %1453 = vmatmul.f32.gmra.mxu0 %v1272
  %v1454 = vpop.f32.mrf.mxu0
  %v1455 = vadd.f32 %v1426, %v1454
  %1456 = vmatmul.f32.gmra.mxu0 %v1274
  %v1457 = vpop.f32.mrf.mxu0
  %v1458 = vadd.f32 %v1429, %v1457
  %1459 = vmatmul.f32.gmra.mxu0 %v1276
  %v1460 = vpop.f32.mrf.mxu0
  %v1461 = vadd.f32 %v1432, %v1460
  %1462 = vdwg.mxu0
  %1463 = vmatpush.msra.mxu0 %v1338
  %1464 = vmatpush.msra.mxu0 %v1334
  %1465 = vmatpush.msra.mxu0 %v1330
  %1466 = vmatpush.msra.mxu0 %v1326
  %1467 = vmatpush.msra.mxu0 %v1322
  %1468 = vmatpush.msra.mxu0 %v1318
  %1469 = vmatpush.msra.mxu0 %v1314
  %1470 = vmatpush.msra.mxu0 %v1310
  %1471 = vmatpush.msra.mxu0 %v1306
  %1472 = vmatpush.msra.mxu0 %v1302
  %1473 = vmatpush.msra.mxu0 %v1298
  %1474 = vmatpush.msra.mxu0 %v1294
  %1475 = vmatpush.msra.mxu0 %v1290
  %1476 = vmatpush.msra.mxu0 %v1286
  %1477 = vmatpush.msra.mxu0 %v1282
  %1478 = vmatpush.msra.mxu0 %v1278
  %1479 = vmatmul.f32.gmra.mxu0 %v1269
  %v1480 = vpop.f32.mrf.mxu0
  %v1481 = vadd.f32 0.0, %v1480
  %1482 = vmatmul.f32.gmra.mxu0 %v1271
  %v1483 = vpop.f32.mrf.mxu0
  %v1484 = vadd.f32 0.0, %v1483
  %1485 = vmatmul.f32.gmra.mxu0 %v1273
  %v1486 = vpop.f32.mrf.mxu0
  %v1487 = vadd.f32 0.0, %v1486
  %1488 = vmatmul.f32.gmra.mxu0 %v1275
  %v1489 = vpop.f32.mrf.mxu0
  %v1490 = vadd.f32 0.0, %v1489
  %1491 = vdwg.mxu0
  %1492 = vmatpush.msra.mxu0 %v1402
  %1493 = vmatpush.msra.mxu0 %v1398
  %1494 = vmatpush.msra.mxu0 %v1394
  %1495 = vmatpush.msra.mxu0 %v1390
  %1496 = vmatpush.msra.mxu0 %v1386
  %1497 = vmatpush.msra.mxu0 %v1382
  %1498 = vmatpush.msra.mxu0 %v1378
  %1499 = vmatpush.msra.mxu0 %v1374
  %1500 = vmatpush.msra.mxu0 %v1370
  %1501 = vmatpush.msra.mxu0 %v1366
  %1502 = vmatpush.msra.mxu0 %v1362
  %1503 = vmatpush.msra.mxu0 %v1358
  %1504 = vmatpush.msra.mxu0 %v1354
  %1505 = vmatpush.msra.mxu0 %v1350
  %1506 = vmatpush.msra.mxu0 %v1346
  %1507 = vmatpush.msra.mxu0 %v1342
  %1508 = vmatmul.f32.gmra.mxu0 %v1270
  %v1509 = vpop.f32.mrf.mxu0
  %v1510 = vadd.f32 %v1481, %v1509
  %1511 = vmatmul.f32.gmra.mxu0 %v1272
  %v1512 = vpop.f32.mrf.mxu0
  %v1513 = vadd.f32 %v1484, %v1512
  %1514 = vmatmul.f32.gmra.mxu0 %v1274
  %v1515 = vpop.f32.mrf.mxu0
  %v1516 = vadd.f32 %v1487, %v1515
  %1517 = vmatmul.f32.gmra.mxu0 %v1276
  %v1518 = vpop.f32.mrf.mxu0
  %v1519 = vadd.f32 %v1490, %v1518
  %1520 = vdwg.mxu0
  %1521 = vmatpush.msra.mxu0 %v1339
  %1522 = vmatpush.msra.mxu0 %v1335
  %1523 = vmatpush.msra.mxu0 %v1331
  %1524 = vmatpush.msra.mxu0 %v1327
  %1525 = vmatpush.msra.mxu0 %v1323
  %1526 = vmatpush.msra.mxu0 %v1319
  %1527 = vmatpush.msra.mxu0 %v1315
  %1528 = vmatpush.msra.mxu0 %v1311
  %1529 = vmatpush.msra.mxu0 %v1307
  %1530 = vmatpush.msra.mxu0 %v1303
  %1531 = vmatpush.msra.mxu0 %v1299
  %1532 = vmatpush.msra.mxu0 %v1295
  %1533 = vmatpush.msra.mxu0 %v1291
  %1534 = vmatpush.msra.mxu0 %v1287
  %1535 = vmatpush.msra.mxu0 %v1283
  %1536 = vmatpush.msra.mxu0 %v1279
  %1537 = vmatmul.f32.gmra.mxu0 %v1269
  %v1538 = vpop.f32.mrf.mxu0
  %v1539 = vadd.f32 0.0, %v1538
  %1540 = vmatmul.f32.gmra.mxu0 %v1271
  %v1541 = vpop.f32.mrf.mxu0
  %v1542 = vadd.f32 0.0, %v1541
  %1543 = vmatmul.f32.gmra.mxu0 %v1273
  %v1544 = vpop.f32.mrf.mxu0
  %v1545 = vadd.f32 0.0, %v1544
  %1546 = vmatmul.f32.gmra.mxu0 %v1275
  %v1547 = vpop.f32.mrf.mxu0
  %v1548 = vadd.f32 0.0, %v1547
  %1549 = vdwg.mxu0
  %1550 = vmatpush.msra.mxu0 %v1403
  %1551 = vmatpush.msra.mxu0 %v1399
  %1552 = vmatpush.msra.mxu0 %v1395
  %1553 = vmatpush.msra.mxu0 %v1391
  %1554 = vmatpush.msra.mxu0 %v1387
  %1555 = vmatpush.msra.mxu0 %v1383
  %1556 = vmatpush.msra.mxu0 %v1379
  %1557 = vmatpush.msra.mxu0 %v1375
  %1558 = vmatpush.msra.mxu0 %v1371
  %1559 = vmatpush.msra.mxu0 %v1367
  %1560 = vmatpush.msra.mxu0 %v1363
  %1561 = vmatpush.msra.mxu0 %v1359
  %1562 = vmatpush.msra.mxu0 %v1355
  %1563 = vmatpush.msra.mxu0 %v1351
  %1564 = vmatpush.msra.mxu0 %v1347
  %1565 = vmatpush.msra.mxu0 %v1343
  %1566 = vmatmul.f32.gmra.mxu0 %v1270
  %v1567 = vpop.f32.mrf.mxu0
  %v1568 = vadd.f32 %v1539, %v1567
  %1569 = vmatmul.f32.gmra.mxu0 %v1272
  %v1570 = vpop.f32.mrf.mxu0
  %v1571 = vadd.f32 %v1542, %v1570
  %1572 = vmatmul.f32.gmra.mxu0 %v1274
  %v1573 = vpop.f32.mrf.mxu0
  %v1574 = vadd.f32 %v1545, %v1573
  %1575 = vmatmul.f32.gmra.mxu0 %v1276
  %v1576 = vpop.f32.mrf.mxu0
  %v1577 = vadd.f32 %v1548, %v1576
  %1578 = vdwg.mxu0
  %1579 = vmatpush.msra.mxu0 %v1340
  %1580 = vmatpush.msra.mxu0 %v1336
  %1581 = vmatpush.msra.mxu0 %v1332
  %1582 = vmatpush.msra.mxu0 %v1328
  %1583 = vmatpush.msra.mxu0 %v1324
  %1584 = vmatpush.msra.mxu0 %v1320
  %1585 = vmatpush.msra.mxu0 %v1316
  %1586 = vmatpush.msra.mxu0 %v1312
  %1587 = vmatpush.msra.mxu0 %v1308
  %1588 = vmatpush.msra.mxu0 %v1304
  %1589 = vmatpush.msra.mxu0 %v1300
  %1590 = vmatpush.msra.mxu0 %v1296
  %1591 = vmatpush.msra.mxu0 %v1292
  %1592 = vmatpush.msra.mxu0 %v1288
  %1593 = vmatpush.msra.mxu0 %v1284
  %1594 = vmatpush.msra.mxu0 %v1280
  %1595 = vmatmul.f32.gmra.mxu0 %v1269
  %v1596 = vpop.f32.mrf.mxu0
  %v1597 = vadd.f32 0.0, %v1596
  %1598 = vmatmul.f32.gmra.mxu0 %v1271
  %v1599 = vpop.f32.mrf.mxu0
  %v1600 = vadd.f32 0.0, %v1599
  %1601 = vmatmul.f32.gmra.mxu0 %v1273
  %v1602 = vpop.f32.mrf.mxu0
  %v1603 = vadd.f32 0.0, %v1602
  %1604 = vmatmul.f32.gmra.mxu0 %v1275
  %v1605 = vpop.f32.mrf.mxu0
  %v1606 = vadd.f32 0.0, %v1605
  %1607 = vdwg.mxu0
  %1608 = vmatpush.msra.mxu0 %v1404
  %1609 = vmatpush.msra.mxu0 %v1400
  %1610 = vmatpush.msra.mxu0 %v1396
  %1611 = vmatpush.msra.mxu0 %v1392
  %1612 = vmatpush.msra.mxu0 %v1388
  %1613 = vmatpush.msra.mxu0 %v1384
  %1614 = vmatpush.msra.mxu0 %v1380
  %1615 = vmatpush.msra.mxu0 %v1376
  %1616 = vmatpush.msra.mxu0 %v1372
  %1617 = vmatpush.msra.mxu0 %v1368
  %1618 = vmatpush.msra.mxu0 %v1364
  %1619 = vmatpush.msra.mxu0 %v1360
  %1620 = vmatpush.msra.mxu0 %v1356
  %1621 = vmatpush.msra.mxu0 %v1352
  %1622 = vmatpush.msra.mxu0 %v1348
  %1623 = vmatpush.msra.mxu0 %v1344
  %1624 = vmatmul.f32.gmra.mxu0 %v1270
  %v1625 = vpop.f32.mrf.mxu0
  %v1626 = vadd.f32 %v1597, %v1625
  %1627 = vmatmul.f32.gmra.mxu0 %v1272
  %v1628 = vpop.f32.mrf.mxu0
  %v1629 = vadd.f32 %v1600, %v1628
  %1630 = vmatmul.f32.gmra.mxu0 %v1274
  %v1631 = vpop.f32.mrf.mxu0
  %v1632 = vadd.f32 %v1603, %v1631
  %1633 = vmatmul.f32.gmra.mxu0 %v1276
  %v1634 = vpop.f32.mrf.mxu0
  %v1635 = vadd.f32 %v1606, %v1634
  %1636 = vdwg.mxu0
  %v1637 = vadd.s32 %v25, 256
  %v1638 = vadd.s32 %v25, 264
  %v1639 = vadd.s32 %v25, 272
  %v1640 = vadd.s32 %v25, 280
  %v1641 = vadd.s32 %v25, 288
  %v1642 = vadd.s32 %v25, 296
  %v1643 = vadd.s32 %v25, 304
  %v1644 = vadd.s32 %v25, 312
  %v1645 = vadd.s32 %v25, 320
  %v1646 = vadd.s32 %v25, 328
  %v1647 = vadd.s32 %v25, 336
  %v1648 = vadd.s32 %v25, 344
  %v1649 = vadd.s32 %v25, 352
  %v1650 = vadd.s32 %v25, 360
  %v1651 = vadd.s32 %v25, 368
  %v1652 = vadd.s32 %v25, 376
  %v1653 = vadd.s32 %v25, 384
  %v1654 = vadd.s32 %v25, 392
  %v1655 = vadd.s32 %v25, 400
  %v1656 = vadd.s32 %v25, 408
  %v1657 = vadd.s32 %v25, 416
  %v1658 = vadd.s32 %v25, 424
  %v1659 = vadd.s32 %v25, 432
  %v1660 = vadd.s32 %v25, 440
  %v1661 = vadd.s32 %v25, 448
  %v1662 = vadd.s32 %v25, 456
  %v1663 = vadd.s32 %v25, 464
  %v1664 = vadd.s32 %v25, 472
  %v1665 = vadd.s32 %v25, 480
  %v1666 = vadd.s32 %v25, 488
  %v1667 = vadd.s32 %v25, 496
  %v1668 = vadd.s32 %v25, 504
  %vm1669 = vcmp.lt.s32.totalorder %v25, 0
  %v1670 = vsub.s32 0, %v25
  %v1671 = vsel %vm1669, %v1670, %v25
  %v1672 = vshrl.u32 %v1671, 3
  %v1673 = vand.u32 %v1671, 7
  %v1674 = vsub.s32 0, %v1673
  %v1675 = vsel %vm1669, %v1674, %v1673
  %vm1676 = vcmp.lt.s32.totalorder %v124, 0
  %v1677 = vsub.s32 0, %v124
  %v1678 = vsel %vm1676, %v1677, %v124
  %v1679 = vshrl.u32 %v1678, 3
  %v1680 = vand.u32 %v1678, 7
  %v1681 = vsub.s32 0, %v1680
  %v1682 = vsel %vm1676, %v1681, %v1680
  %vm1683 = vcmp.lt.s32.totalorder %v125, 0
  %v1684 = vsub.s32 0, %v125
  %v1685 = vsel %vm1683, %v1684, %v125
  %v1686 = vshrl.u32 %v1685, 3
  %v1687 = vand.u32 %v1685, 7
  %v1688 = vsub.s32 0, %v1687
  %v1689 = vsel %vm1683, %v1688, %v1687
  %vm1690 = vcmp.lt.s32.totalorder %v126, 0
  %v1691 = vsub.s32 0, %v126
  %v1692 = vsel %vm1690, %v1691, %v126
  %v1693 = vshrl.u32 %v1692, 3
  %v1694 = vand.u32 %v1692, 7
  %v1695 = vsub.s32 0, %v1694
  %v1696 = vsel %vm1690, %v1695, %v1694
  %vm1697 = vcmp.lt.s32.totalorder %v127, 0
  %v1698 = vsub.s32 0, %v127
  %v1699 = vsel %vm1697, %v1698, %v127
  %v1700 = vshrl.u32 %v1699, 3
  %v1701 = vand.u32 %v1699, 7
  %v1702 = vsub.s32 0, %v1701
  %v1703 = vsel %vm1697, %v1702, %v1701
  %vm1704 = vcmp.lt.s32.totalorder %v128, 0
  %v1705 = vsub.s32 0, %v128
  %v1706 = vsel %vm1704, %v1705, %v128
  %v1707 = vshrl.u32 %v1706, 3
  %v1708 = vand.u32 %v1706, 7
  %v1709 = vsub.s32 0, %v1708
  %v1710 = vsel %vm1704, %v1709, %v1708
  %vm1711 = vcmp.lt.s32.totalorder %v129, 0
  %v1712 = vsub.s32 0, %v129
  %v1713 = vsel %vm1711, %v1712, %v129
  %v1714 = vshrl.u32 %v1713, 3
  %v1715 = vand.u32 %v1713, 7
  %v1716 = vsub.s32 0, %v1715
  %v1717 = vsel %vm1711, %v1716, %v1715
  %vm1718 = vcmp.lt.s32.totalorder %v130, 0
  %v1719 = vsub.s32 0, %v130
  %v1720 = vsel %vm1718, %v1719, %v130
  %v1721 = vshrl.u32 %v1720, 3
  %v1722 = vand.u32 %v1720, 7
  %v1723 = vsub.s32 0, %v1722
  %v1724 = vsel %vm1718, %v1723, %v1722
  %vm1725 = vcmp.lt.s32.totalorder %v684, 0
  %v1726 = vsub.s32 0, %v684
  %v1727 = vsel %vm1725, %v1726, %v684
  %v1728 = vshrl.u32 %v1727, 3
  %v1729 = vand.u32 %v1727, 7
  %v1730 = vsub.s32 0, %v1729
  %v1731 = vsel %vm1725, %v1730, %v1729
  %vm1732 = vcmp.lt.s32.totalorder %v685, 0
  %v1733 = vsub.s32 0, %v685
  %v1734 = vsel %vm1732, %v1733, %v685
  %v1735 = vshrl.u32 %v1734, 3
  %v1736 = vand.u32 %v1734, 7
  %v1737 = vsub.s32 0, %v1736
  %v1738 = vsel %vm1732, %v1737, %v1736
  %vm1739 = vcmp.lt.s32.totalorder %v686, 0
  %v1740 = vsub.s32 0, %v686
  %v1741 = vsel %vm1739, %v1740, %v686
  %v1742 = vshrl.u32 %v1741, 3
  %v1743 = vand.u32 %v1741, 7
  %v1744 = vsub.s32 0, %v1743
  %v1745 = vsel %vm1739, %v1744, %v1743
  %vm1746 = vcmp.lt.s32.totalorder %v687, 0
  %v1747 = vsub.s32 0, %v687
  %v1748 = vsel %vm1746, %v1747, %v687
  %v1749 = vshrl.u32 %v1748, 3
  %v1750 = vand.u32 %v1748, 7
  %v1751 = vsub.s32 0, %v1750
  %v1752 = vsel %vm1746, %v1751, %v1750
  %vm1753 = vcmp.lt.s32.totalorder %v688, 0
  %v1754 = vsub.s32 0, %v688
  %v1755 = vsel %vm1753, %v1754, %v688
  %v1756 = vshrl.u32 %v1755, 3
  %v1757 = vand.u32 %v1755, 7
  %v1758 = vsub.s32 0, %v1757
  %v1759 = vsel %vm1753, %v1758, %v1757
  %vm1760 = vcmp.lt.s32.totalorder %v689, 0
  %v1761 = vsub.s32 0, %v689
  %v1762 = vsel %vm1760, %v1761, %v689
  %v1763 = vshrl.u32 %v1762, 3
  %v1764 = vand.u32 %v1762, 7
  %v1765 = vsub.s32 0, %v1764
  %v1766 = vsel %vm1760, %v1765, %v1764
  %vm1767 = vcmp.lt.s32.totalorder %v690, 0
  %v1768 = vsub.s32 0, %v690
  %v1769 = vsel %vm1767, %v1768, %v690
  %v1770 = vshrl.u32 %v1769, 3
  %v1771 = vand.u32 %v1769, 7
  %v1772 = vsub.s32 0, %v1771
  %v1773 = vsel %vm1767, %v1772, %v1771
  %vm1774 = vcmp.lt.s32.totalorder %v691, 0
  %v1775 = vsub.s32 0, %v691
  %v1776 = vsel %vm1774, %v1775, %v691
  %v1777 = vshrl.u32 %v1776, 3
  %v1778 = vand.u32 %v1776, 7
  %v1779 = vsub.s32 0, %v1778
  %v1780 = vsel %vm1774, %v1779, %v1778
  %vm1781 = vcmp.lt.s32.totalorder %v692, 0
  %v1782 = vsub.s32 0, %v692
  %v1783 = vsel %vm1781, %v1782, %v692
  %v1784 = vshrl.u32 %v1783, 3
  %v1785 = vand.u32 %v1783, 7
  %v1786 = vsub.s32 0, %v1785
  %v1787 = vsel %vm1781, %v1786, %v1785
  %vm1788 = vcmp.lt.s32.totalorder %v693, 0
  %v1789 = vsub.s32 0, %v693
  %v1790 = vsel %vm1788, %v1789, %v693
  %v1791 = vshrl.u32 %v1790, 3
  %v1792 = vand.u32 %v1790, 7
  %v1793 = vsub.s32 0, %v1792
  %v1794 = vsel %vm1788, %v1793, %v1792
  %vm1795 = vcmp.lt.s32.totalorder %v694, 0
  %v1796 = vsub.s32 0, %v694
  %v1797 = vsel %vm1795, %v1796, %v694
  %v1798 = vshrl.u32 %v1797, 3
  %v1799 = vand.u32 %v1797, 7
  %v1800 = vsub.s32 0, %v1799
  %v1801 = vsel %vm1795, %v1800, %v1799
  %vm1802 = vcmp.lt.s32.totalorder %v695, 0
  %v1803 = vsub.s32 0, %v695
  %v1804 = vsel %vm1802, %v1803, %v695
  %v1805 = vshrl.u32 %v1804, 3
  %v1806 = vand.u32 %v1804, 7
  %v1807 = vsub.s32 0, %v1806
  %v1808 = vsel %vm1802, %v1807, %v1806
  %vm1809 = vcmp.lt.s32.totalorder %v696, 0
  %v1810 = vsub.s32 0, %v696
  %v1811 = vsel %vm1809, %v1810, %v696
  %v1812 = vshrl.u32 %v1811, 3
  %v1813 = vand.u32 %v1811, 7
  %v1814 = vsub.s32 0, %v1813
  %v1815 = vsel %vm1809, %v1814, %v1813
  %vm1816 = vcmp.lt.s32.totalorder %v697, 0
  %v1817 = vsub.s32 0, %v697
  %v1818 = vsel %vm1816, %v1817, %v697
  %v1819 = vshrl.u32 %v1818, 3
  %v1820 = vand.u32 %v1818, 7
  %v1821 = vsub.s32 0, %v1820
  %v1822 = vsel %vm1816, %v1821, %v1820
  %vm1823 = vcmp.lt.s32.totalorder %v698, 0
  %v1824 = vsub.s32 0, %v698
  %v1825 = vsel %vm1823, %v1824, %v698
  %v1826 = vshrl.u32 %v1825, 3
  %v1827 = vand.u32 %v1825, 7
  %v1828 = vsub.s32 0, %v1827
  %v1829 = vsel %vm1823, %v1828, %v1827
  %vm1830 = vcmp.lt.s32.totalorder %v699, 0
  %v1831 = vsub.s32 0, %v699
  %v1832 = vsel %vm1830, %v1831, %v699
  %v1833 = vshrl.u32 %v1832, 3
  %v1834 = vand.u32 %v1832, 7
  %v1835 = vsub.s32 0, %v1834
  %v1836 = vsel %vm1830, %v1835, %v1834
  %vm1837 = vcmp.lt.s32.totalorder %v700, 0
  %v1838 = vsub.s32 0, %v700
  %v1839 = vsel %vm1837, %v1838, %v700
  %v1840 = vshrl.u32 %v1839, 3
  %v1841 = vand.u32 %v1839, 7
  %v1842 = vsub.s32 0, %v1841
  %v1843 = vsel %vm1837, %v1842, %v1841
  %vm1844 = vcmp.lt.s32.totalorder %v701, 0
  %v1845 = vsub.s32 0, %v701
  %v1846 = vsel %vm1844, %v1845, %v701
  %v1847 = vshrl.u32 %v1846, 3
  %v1848 = vand.u32 %v1846, 7
  %v1849 = vsub.s32 0, %v1848
  %v1850 = vsel %vm1844, %v1849, %v1848
  %vm1851 = vcmp.lt.s32.totalorder %v702, 0
  %v1852 = vsub.s32 0, %v702
  %v1853 = vsel %vm1851, %v1852, %v702
  %v1854 = vshrl.u32 %v1853, 3
  %v1855 = vand.u32 %v1853, 7
  %v1856 = vsub.s32 0, %v1855
  %v1857 = vsel %vm1851, %v1856, %v1855
  %vm1858 = vcmp.lt.s32.totalorder %v703, 0
  %v1859 = vsub.s32 0, %v703
  %v1860 = vsel %vm1858, %v1859, %v703
  %v1861 = vshrl.u32 %v1860, 3
  %v1862 = vand.u32 %v1860, 7
  %v1863 = vsub.s32 0, %v1862
  %v1864 = vsel %vm1858, %v1863, %v1862
  %vm1865 = vcmp.lt.s32.totalorder %v704, 0
  %v1866 = vsub.s32 0, %v704
  %v1867 = vsel %vm1865, %v1866, %v704
  %v1868 = vshrl.u32 %v1867, 3
  %v1869 = vand.u32 %v1867, 7
  %v1870 = vsub.s32 0, %v1869
  %v1871 = vsel %vm1865, %v1870, %v1869
  %vm1872 = vcmp.lt.s32.totalorder %v705, 0
  %v1873 = vsub.s32 0, %v705
  %v1874 = vsel %vm1872, %v1873, %v705
  %v1875 = vshrl.u32 %v1874, 3
  %v1876 = vand.u32 %v1874, 7
  %v1877 = vsub.s32 0, %v1876
  %v1878 = vsel %vm1872, %v1877, %v1876
  %vm1879 = vcmp.lt.s32.totalorder %v706, 0
  %v1880 = vsub.s32 0, %v706
  %v1881 = vsel %vm1879, %v1880, %v706
  %v1882 = vshrl.u32 %v1881, 3
  %v1883 = vand.u32 %v1881, 7
  %v1884 = vsub.s32 0, %v1883
  %v1885 = vsel %vm1879, %v1884, %v1883
  %vm1886 = vcmp.lt.s32.totalorder %v707, 0
  %v1887 = vsub.s32 0, %v707
  %v1888 = vsel %vm1886, %v1887, %v707
  %v1889 = vshrl.u32 %v1888, 3
  %v1890 = vand.u32 %v1888, 7
  %v1891 = vsub.s32 0, %v1890
  %v1892 = vsel %vm1886, %v1891, %v1890
  %vm1893 = vcmp.lt.s32.totalorder %v1637, 0
  %v1894 = vsub.s32 0, %v1637
  %v1895 = vsel %vm1893, %v1894, %v1637
  %v1896 = vshrl.u32 %v1895, 3
  %v1897 = vand.u32 %v1895, 7
  %v1898 = vsub.s32 0, %v1897
  %v1899 = vsel %vm1893, %v1898, %v1897
  %vm1900 = vcmp.lt.s32.totalorder %v1638, 0
  %v1901 = vsub.s32 0, %v1638
  %v1902 = vsel %vm1900, %v1901, %v1638
  %v1903 = vshrl.u32 %v1902, 3
  %v1904 = vand.u32 %v1902, 7
  %v1905 = vsub.s32 0, %v1904
  %v1906 = vsel %vm1900, %v1905, %v1904
  %vm1907 = vcmp.lt.s32.totalorder %v1639, 0
  %v1908 = vsub.s32 0, %v1639
  %v1909 = vsel %vm1907, %v1908, %v1639
  %v1910 = vshrl.u32 %v1909, 3
  %v1911 = vand.u32 %v1909, 7
  %v1912 = vsub.s32 0, %v1911
  %v1913 = vsel %vm1907, %v1912, %v1911
  %vm1914 = vcmp.lt.s32.totalorder %v1640, 0
  %v1915 = vsub.s32 0, %v1640
  %v1916 = vsel %vm1914, %v1915, %v1640
  %v1917 = vshrl.u32 %v1916, 3
  %v1918 = vand.u32 %v1916, 7
  %v1919 = vsub.s32 0, %v1918
  %v1920 = vsel %vm1914, %v1919, %v1918
  %vm1921 = vcmp.lt.s32.totalorder %v1641, 0
  %v1922 = vsub.s32 0, %v1641
  %v1923 = vsel %vm1921, %v1922, %v1641
  %v1924 = vshrl.u32 %v1923, 3
  %v1925 = vand.u32 %v1923, 7
  %v1926 = vsub.s32 0, %v1925
  %v1927 = vsel %vm1921, %v1926, %v1925
  %vm1928 = vcmp.lt.s32.totalorder %v1642, 0
  %v1929 = vsub.s32 0, %v1642
  %v1930 = vsel %vm1928, %v1929, %v1642
  %v1931 = vshrl.u32 %v1930, 3
  %v1932 = vand.u32 %v1930, 7
  %v1933 = vsub.s32 0, %v1932
  %v1934 = vsel %vm1928, %v1933, %v1932
  %vm1935 = vcmp.lt.s32.totalorder %v1643, 0
  %v1936 = vsub.s32 0, %v1643
  %v1937 = vsel %vm1935, %v1936, %v1643
  %v1938 = vshrl.u32 %v1937, 3
  %v1939 = vand.u32 %v1937, 7
  %v1940 = vsub.s32 0, %v1939
  %v1941 = vsel %vm1935, %v1940, %v1939
  %vm1942 = vcmp.lt.s32.totalorder %v1644, 0
  %v1943 = vsub.s32 0, %v1644
  %v1944 = vsel %vm1942, %v1943, %v1644
  %v1945 = vshrl.u32 %v1944, 3
  %v1946 = vand.u32 %v1944, 7
  %v1947 = vsub.s32 0, %v1946
  %v1948 = vsel %vm1942, %v1947, %v1946
  %vm1949 = vcmp.lt.s32.totalorder %v1645, 0
  %v1950 = vsub.s32 0, %v1645
  %v1951 = vsel %vm1949, %v1950, %v1645
  %v1952 = vshrl.u32 %v1951, 3
  %v1953 = vand.u32 %v1951, 7
  %v1954 = vsub.s32 0, %v1953
  %v1955 = vsel %vm1949, %v1954, %v1953
  %vm1956 = vcmp.lt.s32.totalorder %v1646, 0
  %v1957 = vsub.s32 0, %v1646
  %v1958 = vsel %vm1956, %v1957, %v1646
  %v1959 = vshrl.u32 %v1958, 3
  %v1960 = vand.u32 %v1958, 7
  %v1961 = vsub.s32 0, %v1960
  %v1962 = vsel %vm1956, %v1961, %v1960
  %vm1963 = vcmp.lt.s32.totalorder %v1647, 0
  %v1964 = vsub.s32 0, %v1647
  %v1965 = vsel %vm1963, %v1964, %v1647
  %v1966 = vshrl.u32 %v1965, 3
  %v1967 = vand.u32 %v1965, 7
  %v1968 = vsub.s32 0, %v1967
  %v1969 = vsel %vm1963, %v1968, %v1967
  %vm1970 = vcmp.lt.s32.totalorder %v1648, 0
  %v1971 = vsub.s32 0, %v1648
  %v1972 = vsel %vm1970, %v1971, %v1648
  %v1973 = vshrl.u32 %v1972, 3
  %v1974 = vand.u32 %v1972, 7
  %v1975 = vsub.s32 0, %v1974
  %v1976 = vsel %vm1970, %v1975, %v1974
  %vm1977 = vcmp.lt.s32.totalorder %v1649, 0
  %v1978 = vsub.s32 0, %v1649
  %v1979 = vsel %vm1977, %v1978, %v1649
  %v1980 = vshrl.u32 %v1979, 3
  %v1981 = vand.u32 %v1979, 7
  %v1982 = vsub.s32 0, %v1981
  %v1983 = vsel %vm1977, %v1982, %v1981
  %vm1984 = vcmp.lt.s32.totalorder %v1650, 0
  %v1985 = vsub.s32 0, %v1650
  %v1986 = vsel %vm1984, %v1985, %v1650
  %v1987 = vshrl.u32 %v1986, 3
  %v1988 = vand.u32 %v1986, 7
  %v1989 = vsub.s32 0, %v1988
  %v1990 = vsel %vm1984, %v1989, %v1988
  %vm1991 = vcmp.lt.s32.totalorder %v1651, 0
  %v1992 = vsub.s32 0, %v1651
  %v1993 = vsel %vm1991, %v1992, %v1651
  %v1994 = vshrl.u32 %v1993, 3
  %v1995 = vand.u32 %v1993, 7
  %v1996 = vsub.s32 0, %v1995
  %v1997 = vsel %vm1991, %v1996, %v1995
  %vm1998 = vcmp.lt.s32.totalorder %v1652, 0
  %v1999 = vsub.s32 0, %v1652
  %v2000 = vsel %vm1998, %v1999, %v1652
  %v2001 = vshrl.u32 %v2000, 3
  %v2002 = vand.u32 %v2000, 7
  %v2003 = vsub.s32 0, %v2002
  %v2004 = vsel %vm1998, %v2003, %v2002
  %vm2005 = vcmp.lt.s32.totalorder %v1653, 0
  %v2006 = vsub.s32 0, %v1653
  %v2007 = vsel %vm2005, %v2006, %v1653
  %v2008 = vshrl.u32 %v2007, 3
  %v2009 = vand.u32 %v2007, 7
  %v2010 = vsub.s32 0, %v2009
  %v2011 = vsel %vm2005, %v2010, %v2009
  %vm2012 = vcmp.lt.s32.totalorder %v1654, 0
  %v2013 = vsub.s32 0, %v1654
  %v2014 = vsel %vm2012, %v2013, %v1654
  %v2015 = vshrl.u32 %v2014, 3
  %v2016 = vand.u32 %v2014, 7
  %v2017 = vsub.s32 0, %v2016
  %v2018 = vsel %vm2012, %v2017, %v2016
  %vm2019 = vcmp.lt.s32.totalorder %v1655, 0
  %v2020 = vsub.s32 0, %v1655
  %v2021 = vsel %vm2019, %v2020, %v1655
  %v2022 = vshrl.u32 %v2021, 3
  %v2023 = vand.u32 %v2021, 7
  %v2024 = vsub.s32 0, %v2023
  %v2025 = vsel %vm2019, %v2024, %v2023
  %vm2026 = vcmp.lt.s32.totalorder %v1656, 0
  %v2027 = vsub.s32 0, %v1656
  %v2028 = vsel %vm2026, %v2027, %v1656
  %v2029 = vshrl.u32 %v2028, 3
  %v2030 = vand.u32 %v2028, 7
  %v2031 = vsub.s32 0, %v2030
  %v2032 = vsel %vm2026, %v2031, %v2030
  %vm2033 = vcmp.lt.s32.totalorder %v1657, 0
  %v2034 = vsub.s32 0, %v1657
  %v2035 = vsel %vm2033, %v2034, %v1657
  %v2036 = vshrl.u32 %v2035, 3
  %v2037 = vand.u32 %v2035, 7
  %v2038 = vsub.s32 0, %v2037
  %v2039 = vsel %vm2033, %v2038, %v2037
  %vm2040 = vcmp.lt.s32.totalorder %v1658, 0
  %v2041 = vsub.s32 0, %v1658
  %v2042 = vsel %vm2040, %v2041, %v1658
  %v2043 = vshrl.u32 %v2042, 3
  %v2044 = vand.u32 %v2042, 7
  %v2045 = vsub.s32 0, %v2044
  %v2046 = vsel %vm2040, %v2045, %v2044
  %vm2047 = vcmp.lt.s32.totalorder %v1659, 0
  %v2048 = vsub.s32 0, %v1659
  %v2049 = vsel %vm2047, %v2048, %v1659
  %v2050 = vshrl.u32 %v2049, 3
  %v2051 = vand.u32 %v2049, 7
  %v2052 = vsub.s32 0, %v2051
  %v2053 = vsel %vm2047, %v2052, %v2051
  %vm2054 = vcmp.lt.s32.totalorder %v1660, 0
  %v2055 = vsub.s32 0, %v1660
  %v2056 = vsel %vm2054, %v2055, %v1660
  %v2057 = vshrl.u32 %v2056, 3
  %v2058 = vand.u32 %v2056, 7
  %v2059 = vsub.s32 0, %v2058
  %v2060 = vsel %vm2054, %v2059, %v2058
  %vm2061 = vcmp.lt.s32.totalorder %v1661, 0
  %v2062 = vsub.s32 0, %v1661
  %v2063 = vsel %vm2061, %v2062, %v1661
  %v2064 = vshrl.u32 %v2063, 3
  %v2065 = vand.u32 %v2063, 7
  %v2066 = vsub.s32 0, %v2065
  %v2067 = vsel %vm2061, %v2066, %v2065
  %vm2068 = vcmp.lt.s32.totalorder %v1662, 0
  %v2069 = vsub.s32 0, %v1662
  %v2070 = vsel %vm2068, %v2069, %v1662
  %v2071 = vshrl.u32 %v2070, 3
  %v2072 = vand.u32 %v2070, 7
  %v2073 = vsub.s32 0, %v2072
  %v2074 = vsel %vm2068, %v2073, %v2072
  %vm2075 = vcmp.lt.s32.totalorder %v1663, 0
  %v2076 = vsub.s32 0, %v1663
  %v2077 = vsel %vm2075, %v2076, %v1663
  %v2078 = vshrl.u32 %v2077, 3
  %v2079 = vand.u32 %v2077, 7
  %v2080 = vsub.s32 0, %v2079
  %v2081 = vsel %vm2075, %v2080, %v2079
  %vm2082 = vcmp.lt.s32.totalorder %v1664, 0
  %v2083 = vsub.s32 0, %v1664
  %v2084 = vsel %vm2082, %v2083, %v1664
  %v2085 = vshrl.u32 %v2084, 3
  %v2086 = vand.u32 %v2084, 7
  %v2087 = vsub.s32 0, %v2086
  %v2088 = vsel %vm2082, %v2087, %v2086
  %vm2089 = vcmp.lt.s32.totalorder %v1665, 0
  %v2090 = vsub.s32 0, %v1665
  %v2091 = vsel %vm2089, %v2090, %v1665
  %v2092 = vshrl.u32 %v2091, 3
  %v2093 = vand.u32 %v2091, 7
  %v2094 = vsub.s32 0, %v2093
  %v2095 = vsel %vm2089, %v2094, %v2093
  %vm2096 = vcmp.lt.s32.totalorder %v1666, 0
  %v2097 = vsub.s32 0, %v1666
  %v2098 = vsel %vm2096, %v2097, %v1666
  %v2099 = vshrl.u32 %v2098, 3
  %v2100 = vand.u32 %v2098, 7
  %v2101 = vsub.s32 0, %v2100
  %v2102 = vsel %vm2096, %v2101, %v2100
  %vm2103 = vcmp.lt.s32.totalorder %v1667, 0
  %v2104 = vsub.s32 0, %v1667
  %v2105 = vsel %vm2103, %v2104, %v1667
  %v2106 = vshrl.u32 %v2105, 3
  %v2107 = vand.u32 %v2105, 7
  %v2108 = vsub.s32 0, %v2107
  %v2109 = vsel %vm2103, %v2108, %v2107
  %vm2110 = vcmp.lt.s32.totalorder %v1668, 0
  %v2111 = vsub.s32 0, %v1668
  %v2112 = vsel %vm2110, %v2111, %v1668
  %v2113 = vshrl.u32 %v2112, 3
  %v2114 = vand.u32 %v2112, 7
  %v2115 = vsub.s32 0, %v2114
  %v2116 = vsel %vm2110, %v2115, %v2114
  %vm2117 = vcmp.ne.s32.totalorder %v1675, 0
  %vm2118 = vcmp.ne.s32.totalorder %v1682, 0
  %vm2119 = vcmp.ne.s32.totalorder %v1689, 0
  %vm2120 = vcmp.ne.s32.totalorder %v1696, 0
  %vm2121 = vcmp.ne.s32.totalorder %v1703, 0
  %vm2122 = vcmp.ne.s32.totalorder %v1710, 0
  %vm2123 = vcmp.ne.s32.totalorder %v1717, 0
  %vm2124 = vcmp.ne.s32.totalorder %v1724, 0
  %vm2125 = vcmp.ne.s32.totalorder %v1731, 0
  %vm2126 = vcmp.ne.s32.totalorder %v1738, 0
  %vm2127 = vcmp.ne.s32.totalorder %v1745, 0
  %vm2128 = vcmp.ne.s32.totalorder %v1752, 0
  %vm2129 = vcmp.ne.s32.totalorder %v1759, 0
  %vm2130 = vcmp.ne.s32.totalorder %v1766, 0
  %vm2131 = vcmp.ne.s32.totalorder %v1773, 0
  %vm2132 = vcmp.ne.s32.totalorder %v1780, 0
  %vm2133 = vcmp.ne.s32.totalorder %v1787, 0
  %vm2134 = vcmp.ne.s32.totalorder %v1794, 0
  %vm2135 = vcmp.ne.s32.totalorder %v1801, 0
  %vm2136 = vcmp.ne.s32.totalorder %v1808, 0
  %vm2137 = vcmp.ne.s32.totalorder %v1815, 0
  %vm2138 = vcmp.ne.s32.totalorder %v1822, 0
  %vm2139 = vcmp.ne.s32.totalorder %v1829, 0
  %vm2140 = vcmp.ne.s32.totalorder %v1836, 0
  %vm2141 = vcmp.ne.s32.totalorder %v1843, 0
  %vm2142 = vcmp.ne.s32.totalorder %v1850, 0
  %vm2143 = vcmp.ne.s32.totalorder %v1857, 0
  %vm2144 = vcmp.ne.s32.totalorder %v1864, 0
  %vm2145 = vcmp.ne.s32.totalorder %v1871, 0
  %vm2146 = vcmp.ne.s32.totalorder %v1878, 0
  %vm2147 = vcmp.ne.s32.totalorder %v1885, 0
  %vm2148 = vcmp.ne.s32.totalorder %v1892, 0
  %vm2149 = vcmp.ne.s32.totalorder %v1899, 0
  %vm2150 = vcmp.ne.s32.totalorder %v1906, 0
  %vm2151 = vcmp.ne.s32.totalorder %v1913, 0
  %vm2152 = vcmp.ne.s32.totalorder %v1920, 0
  %vm2153 = vcmp.ne.s32.totalorder %v1927, 0
  %vm2154 = vcmp.ne.s32.totalorder %v1934, 0
  %vm2155 = vcmp.ne.s32.totalorder %v1941, 0
  %vm2156 = vcmp.ne.s32.totalorder %v1948, 0
  %vm2157 = vcmp.ne.s32.totalorder %v1955, 0
  %vm2158 = vcmp.ne.s32.totalorder %v1962, 0
  %vm2159 = vcmp.ne.s32.totalorder %v1969, 0
  %vm2160 = vcmp.ne.s32.totalorder %v1976, 0
  %vm2161 = vcmp.ne.s32.totalorder %v1983, 0
  %vm2162 = vcmp.ne.s32.totalorder %v1990, 0
  %vm2163 = vcmp.ne.s32.totalorder %v1997, 0
  %vm2164 = vcmp.ne.s32.totalorder %v2004, 0
  %vm2165 = vcmp.ne.s32.totalorder %v2011, 0
  %vm2166 = vcmp.ne.s32.totalorder %v2018, 0
  %vm2167 = vcmp.ne.s32.totalorder %v2025, 0
  %vm2168 = vcmp.ne.s32.totalorder %v2032, 0
  %vm2169 = vcmp.ne.s32.totalorder %v2039, 0
  %vm2170 = vcmp.ne.s32.totalorder %v2046, 0
  %vm2171 = vcmp.ne.s32.totalorder %v2053, 0
  %vm2172 = vcmp.ne.s32.totalorder %v2060, 0
  %vm2173 = vcmp.ne.s32.totalorder %v2067, 0
  %vm2174 = vcmp.ne.s32.totalorder %v2074, 0
  %vm2175 = vcmp.ne.s32.totalorder %v2081, 0
  %vm2176 = vcmp.ne.s32.totalorder %v2088, 0
  %vm2177 = vcmp.ne.s32.totalorder %v2095, 0
  %vm2178 = vcmp.ne.s32.totalorder %v2102, 0
  %vm2179 = vcmp.ne.s32.totalorder %v2109, 0
  %vm2180 = vcmp.ne.s32.totalorder %v2116, 0
  %vm2181 = vcmp.lt.s32.totalorder %v1675, 0
  %vm2182 = vcmp.lt.s32.totalorder %v1682, 0
  %vm2183 = vcmp.lt.s32.totalorder %v1689, 0
  %vm2184 = vcmp.lt.s32.totalorder %v1696, 0
  %vm2185 = vcmp.lt.s32.totalorder %v1703, 0
  %vm2186 = vcmp.lt.s32.totalorder %v1710, 0
  %vm2187 = vcmp.lt.s32.totalorder %v1717, 0
  %vm2188 = vcmp.lt.s32.totalorder %v1724, 0
  %vm2189 = vcmp.lt.s32.totalorder %v1731, 0
  %vm2190 = vcmp.lt.s32.totalorder %v1738, 0
  %vm2191 = vcmp.lt.s32.totalorder %v1745, 0
  %vm2192 = vcmp.lt.s32.totalorder %v1752, 0
  %vm2193 = vcmp.lt.s32.totalorder %v1759, 0
  %vm2194 = vcmp.lt.s32.totalorder %v1766, 0
  %vm2195 = vcmp.lt.s32.totalorder %v1773, 0
  %vm2196 = vcmp.lt.s32.totalorder %v1780, 0
  %vm2197 = vcmp.lt.s32.totalorder %v1787, 0
  %vm2198 = vcmp.lt.s32.totalorder %v1794, 0
  %vm2199 = vcmp.lt.s32.totalorder %v1801, 0
  %vm2200 = vcmp.lt.s32.totalorder %v1808, 0
  %vm2201 = vcmp.lt.s32.totalorder %v1815, 0
  %vm2202 = vcmp.lt.s32.totalorder %v1822, 0
  %vm2203 = vcmp.lt.s32.totalorder %v1829, 0
  %vm2204 = vcmp.lt.s32.totalorder %v1836, 0
  %vm2205 = vcmp.lt.s32.totalorder %v1843, 0
  %vm2206 = vcmp.lt.s32.totalorder %v1850, 0
  %vm2207 = vcmp.lt.s32.totalorder %v1857, 0
  %vm2208 = vcmp.lt.s32.totalorder %v1864, 0
  %vm2209 = vcmp.lt.s32.totalorder %v1871, 0
  %vm2210 = vcmp.lt.s32.totalorder %v1878, 0
  %vm2211 = vcmp.lt.s32.totalorder %v1885, 0
  %vm2212 = vcmp.lt.s32.totalorder %v1892, 0
  %vm2213 = vcmp.lt.s32.totalorder %v1899, 0
  %vm2214 = vcmp.lt.s32.totalorder %v1906, 0
  %vm2215 = vcmp.lt.s32.totalorder %v1913, 0
  %vm2216 = vcmp.lt.s32.totalorder %v1920, 0
  %vm2217 = vcmp.lt.s32.totalorder %v1927, 0
  %vm2218 = vcmp.lt.s32.totalorder %v1934, 0
  %vm2219 = vcmp.lt.s32.totalorder %v1941, 0
  %vm2220 = vcmp.lt.s32.totalorder %v1948, 0
  %vm2221 = vcmp.lt.s32.totalorder %v1955, 0
  %vm2222 = vcmp.lt.s32.totalorder %v1962, 0
  %vm2223 = vcmp.lt.s32.totalorder %v1969, 0
  %vm2224 = vcmp.lt.s32.totalorder %v1976, 0
  %vm2225 = vcmp.lt.s32.totalorder %v1983, 0
  %vm2226 = vcmp.lt.s32.totalorder %v1990, 0
  %vm2227 = vcmp.lt.s32.totalorder %v1997, 0
  %vm2228 = vcmp.lt.s32.totalorder %v2004, 0
  %vm2229 = vcmp.lt.s32.totalorder %v2011, 0
  %vm2230 = vcmp.lt.s32.totalorder %v2018, 0
  %vm2231 = vcmp.lt.s32.totalorder %v2025, 0
  %vm2232 = vcmp.lt.s32.totalorder %v2032, 0
  %vm2233 = vcmp.lt.s32.totalorder %v2039, 0
  %vm2234 = vcmp.lt.s32.totalorder %v2046, 0
  %vm2235 = vcmp.lt.s32.totalorder %v2053, 0
  %vm2236 = vcmp.lt.s32.totalorder %v2060, 0
  %vm2237 = vcmp.lt.s32.totalorder %v2067, 0
  %vm2238 = vcmp.lt.s32.totalorder %v2074, 0
  %vm2239 = vcmp.lt.s32.totalorder %v2081, 0
  %vm2240 = vcmp.lt.s32.totalorder %v2088, 0
  %vm2241 = vcmp.lt.s32.totalorder %v2095, 0
  %vm2242 = vcmp.lt.s32.totalorder %v2102, 0
  %vm2243 = vcmp.lt.s32.totalorder %v2109, 0
  %vm2244 = vcmp.lt.s32.totalorder %v2116, 0
  %vm2245 = vmand %vm2181, %vm2117
  %vm2246 = vmand %vm2182, %vm2118
  %vm2247 = vmand %vm2183, %vm2119
  %vm2248 = vmand %vm2184, %vm2120
  %vm2249 = vmand %vm2185, %vm2121
  %vm2250 = vmand %vm2186, %vm2122
  %vm2251 = vmand %vm2187, %vm2123
  %vm2252 = vmand %vm2188, %vm2124
  %vm2253 = vmand %vm2189, %vm2125
  %vm2254 = vmand %vm2190, %vm2126
  %vm2255 = vmand %vm2191, %vm2127
  %vm2256 = vmand %vm2192, %vm2128
  %vm2257 = vmand %vm2193, %vm2129
  %vm2258 = vmand %vm2194, %vm2130
  %vm2259 = vmand %vm2195, %vm2131
  %vm2260 = vmand %vm2196, %vm2132
  %vm2261 = vmand %vm2197, %vm2133
  %vm2262 = vmand %vm2198, %vm2134
  %vm2263 = vmand %vm2199, %vm2135
  %vm2264 = vmand %vm2200, %vm2136
  %vm2265 = vmand %vm2201, %vm2137
  %vm2266 = vmand %vm2202, %vm2138
  %vm2267 = vmand %vm2203, %vm2139
  %vm2268 = vmand %vm2204, %vm2140
  %vm2269 = vmand %vm2205, %vm2141
  %vm2270 = vmand %vm2206, %vm2142
  %vm2271 = vmand %vm2207, %vm2143
  %vm2272 = vmand %vm2208, %vm2144
  %vm2273 = vmand %vm2209, %vm2145
  %vm2274 = vmand %vm2210, %vm2146
  %vm2275 = vmand %vm2211, %vm2147
  %vm2276 = vmand %vm2212, %vm2148
  %vm2277 = vmand %vm2213, %vm2149
  %vm2278 = vmand %vm2214, %vm2150
  %vm2279 = vmand %vm2215, %vm2151
  %vm2280 = vmand %vm2216, %vm2152
  %vm2281 = vmand %vm2217, %vm2153
  %vm2282 = vmand %vm2218, %vm2154
  %vm2283 = vmand %vm2219, %vm2155
  %vm2284 = vmand %vm2220, %vm2156
  %vm2285 = vmand %vm2221, %vm2157
  %vm2286 = vmand %vm2222, %vm2158
  %vm2287 = vmand %vm2223, %vm2159
  %vm2288 = vmand %vm2224, %vm2160
  %vm2289 = vmand %vm2225, %vm2161
  %vm2290 = vmand %vm2226, %vm2162
  %vm2291 = vmand %vm2227, %vm2163
  %vm2292 = vmand %vm2228, %vm2164
  %vm2293 = vmand %vm2229, %vm2165
  %vm2294 = vmand %vm2230, %vm2166
  %vm2295 = vmand %vm2231, %vm2167
  %vm2296 = vmand %vm2232, %vm2168
  %vm2297 = vmand %vm2233, %vm2169
  %vm2298 = vmand %vm2234, %vm2170
  %vm2299 = vmand %vm2235, %vm2171
  %vm2300 = vmand %vm2236, %vm2172
  %vm2301 = vmand %vm2237, %vm2173
  %vm2302 = vmand %vm2238, %vm2174
  %vm2303 = vmand %vm2239, %vm2175
  %vm2304 = vmand %vm2240, %vm2176
  %vm2305 = vmand %vm2241, %vm2177
  %vm2306 = vmand %vm2242, %vm2178
  %vm2307 = vmand %vm2243, %vm2179
  %vm2308 = vmand %vm2244, %vm2180
  %v2309 = vadd.s32 %v1675, 8
  %v2310 = vadd.s32 %v1682, 8
  %v2311 = vadd.s32 %v1689, 8
  %v2312 = vadd.s32 %v1696, 8
  %v2313 = vadd.s32 %v1703, 8
  %v2314 = vadd.s32 %v1710, 8
  %v2315 = vadd.s32 %v1717, 8
  %v2316 = vadd.s32 %v1724, 8
  %v2317 = vadd.s32 %v1731, 8
  %v2318 = vadd.s32 %v1738, 8
  %v2319 = vadd.s32 %v1745, 8
  %v2320 = vadd.s32 %v1752, 8
  %v2321 = vadd.s32 %v1759, 8
  %v2322 = vadd.s32 %v1766, 8
  %v2323 = vadd.s32 %v1773, 8
  %v2324 = vadd.s32 %v1780, 8
  %v2325 = vadd.s32 %v1787, 8
  %v2326 = vadd.s32 %v1794, 8
  %v2327 = vadd.s32 %v1801, 8
  %v2328 = vadd.s32 %v1808, 8
  %v2329 = vadd.s32 %v1815, 8
  %v2330 = vadd.s32 %v1822, 8
  %v2331 = vadd.s32 %v1829, 8
  %v2332 = vadd.s32 %v1836, 8
  %v2333 = vadd.s32 %v1843, 8
  %v2334 = vadd.s32 %v1850, 8
  %v2335 = vadd.s32 %v1857, 8
  %v2336 = vadd.s32 %v1864, 8
  %v2337 = vadd.s32 %v1871, 8
  %v2338 = vadd.s32 %v1878, 8
  %v2339 = vadd.s32 %v1885, 8
  %v2340 = vadd.s32 %v1892, 8
  %v2341 = vadd.s32 %v1899, 8
  %v2342 = vadd.s32 %v1906, 8
  %v2343 = vadd.s32 %v1913, 8
  %v2344 = vadd.s32 %v1920, 8
  %v2345 = vadd.s32 %v1927, 8
  %v2346 = vadd.s32 %v1934, 8
  %v2347 = vadd.s32 %v1941, 8
  %v2348 = vadd.s32 %v1948, 8
  %v2349 = vadd.s32 %v1955, 8
  %v2350 = vadd.s32 %v1962, 8
  %v2351 = vadd.s32 %v1969, 8
  %v2352 = vadd.s32 %v1976, 8
  %v2353 = vadd.s32 %v1983, 8
  %v2354 = vadd.s32 %v1990, 8
  %v2355 = vadd.s32 %v1997, 8
  %v2356 = vadd.s32 %v2004, 8
  %v2357 = vadd.s32 %v2011, 8
  %v2358 = vadd.s32 %v2018, 8
  %v2359 = vadd.s32 %v2025, 8
  %v2360 = vadd.s32 %v2032, 8
  %v2361 = vadd.s32 %v2039, 8
  %v2362 = vadd.s32 %v2046, 8
  %v2363 = vadd.s32 %v2053, 8
  %v2364 = vadd.s32 %v2060, 8
  %v2365 = vadd.s32 %v2067, 8
  %v2366 = vadd.s32 %v2074, 8
  %v2367 = vadd.s32 %v2081, 8
  %v2368 = vadd.s32 %v2088, 8
  %v2369 = vadd.s32 %v2095, 8
  %v2370 = vadd.s32 %v2102, 8
  %v2371 = vadd.s32 %v2109, 8
  %v2372 = vadd.s32 %v2116, 8
  %v2373 = vsel %vm2245, %v2309, %v1675
  %v2374 = vsel %vm2246, %v2310, %v1682
  %v2375 = vsel %vm2247, %v2311, %v1689
  %v2376 = vsel %vm2248, %v2312, %v1696
  %v2377 = vsel %vm2249, %v2313, %v1703
  %v2378 = vsel %vm2250, %v2314, %v1710
  %v2379 = vsel %vm2251, %v2315, %v1717
  %v2380 = vsel %vm2252, %v2316, %v1724
  %v2381 = vsel %vm2253, %v2317, %v1731
  %v2382 = vsel %vm2254, %v2318, %v1738
  %v2383 = vsel %vm2255, %v2319, %v1745
  %v2384 = vsel %vm2256, %v2320, %v1752
  %v2385 = vsel %vm2257, %v2321, %v1759
  %v2386 = vsel %vm2258, %v2322, %v1766
  %v2387 = vsel %vm2259, %v2323, %v1773
  %v2388 = vsel %vm2260, %v2324, %v1780
  %v2389 = vsel %vm2261, %v2325, %v1787
  %v2390 = vsel %vm2262, %v2326, %v1794
  %v2391 = vsel %vm2263, %v2327, %v1801
  %v2392 = vsel %vm2264, %v2328, %v1808
  %v2393 = vsel %vm2265, %v2329, %v1815
  %v2394 = vsel %vm2266, %v2330, %v1822
  %v2395 = vsel %vm2267, %v2331, %v1829
  %v2396 = vsel %vm2268, %v2332, %v1836
  %v2397 = vsel %vm2269, %v2333, %v1843
  %v2398 = vsel %vm2270, %v2334, %v1850
  %v2399 = vsel %vm2271, %v2335, %v1857
  %v2400 = vsel %vm2272, %v2336, %v1864
  %v2401 = vsel %vm2273, %v2337, %v1871
  %v2402 = vsel %vm2274, %v2338, %v1878
  %v2403 = vsel %vm2275, %v2339, %v1885
  %v2404 = vsel %vm2276, %v2340, %v1892
  %v2405 = vsel %vm2277, %v2341, %v1899
  %v2406 = vsel %vm2278, %v2342, %v1906
  %v2407 = vsel %vm2279, %v2343, %v1913
  %v2408 = vsel %vm2280, %v2344, %v1920
  %v2409 = vsel %vm2281, %v2345, %v1927
  %v2410 = vsel %vm2282, %v2346, %v1934
  %v2411 = vsel %vm2283, %v2347, %v1941
  %v2412 = vsel %vm2284, %v2348, %v1948
  %v2413 = vsel %vm2285, %v2349, %v1955
  %v2414 = vsel %vm2286, %v2350, %v1962
  %v2415 = vsel %vm2287, %v2351, %v1969
  %v2416 = vsel %vm2288, %v2352, %v1976
  %v2417 = vsel %vm2289, %v2353, %v1983
  %v2418 = vsel %vm2290, %v2354, %v1990
  %v2419 = vsel %vm2291, %v2355, %v1997
  %v2420 = vsel %vm2292, %v2356, %v2004
  %v2421 = vsel %vm2293, %v2357, %v2011
  %v2422 = vsel %vm2294, %v2358, %v2018
  %v2423 = vsel %vm2295, %v2359, %v2025
  %v2424 = vsel %vm2296, %v2360, %v2032
  %v2425 = vsel %vm2297, %v2361, %v2039
  %v2426 = vsel %vm2298, %v2362, %v2046
  %v2427 = vsel %vm2299, %v2363, %v2053
  %v2428 = vsel %vm2300, %v2364, %v2060
  %v2429 = vsel %vm2301, %v2365, %v2067
  %v2430 = vsel %vm2302, %v2366, %v2074
  %v2431 = vsel %vm2303, %v2367, %v2081
  %v2432 = vsel %vm2304, %v2368, %v2088
  %v2433 = vsel %vm2305, %v2369, %v2095
  %v2434 = vsel %vm2306, %v2370, %v2102
  %v2435 = vsel %vm2307, %v2371, %v2109
  %v2436 = vsel %vm2308, %v2372, %v2116
  %vm2437 = vcmp.eq.s32.totalorder %v2373, %v228
  %vm2438 = vcmp.eq.s32.totalorder %v2374, %v228
  %vm2439 = vcmp.eq.s32.totalorder %v2375, %v228
  %vm2440 = vcmp.eq.s32.totalorder %v2376, %v228
  %vm2441 = vcmp.eq.s32.totalorder %v2377, %v228
  %vm2442 = vcmp.eq.s32.totalorder %v2378, %v228
  %vm2443 = vcmp.eq.s32.totalorder %v2379, %v228
  %vm2444 = vcmp.eq.s32.totalorder %v2380, %v228
  %vm2445 = vcmp.eq.s32.totalorder %v2381, %v228
  %vm2446 = vcmp.eq.s32.totalorder %v2382, %v228
  %vm2447 = vcmp.eq.s32.totalorder %v2383, %v228
  %vm2448 = vcmp.eq.s32.totalorder %v2384, %v228
  %vm2449 = vcmp.eq.s32.totalorder %v2385, %v228
  %vm2450 = vcmp.eq.s32.totalorder %v2386, %v228
  %vm2451 = vcmp.eq.s32.totalorder %v2387, %v228
  %vm2452 = vcmp.eq.s32.totalorder %v2388, %v228
  %vm2453 = vcmp.eq.s32.totalorder %v2389, %v228
  %vm2454 = vcmp.eq.s32.totalorder %v2390, %v228
  %vm2455 = vcmp.eq.s32.totalorder %v2391, %v228
  %vm2456 = vcmp.eq.s32.totalorder %v2392, %v228
  %vm2457 = vcmp.eq.s32.totalorder %v2393, %v228
  %vm2458 = vcmp.eq.s32.totalorder %v2394, %v228
  %vm2459 = vcmp.eq.s32.totalorder %v2395, %v228
  %vm2460 = vcmp.eq.s32.totalorder %v2396, %v228
  %vm2461 = vcmp.eq.s32.totalorder %v2397, %v228
  %vm2462 = vcmp.eq.s32.totalorder %v2398, %v228
  %vm2463 = vcmp.eq.s32.totalorder %v2399, %v228
  %vm2464 = vcmp.eq.s32.totalorder %v2400, %v228
  %vm2465 = vcmp.eq.s32.totalorder %v2401, %v228
  %vm2466 = vcmp.eq.s32.totalorder %v2402, %v228
  %vm2467 = vcmp.eq.s32.totalorder %v2403, %v228
  %vm2468 = vcmp.eq.s32.totalorder %v2404, %v228
  %vm2469 = vcmp.eq.s32.totalorder %v2405, %v228
  %vm2470 = vcmp.eq.s32.totalorder %v2406, %v228
  %vm2471 = vcmp.eq.s32.totalorder %v2407, %v228
  %vm2472 = vcmp.eq.s32.totalorder %v2408, %v228
  %vm2473 = vcmp.eq.s32.totalorder %v2409, %v228
  %vm2474 = vcmp.eq.s32.totalorder %v2410, %v228
  %vm2475 = vcmp.eq.s32.totalorder %v2411, %v228
  %vm2476 = vcmp.eq.s32.totalorder %v2412, %v228
  %vm2477 = vcmp.eq.s32.totalorder %v2413, %v228
  %vm2478 = vcmp.eq.s32.totalorder %v2414, %v228
  %vm2479 = vcmp.eq.s32.totalorder %v2415, %v228
  %vm2480 = vcmp.eq.s32.totalorder %v2416, %v228
  %vm2481 = vcmp.eq.s32.totalorder %v2417, %v228
  %vm2482 = vcmp.eq.s32.totalorder %v2418, %v228
  %vm2483 = vcmp.eq.s32.totalorder %v2419, %v228
  %vm2484 = vcmp.eq.s32.totalorder %v2420, %v228
  %vm2485 = vcmp.eq.s32.totalorder %v2421, %v228
  %vm2486 = vcmp.eq.s32.totalorder %v2422, %v228
  %vm2487 = vcmp.eq.s32.totalorder %v2423, %v228
  %vm2488 = vcmp.eq.s32.totalorder %v2424, %v228
  %vm2489 = vcmp.eq.s32.totalorder %v2425, %v228
  %vm2490 = vcmp.eq.s32.totalorder %v2426, %v228
  %vm2491 = vcmp.eq.s32.totalorder %v2427, %v228
  %vm2492 = vcmp.eq.s32.totalorder %v2428, %v228
  %vm2493 = vcmp.eq.s32.totalorder %v2429, %v228
  %vm2494 = vcmp.eq.s32.totalorder %v2430, %v228
  %vm2495 = vcmp.eq.s32.totalorder %v2431, %v228
  %vm2496 = vcmp.eq.s32.totalorder %v2432, %v228
  %vm2497 = vcmp.eq.s32.totalorder %v2433, %v228
  %vm2498 = vcmp.eq.s32.totalorder %v2434, %v228
  %vm2499 = vcmp.eq.s32.totalorder %v2435, %v228
  %vm2500 = vcmp.eq.s32.totalorder %v2436, %v228
  %v2501 = vsel %vm2437, 1, 0
  %v2502 = vsel %vm2438, 1, 0
  %v2503 = vsel %vm2439, 1, 0
  %v2504 = vsel %vm2440, 1, 0
  %v2505 = vsel %vm2441, 1, 0
  %v2506 = vsel %vm2442, 1, 0
  %v2507 = vsel %vm2443, 1, 0
  %v2508 = vsel %vm2444, 1, 0
  %v2509 = vsel %vm2445, 1, 0
  %v2510 = vsel %vm2446, 1, 0
  %v2511 = vsel %vm2447, 1, 0
  %v2512 = vsel %vm2448, 1, 0
  %v2513 = vsel %vm2449, 1, 0
  %v2514 = vsel %vm2450, 1, 0
  %v2515 = vsel %vm2451, 1, 0
  %v2516 = vsel %vm2452, 1, 0
  %v2517 = vsel %vm2453, 1, 0
  %v2518 = vsel %vm2454, 1, 0
  %v2519 = vsel %vm2455, 1, 0
  %v2520 = vsel %vm2456, 1, 0
  %v2521 = vsel %vm2457, 1, 0
  %v2522 = vsel %vm2458, 1, 0
  %v2523 = vsel %vm2459, 1, 0
  %v2524 = vsel %vm2460, 1, 0
  %v2525 = vsel %vm2461, 1, 0
  %v2526 = vsel %vm2462, 1, 0
  %v2527 = vsel %vm2463, 1, 0
  %v2528 = vsel %vm2464, 1, 0
  %v2529 = vsel %vm2465, 1, 0
  %v2530 = vsel %vm2466, 1, 0
  %v2531 = vsel %vm2467, 1, 0
  %v2532 = vsel %vm2468, 1, 0
  %v2533 = vsel %vm2469, 1, 0
  %v2534 = vsel %vm2470, 1, 0
  %v2535 = vsel %vm2471, 1, 0
  %v2536 = vsel %vm2472, 1, 0
  %v2537 = vsel %vm2473, 1, 0
  %v2538 = vsel %vm2474, 1, 0
  %v2539 = vsel %vm2475, 1, 0
  %v2540 = vsel %vm2476, 1, 0
  %v2541 = vsel %vm2477, 1, 0
  %v2542 = vsel %vm2478, 1, 0
  %v2543 = vsel %vm2479, 1, 0
  %v2544 = vsel %vm2480, 1, 0
  %v2545 = vsel %vm2481, 1, 0
  %v2546 = vsel %vm2482, 1, 0
  %v2547 = vsel %vm2483, 1, 0
  %v2548 = vsel %vm2484, 1, 0
  %v2549 = vsel %vm2485, 1, 0
  %v2550 = vsel %vm2486, 1, 0
  %v2551 = vsel %vm2487, 1, 0
  %v2552 = vsel %vm2488, 1, 0
  %v2553 = vsel %vm2489, 1, 0
  %v2554 = vsel %vm2490, 1, 0
  %v2555 = vsel %vm2491, 1, 0
  %v2556 = vsel %vm2492, 1, 0
  %v2557 = vsel %vm2493, 1, 0
  %v2558 = vsel %vm2494, 1, 0
  %v2559 = vsel %vm2495, 1, 0
  %v2560 = vsel %vm2496, 1, 0
  %v2561 = vsel %vm2497, 1, 0
  %v2562 = vsel %vm2498, 1, 0
  %v2563 = vsel %vm2499, 1, 0
  %v2564 = vsel %vm2500, 1, 0
  %v2565 = vcvt.s32.f32 %v2501
  %v2566 = vcvt.s32.f32 %v2502
  %v2567 = vcvt.s32.f32 %v2503
  %v2568 = vcvt.s32.f32 %v2504
  %v2569 = vcvt.s32.f32 %v2505
  %v2570 = vcvt.s32.f32 %v2506
  %v2571 = vcvt.s32.f32 %v2507
  %v2572 = vcvt.s32.f32 %v2508
  %v2573 = vcvt.s32.f32 %v2509
  %v2574 = vcvt.s32.f32 %v2510
  %v2575 = vcvt.s32.f32 %v2511
  %v2576 = vcvt.s32.f32 %v2512
  %v2577 = vcvt.s32.f32 %v2513
  %v2578 = vcvt.s32.f32 %v2514
  %v2579 = vcvt.s32.f32 %v2515
  %v2580 = vcvt.s32.f32 %v2516
  %v2581 = vcvt.s32.f32 %v2517
  %v2582 = vcvt.s32.f32 %v2518
  %v2583 = vcvt.s32.f32 %v2519
  %v2584 = vcvt.s32.f32 %v2520
  %v2585 = vcvt.s32.f32 %v2521
  %v2586 = vcvt.s32.f32 %v2522
  %v2587 = vcvt.s32.f32 %v2523
  %v2588 = vcvt.s32.f32 %v2524
  %v2589 = vcvt.s32.f32 %v2525
  %v2590 = vcvt.s32.f32 %v2526
  %v2591 = vcvt.s32.f32 %v2527
  %v2592 = vcvt.s32.f32 %v2528
  %v2593 = vcvt.s32.f32 %v2529
  %v2594 = vcvt.s32.f32 %v2530
  %v2595 = vcvt.s32.f32 %v2531
  %v2596 = vcvt.s32.f32 %v2532
  %v2597 = vcvt.s32.f32 %v2533
  %v2598 = vcvt.s32.f32 %v2534
  %v2599 = vcvt.s32.f32 %v2535
  %v2600 = vcvt.s32.f32 %v2536
  %v2601 = vcvt.s32.f32 %v2537
  %v2602 = vcvt.s32.f32 %v2538
  %v2603 = vcvt.s32.f32 %v2539
  %v2604 = vcvt.s32.f32 %v2540
  %v2605 = vcvt.s32.f32 %v2541
  %v2606 = vcvt.s32.f32 %v2542
  %v2607 = vcvt.s32.f32 %v2543
  %v2608 = vcvt.s32.f32 %v2544
  %v2609 = vcvt.s32.f32 %v2545
  %v2610 = vcvt.s32.f32 %v2546
  %v2611 = vcvt.s32.f32 %v2547
  %v2612 = vcvt.s32.f32 %v2548
  %v2613 = vcvt.s32.f32 %v2549
  %v2614 = vcvt.s32.f32 %v2550
  %v2615 = vcvt.s32.f32 %v2551
  %v2616 = vcvt.s32.f32 %v2552
  %v2617 = vcvt.s32.f32 %v2553
  %v2618 = vcvt.s32.f32 %v2554
  %v2619 = vcvt.s32.f32 %v2555
  %v2620 = vcvt.s32.f32 %v2556
  %v2621 = vcvt.s32.f32 %v2557
  %v2622 = vcvt.s32.f32 %v2558
  %v2623 = vcvt.s32.f32 %v2559
  %v2624 = vcvt.s32.f32 %v2560
  %v2625 = vcvt.s32.f32 %v2561
  %v2626 = vcvt.s32.f32 %v2562
  %v2627 = vcvt.s32.f32 %v2563
  %v2628 = vcvt.s32.f32 %v2564
  %v2629 = vadd.s32 %v228, 256
  %v2630 = vadd.s32 %v228, 384
  %vm2631 = vcmp.lt.s32.totalorder %v228, 0
  %v2632 = vsub.s32 0, %v228
  %v2633 = vsel %vm2631, %v2632, %v228
  %v2634 = vshrl.u32 %v2633, 3
  %v2635 = vand.u32 %v2633, 7
  %v2636 = vsub.s32 0, %v2635
  %v2637 = vsel %vm2631, %v2636, %v2635
  %vm2638 = vcmp.lt.s32.totalorder %v1068, 0
  %v2639 = vsub.s32 0, %v1068
  %v2640 = vsel %vm2638, %v2639, %v1068
  %v2641 = vshrl.u32 %v2640, 3
  %v2642 = vand.u32 %v2640, 7
  %v2643 = vsub.s32 0, %v2642
  %v2644 = vsel %vm2638, %v2643, %v2642
  %vm2645 = vcmp.lt.s32.totalorder %v2629, 0
  %v2646 = vsub.s32 0, %v2629
  %v2647 = vsel %vm2645, %v2646, %v2629
  %v2648 = vshrl.u32 %v2647, 3
  %v2649 = vand.u32 %v2647, 7
  %v2650 = vsub.s32 0, %v2649
  %v2651 = vsel %vm2645, %v2650, %v2649
  %vm2652 = vcmp.lt.s32.totalorder %v2630, 0
  %v2653 = vsub.s32 0, %v2630
  %v2654 = vsel %vm2652, %v2653, %v2630
  %v2655 = vshrl.u32 %v2654, 3
  %v2656 = vand.u32 %v2654, 7
  %v2657 = vsub.s32 0, %v2656
  %v2658 = vsel %vm2652, %v2657, %v2656
  %vm2659 = vcmp.ne.s32.totalorder %v2637, 0
  %vm2660 = vcmp.ne.s32.totalorder %v2644, 0
  %vm2661 = vcmp.ne.s32.totalorder %v2651, 0
  %vm2662 = vcmp.ne.s32.totalorder %v2658, 0
  %vm2663 = vcmp.lt.s32.totalorder %v2637, 0
  %vm2664 = vcmp.lt.s32.totalorder %v2644, 0
  %vm2665 = vcmp.lt.s32.totalorder %v2651, 0
  %vm2666 = vcmp.lt.s32.totalorder %v2658, 0
  %vm2667 = vmand %vm2663, %vm2659
  %vm2668 = vmand %vm2664, %vm2660
  %vm2669 = vmand %vm2665, %vm2661
  %vm2670 = vmand %vm2666, %vm2662
  %v2671 = vadd.s32 %v2637, 8
  %v2672 = vadd.s32 %v2644, 8
  %v2673 = vadd.s32 %v2651, 8
  %v2674 = vadd.s32 %v2658, 8
  %v2675 = vsel %vm2667, %v2671, %v2637
  %v2676 = vsel %vm2668, %v2672, %v2644
  %v2677 = vsel %vm2669, %v2673, %v2651
  %v2678 = vsel %vm2670, %v2674, %v2658
  %vm2679 = vcmp.eq.s32.totalorder %v2675, %v25
  %vm2680 = vcmp.eq.s32.totalorder %v2676, %v25
  %vm2681 = vcmp.eq.s32.totalorder %v2677, %v25
  %vm2682 = vcmp.eq.s32.totalorder %v2678, %v25
  %v2683 = vsel %vm2679, 1, 0
  %v2684 = vsel %vm2680, 1, 0
  %v2685 = vsel %vm2681, 1, 0
  %v2686 = vsel %vm2682, 1, 0
  %v2687 = vcvt.s32.f32 %v2683
  %v2688 = vcvt.s32.f32 %v2684
  %v2689 = vcvt.s32.f32 %v2685
  %v2690 = vcvt.s32.f32 %v2686
  %v2691 = vadd.f32 %v1452, %v1455
  %v2692 = vadd.f32 %v2691, %v1458
  %v2693 = vadd.f32 %v2692, %v1461
  %v2694 = vrot.slane %v2693, 4
  %v2695 = vadd.f32 %v2693, %v2694
  %v2696 = vrot.slane %v2695, 2
  %v2697 = vadd.f32 %v2695, %v2696
  %v2698 = vrot.slane %v2697, 1
  %v2699 = vadd.f32 %v2697, %v2698
  %v2700 = vadd.f32 %v1510, %v1513
  %v2701 = vadd.f32 %v2700, %v1516
  %v2702 = vadd.f32 %v2701, %v1519
  %v2703 = vrot.slane %v2702, 4
  %v2704 = vadd.f32 %v2702, %v2703
  %v2705 = vrot.slane %v2704, 2
  %v2706 = vadd.f32 %v2704, %v2705
  %v2707 = vrot.slane %v2706, 1
  %v2708 = vadd.f32 %v2706, %v2707
  %v2709 = vadd.f32 %v1568, %v1571
  %v2710 = vadd.f32 %v2709, %v1574
  %v2711 = vadd.f32 %v2710, %v1577
  %v2712 = vrot.slane %v2711, 4
  %v2713 = vadd.f32 %v2711, %v2712
  %v2714 = vrot.slane %v2713, 2
  %v2715 = vadd.f32 %v2713, %v2714
  %v2716 = vrot.slane %v2715, 1
  %v2717 = vadd.f32 %v2715, %v2716
  %v2718 = vadd.f32 %v1626, %v1629
  %v2719 = vadd.f32 %v2718, %v1632
  %v2720 = vadd.f32 %v2719, %v1635
  %v2721 = vrot.slane %v2720, 4
  %v2722 = vadd.f32 %v2720, %v2721
  %v2723 = vrot.slane %v2722, 2
  %v2724 = vadd.f32 %v2722, %v2723
  %v2725 = vrot.slane %v2724, 1
  %v2726 = vadd.f32 %v2724, %v2725
  %v2727 = vmul.f32 %v1452, %v1452
  %v2728 = vmul.f32 %v1510, %v1510
  %v2729 = vmul.f32 %v1568, %v1568
  %v2730 = vmul.f32 %v1626, %v1626
  %v2731 = vmul.f32 %v1455, %v1455
  %v2732 = vmul.f32 %v1513, %v1513
  %v2733 = vmul.f32 %v1571, %v1571
  %v2734 = vmul.f32 %v1629, %v1629
  %v2735 = vmul.f32 %v1458, %v1458
  %v2736 = vmul.f32 %v1516, %v1516
  %v2737 = vmul.f32 %v1574, %v1574
  %v2738 = vmul.f32 %v1632, %v1632
  %v2739 = vmul.f32 %v1461, %v1461
  %v2740 = vmul.f32 %v1519, %v1519
  %v2741 = vmul.f32 %v1577, %v1577
  %v2742 = vmul.f32 %v1635, %v1635
  %v2743 = vadd.f32 %v2727, %v2731
  %v2744 = vadd.f32 %v2743, %v2735
  %v2745 = vadd.f32 %v2744, %v2739
  %v2746 = vrot.slane %v2745, 4
  %v2747 = vadd.f32 %v2745, %v2746
  %v2748 = vrot.slane %v2747, 2
  %v2749 = vadd.f32 %v2747, %v2748
  %v2750 = vrot.slane %v2749, 1
  %v2751 = vadd.f32 %v2749, %v2750
  %v2752 = vadd.f32 %v2728, %v2732
  %v2753 = vadd.f32 %v2752, %v2736
  %v2754 = vadd.f32 %v2753, %v2740
  %v2755 = vrot.slane %v2754, 4
  %v2756 = vadd.f32 %v2754, %v2755
  %v2757 = vrot.slane %v2756, 2
  %v2758 = vadd.f32 %v2756, %v2757
  %v2759 = vrot.slane %v2758, 1
  %v2760 = vadd.f32 %v2758, %v2759
  %v2761 = vadd.f32 %v2729, %v2733
  %v2762 = vadd.f32 %v2761, %v2737
  %v2763 = vadd.f32 %v2762, %v2741
  %v2764 = vrot.slane %v2763, 4
  %v2765 = vadd.f32 %v2763, %v2764
  %v2766 = vrot.slane %v2765, 2
  %v2767 = vadd.f32 %v2765, %v2766
  %v2768 = vrot.slane %v2767, 1
  %v2769 = vadd.f32 %v2767, %v2768
  %v2770 = vadd.f32 %v2730, %v2734
  %v2771 = vadd.f32 %v2770, %v2738
  %v2772 = vadd.f32 %v2771, %v2742
  %v2773 = vrot.slane %v2772, 4
  %v2774 = vadd.f32 %v2772, %v2773
  %v2775 = vrot.slane %v2774, 2
  %v2776 = vadd.f32 %v2774, %v2775
  %v2777 = vrot.slane %v2776, 1
  %v2778 = vadd.f32 %v2776, %v2777
  %v2779 = vsel %vm301, %v2699, %v2751
  %v2780 = vsel %vm301, %v2708, %v2760
  %v2781 = vsel %vm301, %v2717, %v2769
  %v2782 = vsel %vm301, %v2726, %v2778
  %2783 = vmatpush.msra.mxu0 %v2580
  %2784 = vmatpush.msra.mxu0 %v2579
  %2785 = vmatpush.msra.mxu0 %v2578
  %2786 = vmatpush.msra.mxu0 %v2577
  %2787 = vmatpush.msra.mxu0 %v2576
  %2788 = vmatpush.msra.mxu0 %v2575
  %2789 = vmatpush.msra.mxu0 %v2574
  %2790 = vmatpush.msra.mxu0 %v2573
  %2791 = vmatpush.msra.mxu0 %v2572
  %2792 = vmatpush.msra.mxu0 %v2571
  %2793 = vmatpush.msra.mxu0 %v2570
  %2794 = vmatpush.msra.mxu0 %v2569
  %2795 = vmatpush.msra.mxu0 %v2568
  %2796 = vmatpush.msra.mxu0 %v2567
  %2797 = vmatpush.msra.mxu0 %v2566
  %2798 = vmatpush.msra.mxu0 %v2565
  %2799 = vmatmul.f32.gmra.mxu0 %v2779
  %v2800 = vpop.f32.mrf.mxu0
  %v2801 = vadd.f32 0.0, %v2800
  %2802 = vdwg.mxu0
  %2803 = vmatpush.msra.mxu0 %v2596
  %2804 = vmatpush.msra.mxu0 %v2595
  %2805 = vmatpush.msra.mxu0 %v2594
  %2806 = vmatpush.msra.mxu0 %v2593
  %2807 = vmatpush.msra.mxu0 %v2592
  %2808 = vmatpush.msra.mxu0 %v2591
  %2809 = vmatpush.msra.mxu0 %v2590
  %2810 = vmatpush.msra.mxu0 %v2589
  %2811 = vmatpush.msra.mxu0 %v2588
  %2812 = vmatpush.msra.mxu0 %v2587
  %2813 = vmatpush.msra.mxu0 %v2586
  %2814 = vmatpush.msra.mxu0 %v2585
  %2815 = vmatpush.msra.mxu0 %v2584
  %2816 = vmatpush.msra.mxu0 %v2583
  %2817 = vmatpush.msra.mxu0 %v2582
  %2818 = vmatpush.msra.mxu0 %v2581
  %2819 = vmatmul.f32.gmra.mxu0 %v2780
  %v2820 = vpop.f32.mrf.mxu0
  %v2821 = vadd.f32 %v2801, %v2820
  %2822 = vdwg.mxu0
  %2823 = vmatpush.msra.mxu0 %v2612
  %2824 = vmatpush.msra.mxu0 %v2611
  %2825 = vmatpush.msra.mxu0 %v2610
  %2826 = vmatpush.msra.mxu0 %v2609
  %2827 = vmatpush.msra.mxu0 %v2608
  %2828 = vmatpush.msra.mxu0 %v2607
  %2829 = vmatpush.msra.mxu0 %v2606
  %2830 = vmatpush.msra.mxu0 %v2605
  %2831 = vmatpush.msra.mxu0 %v2604
  %2832 = vmatpush.msra.mxu0 %v2603
  %2833 = vmatpush.msra.mxu0 %v2602
  %2834 = vmatpush.msra.mxu0 %v2601
  %2835 = vmatpush.msra.mxu0 %v2600
  %2836 = vmatpush.msra.mxu0 %v2599
  %2837 = vmatpush.msra.mxu0 %v2598
  %2838 = vmatpush.msra.mxu0 %v2597
  %2839 = vmatmul.f32.gmra.mxu0 %v2781
  %v2840 = vpop.f32.mrf.mxu0
  %v2841 = vadd.f32 %v2821, %v2840
  %2842 = vdwg.mxu0
  %2843 = vmatpush.msra.mxu0 %v2628
  %2844 = vmatpush.msra.mxu0 %v2627
  %2845 = vmatpush.msra.mxu0 %v2626
  %2846 = vmatpush.msra.mxu0 %v2625
  %2847 = vmatpush.msra.mxu0 %v2624
  %2848 = vmatpush.msra.mxu0 %v2623
  %2849 = vmatpush.msra.mxu0 %v2622
  %2850 = vmatpush.msra.mxu0 %v2621
  %2851 = vmatpush.msra.mxu0 %v2620
  %2852 = vmatpush.msra.mxu0 %v2619
  %2853 = vmatpush.msra.mxu0 %v2618
  %2854 = vmatpush.msra.mxu0 %v2617
  %2855 = vmatpush.msra.mxu0 %v2616
  %2856 = vmatpush.msra.mxu0 %v2615
  %2857 = vmatpush.msra.mxu0 %v2614
  %2858 = vmatpush.msra.mxu0 %v2613
  %2859 = vmatmul.f32.gmra.mxu0 %v2782
  %v2860 = vpop.f32.mrf.mxu0
  %v2861 = vadd.f32 %v2841, %v2860
  %2862 = vdwg.mxu0
  %v2863 = vmul.f32 %v2861, 0.00048828125
  %v2864 = vmul.f32 %v2863, %v2863
  %v2866 = vrot.slane %v2864, 7
  %v2868 = vsub.f32 %v2863, %v2866
  %v2869 = vmax.f32 %v2868, 0.0
  %v2870 = vadd.f32 %v2869, 1e-05
  %v2871 = vrsqrt.pop %v2870
  %v2872 = vmul.f32 %v2871, %v2870
  %v2873 = vmul.f32 %v2872, %v2871
  %v2874 = vmul.f32 0.5, %v2873
  %v2875 = vsub.f32 1.5, %v2874
  %v2876 = vmul.f32 %v2871, %v2875
  %vm2877 = vweird.f32 %v2870
  %vm2878 = vweird.f32 %v2871
  %vm2879 = vmor %vm2877, %vm2878
  %v2880 = vsel %vm2879, %v2871, %v2876
  %v2882 = vrot.slane %v2880, 5
  %v2884 = vmul.f32 %v23, %v2882
  %v2886 = vrot.slane %v2884, 4
  %v2888 = vmul.f32 %v2863, %v2886
  %v2890 = vrot.slane %v2888, 3
  %v2892 = vsub.f32 %v23, %v2890
  %v2893 = vperm.slane %v2884, 4
  %v2894 = vperm.slane %v2892, 5
  %v2895 = vsel %vm301, %v2893, %v2894
  %vm2896 = vcmask 64512
  %v2898 = vsel %vm2896, %v2895, 0
  %2900 = vmatpush.msra.mxu0 0.0
  %2901 = vmatpush.msra.mxu0 0.0
  %2902 = vmatpush.msra.mxu0 0.0
  %2903 = vmatpush.msra.mxu0 0.0
  %2904 = vmatpush.msra.mxu0 0.0
  %2905 = vmatpush.msra.mxu0 0.0
  %2906 = vmatpush.msra.mxu0 0.0
  %2907 = vmatpush.msra.mxu0 0.0
  %2908 = vmatpush.msra.mxu0 0.0
  %2909 = vmatpush.msra.mxu0 0.0
  %2910 = vmatpush.msra.mxu0 0.0
  %2911 = vmatpush.msra.mxu0 0.0
  %2912 = vmatpush.msra.mxu0 0.0
  %2913 = vmatpush.msra.mxu0 0.0
  %2914 = vmatpush.msra.mxu0 0.0
  %2915 = vmatpush.msra.mxu0 %v2687
  %2916 = vmatmul.f32.gmra.mxu0 %v2898
  %v2917 = vpop.f32.mrf.mxu0
  %v2918 = vadd.f32 0.0, %v2917
  %2919 = vdwg.mxu0
  %2920 = vmatpush.msra.mxu0 0.0
  %2921 = vmatpush.msra.mxu0 0.0
  %2922 = vmatpush.msra.mxu0 0.0
  %2923 = vmatpush.msra.mxu0 0.0
  %2924 = vmatpush.msra.mxu0 0.0
  %2925 = vmatpush.msra.mxu0 0.0
  %2926 = vmatpush.msra.mxu0 0.0
  %2927 = vmatpush.msra.mxu0 0.0
  %2928 = vmatpush.msra.mxu0 0.0
  %2929 = vmatpush.msra.mxu0 0.0
  %2930 = vmatpush.msra.mxu0 0.0
  %2931 = vmatpush.msra.mxu0 0.0
  %2932 = vmatpush.msra.mxu0 0.0
  %2933 = vmatpush.msra.mxu0 0.0
  %2934 = vmatpush.msra.mxu0 0.0
  %2935 = vmatpush.msra.mxu0 %v2688
  %2936 = vmatmul.f32.gmra.mxu0 %v2898
  %v2937 = vpop.f32.mrf.mxu0
  %v2938 = vadd.f32 0.0, %v2937
  %2939 = vdwg.mxu0
  %2940 = vmatpush.msra.mxu0 0.0
  %2941 = vmatpush.msra.mxu0 0.0
  %2942 = vmatpush.msra.mxu0 0.0
  %2943 = vmatpush.msra.mxu0 0.0
  %2944 = vmatpush.msra.mxu0 0.0
  %2945 = vmatpush.msra.mxu0 0.0
  %2946 = vmatpush.msra.mxu0 0.0
  %2947 = vmatpush.msra.mxu0 0.0
  %2948 = vmatpush.msra.mxu0 0.0
  %2949 = vmatpush.msra.mxu0 0.0
  %2950 = vmatpush.msra.mxu0 0.0
  %2951 = vmatpush.msra.mxu0 0.0
  %2952 = vmatpush.msra.mxu0 0.0
  %2953 = vmatpush.msra.mxu0 0.0
  %2954 = vmatpush.msra.mxu0 0.0
  %2955 = vmatpush.msra.mxu0 %v2689
  %2956 = vmatmul.f32.gmra.mxu0 %v2898
  %v2957 = vpop.f32.mrf.mxu0
  %v2958 = vadd.f32 0.0, %v2957
  %2959 = vdwg.mxu0
  %2960 = vmatpush.msra.mxu0 0.0
  %2961 = vmatpush.msra.mxu0 0.0
  %2962 = vmatpush.msra.mxu0 0.0
  %2963 = vmatpush.msra.mxu0 0.0
  %2964 = vmatpush.msra.mxu0 0.0
  %2965 = vmatpush.msra.mxu0 0.0
  %2966 = vmatpush.msra.mxu0 0.0
  %2967 = vmatpush.msra.mxu0 0.0
  %2968 = vmatpush.msra.mxu0 0.0
  %2969 = vmatpush.msra.mxu0 0.0
  %2970 = vmatpush.msra.mxu0 0.0
  %2971 = vmatpush.msra.mxu0 0.0
  %2972 = vmatpush.msra.mxu0 0.0
  %2973 = vmatpush.msra.mxu0 0.0
  %2974 = vmatpush.msra.mxu0 0.0
  %2975 = vmatpush.msra.mxu0 %v2690
  %2976 = vmatmul.f32.gmra.mxu0 %v2898
  %v2977 = vpop.f32.mrf.mxu0
  %v2978 = vadd.f32 0.0, %v2977
  %2979 = vdwg.mxu0
  %v2980 = vperm.slane %v2918, 0
  %v2981 = vperm.slane %v2938, 0
  %v2982 = vperm.slane %v2958, 0
  %v2983 = vperm.slane %v2978, 0
  %v2984 = vmul.f32 %v1452, %v2980
  %v2985 = vmul.f32 %v1510, %v2981
  %v2986 = vmul.f32 %v1568, %v2982
  %v2987 = vmul.f32 %v1626, %v2983
  %v2988 = vmul.f32 %v1455, %v2980
  %v2989 = vmul.f32 %v1513, %v2981
  %v2990 = vmul.f32 %v1571, %v2982
  %v2991 = vmul.f32 %v1629, %v2983
  %v2992 = vmul.f32 %v1458, %v2980
  %v2993 = vmul.f32 %v1516, %v2981
  %v2994 = vmul.f32 %v1574, %v2982
  %v2995 = vmul.f32 %v1632, %v2983
  %v2996 = vmul.f32 %v1461, %v2980
  %v2997 = vmul.f32 %v1519, %v2981
  %v2998 = vmul.f32 %v1577, %v2982
  %v2999 = vmul.f32 %v1635, %v2983
  %v3000 = vperm.slane %v2918, 1
  %v3001 = vperm.slane %v2938, 1
  %v3002 = vperm.slane %v2958, 1
  %v3003 = vperm.slane %v2978, 1
  %v3004 = vadd.f32 %v2984, %v3000
  %v3005 = vadd.f32 %v2985, %v3001
  %v3006 = vadd.f32 %v2986, %v3002
  %v3007 = vadd.f32 %v2987, %v3003
  %v3008 = vadd.f32 %v2988, %v3000
  %v3009 = vadd.f32 %v2989, %v3001
  %v3010 = vadd.f32 %v2990, %v3002
  %v3011 = vadd.f32 %v2991, %v3003
  %v3012 = vadd.f32 %v2992, %v3000
  %v3013 = vadd.f32 %v2993, %v3001
  %v3014 = vadd.f32 %v2994, %v3002
  %v3015 = vadd.f32 %v2995, %v3003
  %v3016 = vadd.f32 %v2996, %v3000
  %v3017 = vadd.f32 %v2997, %v3001
  %v3018 = vadd.f32 %v2998, %v3002
  %v3019 = vadd.f32 %v2999, %v3003
  %v3020 = vmax.f32 %v3004, 0.0
  %v3021 = vmax.f32 %v3005, 0.0
  %v3022 = vmax.f32 %v3006, 0.0
  %v3023 = vmax.f32 %v3007, 0.0
  %v3024 = vmax.f32 %v3008, 0.0
  %v3025 = vmax.f32 %v3009, 0.0
  %v3026 = vmax.f32 %v3010, 0.0
  %v3027 = vmax.f32 %v3011, 0.0
  %v3028 = vmax.f32 %v3012, 0.0
  %v3029 = vmax.f32 %v3013, 0.0
  %v3030 = vmax.f32 %v3014, 0.0
  %v3031 = vmax.f32 %v3015, 0.0
  %v3032 = vmax.f32 %v3016, 0.0
  %v3033 = vmax.f32 %v3017, 0.0
  %v3034 = vmax.f32 %v3018, 0.0
  %v3035 = vmax.f32 %v3019, 0.0
  %3036 = vst [vmem:[%s6] sm:$0xff] %v3020
  %3037 = vst [vmem:[%s6 + $0x8] sm:$0xff] %v3021
  %3038 = vst [vmem:[%s6 + $0x10] sm:$0xff] %v3022
  %3039 = vst [vmem:[%s6 + $0x18] sm:$0xff] %v3023
  %3040 = vst [vmem:[%s6 + $0x20] sm:$0xff] %v3024
  %3041 = vst [vmem:[%s6 + $0x28] sm:$0xff] %v3025
  %3042 = vst [vmem:[%s6 + $0x30] sm:$0xff] %v3026
  %3043 = vst [vmem:[%s6 + $0x38] sm:$0xff] %v3027
  %3044 = vst [vmem:[%s6 + $0x40] sm:$0xff] %v3028
  %3045 = vst [vmem:[%s6 + $0x48] sm:$0xff] %v3029
  %3046 = vst [vmem:[%s6 + $0x50] sm:$0xff] %v3030
  %3047 = vst [vmem:[%s6 + $0x58] sm:$0xff] %v3031
  %3048 = vst [vmem:[%s6 + $0x60] sm:$0xff] %v3032
  %3049 = vst [vmem:[%s6 + $0x68] sm:$0xff] %v3033
  %3050 = vst [vmem:[%s6 + $0x70] sm:$0xff] %v3034
  %3051 = vst [vmem:[%s6 + $0x78] sm:$0xff] %v3035
  // Predicated region
  $region26: #{decoder_block.1} parent=0 // pred_check
    _
  $region27: #{decoder_block.1} parent=0 // pred_check_branch
    %3053 = sbr.rel (0) target = $region29
  $region28: #{decoder_block.1} parent=0 // pred_region
    _
  $region29: #{decoder_block.1} parent=0 // pred_fallthru
    _
  // Predicated region
  $region30: #{decoder_block.1} parent=0 // pred_check
    _
  $region31: #{decoder_block.1} parent=0 // pred_check_branch
    %3055 = sbr.rel (0) target = $region33
  $region32: #{decoder_block.1} parent=0 // pred_region
    _
  $region33: #{decoder_block.1} parent=0 // pred_fallthru
    _

</llo_original>
